<compile_context>
chip_gen: v7x
topology: tpu7x:2x2x1
jax: 0.10.0
libtpu: 0.0.40
codegen_flags: <defaults>
</compile_context>

<pallas_src>
import functools
from collections import namedtuple

import numpy as np
import jax
import jax.numpy as jnp
from jax.experimental import pallas as pl
from jax.experimental.pallas import tpu as pltpu

# ------------------------- synthetic dataset config -------------------------
channel_list = {'ucihar': [8, 16, 32, 64, 6]}           # 4 conv widths + num classes
conv_list = {'ucihar': [3, 1, 1]}                       # Conv2d(kernel=3, stride=1, padding=1)
maxp_list = {'ucihar': [(2, 2), (2, 2), (0, 0)]}        # MaxPool2d(kernel, stride, padding)
first_maxp_list = {'ucihar': [(4, 4), (4, 4), (0, 0)]}  # first ("larger") max pool
# downsample = 4 * 2 * 2 * 2 = 32, matching get_downsample_ratio()


def get_data_size(data_name, is_sup=False):
    return (2, 1, 32, 32)  # (B, C, H, W)


def GetFeatureMapSize(data_name, idex_layer, padding=False, larger_max=False, is_sup=False):
    size = get_data_size(data_name, is_sup)[2:]
    maxpooling_size = maxp_list[data_name]
    first_maxp_size = first_maxp_list[data_name]
    h, w = size
    if idex_layer > 0:
        for i in range(idex_layer):
            if padding:
                if larger_max and i == 0:
                    h = (h - first_maxp_size[0][0] + first_maxp_size[2][0] * 2 + first_maxp_size[1][0]) // first_maxp_size[1][0]
                    w = (w - first_maxp_size[0][1] + first_maxp_size[2][1] * 2 + first_maxp_size[1][1]) // first_maxp_size[1][1]
                else:
                    h = (h - maxpooling_size[0][0] + maxpooling_size[2][0] * 2 + maxpooling_size[1][0]) // maxpooling_size[1][0]
                    w = (w - maxpooling_size[0][1] + maxpooling_size[2][1] * 2 + maxpooling_size[1][1]) // maxpooling_size[1][1]
            else:
                h //= maxpooling_size[0][0]
                w //= maxpooling_size[0][1]
        return (h, w)
    elif idex_layer == 0:
        return (h, w)
    else:
        raise ValueError('check your idex_layer')


# --------------------------------- config ------------------------------------
LayerCfg = namedtuple("LayerCfg", "B H W Cin Cout ph pw Ho Wo Hp R")
# H, W, Cin : layer input spatial / channels; Ho, Wo, Cout : layer output after pool
# Hp = H + 2 (H zero-padding rows per image);  R = B*Hp - 2 (GEMM rows incl. garbage)


# ------------------------------ Pallas kernels -------------------------------
def _convstack_kernel(*refs, cfg):
    """Fused 4-layer conv stack.

    refs layout: [x2d, T_0..T_3, scales, shifts] + [out_0..out_3] + [xpad_0..xpad_3, zbuf]
      x2d    : (B*H0, W0*Cin0)  input, rows (b,h), lanes (w,ci)
      T_l    : (3*pw_l, W_l*Cin_l, Wo_l*Cout_l)   block-Toeplitz conv weights
      scales : (4, Wo*Cout)  folded BN scale tiled along Wo
      shifts : (4, Wo*Cout)  folded conv-bias + BN shift tiled along Wo
      out_l  : (B*Ho_l, Wo_l*Cout_l)  pooled NHWC-flat feature map
      xpad_l : (B*Hp_l, W_l*Cin_l)    H-zero-padded layer input (VMEM scratch)
      zbuf   : (max R, Wo*Cout)       conv+BN+W-pool result before H-pool (VMEM)
    """
    n = len(cfg)
    x_ref = refs[0]
    trefs = refs[1:1 + n]
    scale_ref = refs[1 + n]
    shift_ref = refs[2 + n]
    outs = refs[3 + n:3 + 2 * n]
    xpads = refs[3 + 2 * n:3 + 3 * n]
    zbuf = refs[3 + 3 * n]

    scales = scale_ref[...]
    shifts = shift_ref[...]

    # Zero the padded activation buffers (only the pad rows strictly need it; the
    # buffers are a few KB so a full fill is simplest).
    for xp in xpads:
        xp[...] = jnp.zeros_like(xp)

    # Scatter the (B*H0, W0*Cin0) input into layer 0's H-padded buffer.
    c0 = cfg[0]
    for b in range(c0.B):
        xpads[0][b * c0.Hp + 1: b * c0.Hp + 1 + c0.H, :] = x_ref[b * c0.H:(b + 1) * c0.H, :]

    for l in range(n):
        c = cfg[l]
        xp = xpads[l]
        tr = trefs[l]
        out = outs[l]
        scale = scales[l:l + 1, :]
        shift = shifts[l:l + 1, :]

        # Conv (3 row-shift GEMMs per pool-column phase j) + folded BN affine,
        # then max over the pw phases == max-pool along W.
        z = None
        for j in range(c.pw):
            acc = None
            for kh in range(3):
                contrib = jnp.dot(xp[kh:kh + c.R, :], tr[kh * c.pw + j],
                                  preferred_element_type=jnp.float32)
                acc = contrib if acc is None else acc + contrib
            zj = acc * scale + shift
            z = zj if z is None else jnp.maximum(z, zj)

        zbuf[0:c.R, :] = z

        # Max-pool along H via ph sublane-strided reads, then ReLU (commutes with max).
        for b in range(c.B):
            p = None
            for i in range(c.ph):
                v = zbuf[pl.ds(b * c.Hp + i, c.Ho, stride=c.ph), :]
                p = v if p is None else jnp.maximum(p, v)
            p = jnp.maximum(p, 0.0)
            out[b * c.Ho:(b + 1) * c.Ho, :] = p.astype(out.dtype)
            if l + 1 < n:
                cn = cfg[l + 1]
                xpads[l + 1][b * cn.Hp + 1: b * cn.Hp + 1 + cn.H, :] = p


def _linear_kernel(x_ref, w_ref, b_ref, o_ref):
    o_ref[...] = (jnp.dot(x_ref[...], w_ref[...], preferred_element_type=jnp.float32)
                  + b_ref[...]).astype(o_ref.dtype)


# -------------------------- host-side weight folding -------------------------
def _build_toeplitz(wconv_np, W, Cin, Cout, pw, Wo):
    """Block-Toeplitz matrices T[kh, j] : (W*Cin, Wo*Cout).

    out[(b,h), wo*Cout+co] for output column w = wo*pw + j is
      sum_kh  xrows_kh[(b,h), w_in*Cin+ci] * T[kh,j][w_in*Cin+ci, wo*Cout+co]
    with w_in = w + kw - 1 (W padding handled by simply omitting OOB taps).
    """
    T = np.zeros((3, pw, W * Cin, Wo * Cout), np.float32)
    for kh in range(3):
        for j in range(pw):
            for wo in range(Wo):
                w_out = wo * pw + j
                for kw in range(3):
                    w_in = w_out + kw - 1
                    if 0 <= w_in < W:
                        T[kh, j, w_in * Cin:(w_in + 1) * Cin, wo * Cout:(wo + 1) * Cout] = \
                            wconv_np[:, :, kh, kw].T  # (Cin, Cout)
    return T.reshape(3 * pw, W * Cin, Wo * Cout)


# ------------------------------- the module -----------------------------------
class ConvNetSupPallas:
    def __init__(self, data_name='ucihar', use_adativeavg=False, sub_number=4, key=None):
        if key is None:
            key = jax.random.PRNGKey(0)
        self.channel = channel = channel_list[data_name]
        self.conv_params = conv_list[data_name]
        self.max_params = maxp_list[data_name]
        self.first_max = first_maxp_list[data_name]
        self.dataset_name = data_name
        self.use_adativeavg = use_adativeavg
        if use_adativeavg:
            # TODO(synk): AdaptiveAvgPool2d((1, w)) branch (use_adativeavg=True) not implemented; default config uses nn.Identity.
            raise NotImplementedError("use_adativeavg=True branch not implemented")

        k, stride, pad = self.conv_params
        assert (k, stride, pad) == (3, 1, 1)

        # ---- static per-layer geometry ----
        B, cin0, H, W = get_data_size(data_name, is_sup=True)
        cfg = []
        cin, h, w = cin0, H, W
        for li, cout in enumerate(channel[:4]):
            pool = self.first_max if li == 0 else self.max_params
            (pkh, pkw), (psh, psw), (pph, ppw) = pool
            assert (pkh, pkw) == (psh, psw) and (pph, ppw) == (0, 0)
            assert h % pkh == 0 and w % pkw == 0
            ho, wo = h // pkh, w // pkw
            cfg.append(LayerCfg(B=B, H=h, W=w, Cin=cin, Cout=cout, ph=pkh, pw=pkw,
                                Ho=ho, Wo=wo, Hp=h + 2, R=B * (h + 2) - 2))
            cin, h, w = cout, ho, wo
        self.cfg = tuple(cfg)
        assert len({c.Wo * c.Cout for c in self.cfg}) == 1, "uniform output lane width expected"
        self._lane = self.cfg[0].Wo * self.cfg[0].Cout

        # ---- random parameters (eval-mode BN), all transforms folded at init ----
        hh, ww = GetFeatureMapSize(data_name, sub_number, padding=True, larger_max=True, is_sup=True)
        in_features = channel[3] * hh * ww
        num_classes = channel[-1]

        keys = jax.random.split(key, 4 * 6 + 2)
        t_list, scale_rows, shift_rows, ref_params = [], [], [], []
        eps = 1e-5
        for li, c in enumerate(self.cfg):
            kk = keys[li * 6:(li + 1) * 6]
            fan_in = c.Cin * k * k
            wconv = jax.random.normal(kk[0], (c.Cout, c.Cin, k, k), jnp.float32) / np.sqrt(fan_in)
            bconv = 0.01 * jax.random.normal(kk[1], (c.Cout,), jnp.float32)
            gamma = 1.0 + 0.1 * jax.random.normal(kk[2], (c.Cout,), jnp.float32)
            beta = 0.1 * jax.random.normal(kk[3], (c.Cout,), jnp.float32)
            rmean = 0.1 * jax.random.normal(kk[4], (c.Cout,), jnp.float32)
            rvar = 1.0 + 0.1 * jnp.abs(jax.random.normal(kk[5], (c.Cout,), jnp.float32))

            scale = np.asarray(gamma / jnp.sqrt(rvar + eps), np.float32)          # (Cout,)
            shift = np.asarray((bconv - rmean) * (gamma / jnp.sqrt(rvar + eps)) + beta, np.float32)
            t_list.append(jnp.asarray(
                _build_toeplitz(np.asarray(wconv, np.float32), c.W, c.Cin, c.Cout, c.pw, c.Wo)))
            scale_rows.append(np.tile(scale, c.Wo))                               # lane = (wo, co)
            shift_rows.append(np.tile(shift, c.Wo))
            ref_params.append(dict(w=wconv, scale=jnp.asarray(scale), shift=jnp.asarray(shift)))

        self.t_mats = tuple(t_list)
        self.scales = jnp.asarray(np.stack(scale_rows).astype(np.float32))        # (4, lane)
        self.shifts = jnp.asarray(np.stack(shift_rows).astype(np.float32))        # (4, lane)
        self._ref_params = ref_params                                             # for pure-JAX check

        cls_w = jax.random.normal(keys[24], (num_classes, in_features), jnp.float32) / np.sqrt(in_features)
        self.cls_wT = jnp.transpose(cls_w)                                        # (F, num_classes)
        self.cls_b = (0.01 * jax.random.normal(keys[25], (num_classes,), jnp.float32)).reshape(1, num_classes)

        self._hier_jit = jax.jit(self._hier_impl)
        self._cls_jit = jax.jit(self._cls_impl)

    # --- hierarchical branch: one fused pallas_call for the whole conv stack ---
    def _hier_impl(self, x_nchw):
        cfg = self.cfg
        c0 = cfg[0]
        B = c0.B
        x2d = jnp.transpose(x_nchw.astype(jnp.float32), (0, 2, 3, 1)).reshape(B * c0.H, c0.W * c0.Cin)

        kernel = functools.partial(_convstack_kernel, cfg=cfg)
        outs = pl.pallas_call(
            kernel,
            out_shape=tuple(jax.ShapeDtypeStruct((c.B * c.Ho, c.Wo * c.Cout), jnp.float32) for c in cfg),
            grid=(1,),
            in_specs=[
                pl.BlockSpec((B * c0.H, c0.W * c0.Cin), lambda i: (0, 0)),
                *[pl.BlockSpec(t.shape, lambda i: (0, 0, 0)) for t in self.t_mats],
                pl.BlockSpec(self.scales.shape, lambda i: (0, 0)),
                pl.BlockSpec(self.shifts.shape, lambda i: (0, 0)),
            ],
            out_specs=tuple(pl.BlockSpec((c.B * c.Ho, c.Wo * c.Cout), lambda i: (0, 0)) for c in cfg),
            scratch_shapes=[pltpu.VMEM((c.B * c.Hp, c.W * c.Cin), jnp.float32) for c in cfg]
                          + [pltpu.VMEM((max(c.R for c in cfg), self._lane), jnp.float32)],
            compiler_params=pltpu.CompilerParams(dimension_semantics=("arbitrary",)),
        )(x2d, *self.t_mats, self.scales, self.shifts)

        feats = []
        for o, c in zip(outs, cfg):
            feats.append(jnp.transpose(o.reshape(B, c.Ho, c.Wo, c.Cout), (0, 3, 1, 2)))  # NCHW
        return feats

    # --- default branch: Identity -> flatten -> Linear (single fused GEMM) ---
    def _cls_impl(self, x_nchw):
        B = x_nchw.shape[0]
        xf = x_nchw.reshape(B, -1).astype(jnp.float32)
        F = self.cls_wT.shape[0]
        N = self.cls_wT.shape[1]
        assert xf.shape[1] == F, "classifier expects the final pooled feature map"
        return pl.pallas_call(
            _linear_kernel,
            out_shape=jax.ShapeDtypeStruct((B, N), jnp.float32),
            grid=(1,),
            in_specs=[pl.BlockSpec((B, F), lambda i: (0, 0)),
                      pl.BlockSpec((F, N), lambda i: (0, 0)),
                      pl.BlockSpec((1, N), lambda i: (0, 0))],
            out_specs=pl.BlockSpec((B, N), lambda i: (0, 0)),
            compiler_params=pltpu.CompilerParams(dimension_semantics=("arbitrary",)),
        )(xf, self.cls_wT, self.cls_b)

    def forward(self, x_nchw, hierarchical=False):
        if hierarchical:
            return self._hier_jit(x_nchw)
        return self._cls_jit(x_nchw)


# ---------------------- pure-JAX reference (correctness) ----------------------
def _reference_feats(model, x_nchw):
    x = jnp.transpose(x_nchw.astype(jnp.float32), (0, 2, 3, 1))  # NHWC
    feats = []
    for li, c in enumerate(model.cfg):
        p = model._ref_params[li]
        rhs = jnp.transpose(p['w'], (2, 3, 1, 0))                # HWIO
        y = jax.lax.conv_general_dilated(
            x, rhs, window_strides=(1, 1), padding='SAME',
            dimension_numbers=('NHWC', 'HWIO', 'NHWC'),
            precision=jax.lax.Precision.HIGHEST)
        y = y * p['scale'] + p['shift']
        y = jnp.maximum(y, 0.0)
        y = jax.lax.reduce_window(y, -jnp.inf, jax.lax.max,
                                  (1, c.ph, c.pw, 1), (1, c.ph, c.pw, 1), 'VALID')
        feats.append(jnp.transpose(y, (0, 3, 1, 2)))
        x = y
    return feats


# ---------------------------------- main --------------------------------------
if __name__ == "__main__":
    key = jax.random.PRNGKey(0)
    kparam, kx = jax.random.split(key)
    model = ConvNetSupPallas('ucihar', use_adativeavg=False, sub_number=4, key=kparam)

    B, Cin, H, W = get_data_size('ucihar', is_sup=True)
    x = jax.random.normal(kx, (B, Cin, H, W), jnp.float32)       # raw input, NCHW

    # hierarchical branch: one fused Pallas kernel -> 4 NCHW feature maps
    feats = model.forward(x, hierarchical=True)
    # default branch: Identity -> flatten -> Linear classifier (Pallas GEMM)
    logits = model.forward(feats[-1], hierarchical=False)

    for f in feats:
        jax.block_until_ready(f)
    jax.block_until_ready(logits)

    # shape checks (module API)
    assert [f.shape[1] for f in feats] == model.channel[:4]
    assert feats[0].shape == (B, model.channel[0], 8, 8)
    assert feats[-1].shape == (B, model.channel[3], 1, 1)
    assert logits.shape == (B, model.channel[-1])

    # numerical check against a pure-JAX/XLA reference (loose tol: MXU pass count differs)
    ref_feats = _reference_feats(model, x)
    for f, rf in zip(feats, ref_feats):
        err = float(jnp.max(jnp.abs(f - rf)))
        ref_mag = float(jnp.max(jnp.abs(rf)))
        assert err < 5e-2 * (1.0 + ref_mag), f"feature map mismatch: {err}"
    ref_logits = ref_feats[-1].reshape(B, -1) @ model.cls_wT + model.cls_b
    err = float(jnp.max(jnp.abs(logits - ref_logits)))
    assert err < 5e-2 * (1.0 + float(jnp.max(jnp.abs(ref_logits)))), f"logits mismatch: {err}"

    print("KERNEL_OK")
</pallas_src>

<mosaic_0001>
module attributes {stable_mosaic.version = 11 : i64} {
  func.func @_convstack_kernel(%arg0: i32, %arg1: memref<64x32xf32, #tpu.memory_space<vmem>>, %arg2: memref<12x32x64xf32, #tpu.memory_space<vmem>>, %arg3: memref<6x64x64xf32, #tpu.memory_space<vmem>>, %arg4: memref<6x64x64xf32, #tpu.memory_space<vmem>>, %arg5: memref<6x64x64xf32, #tpu.memory_space<vmem>>, %arg6: memref<4x64xf32, #tpu.memory_space<vmem>>, %arg7: memref<4x64xf32, #tpu.memory_space<vmem>>, %arg8: memref<16x64xf32, #tpu.memory_space<vmem>>, %arg9: memref<8x64xf32, #tpu.memory_space<vmem>>, %arg10: memref<4x64xf32, #tpu.memory_space<vmem>>, %arg11: memref<2x64xf32, #tpu.memory_space<vmem>>, %arg12: memref<68x32xf32, #tpu.memory_space<vmem>>, %arg13: memref<20x64xf32, #tpu.memory_space<vmem>>, %arg14: memref<12x64xf32, #tpu.memory_space<vmem>>, %arg15: memref<8x64xf32, #tpu.memory_space<vmem>>, %arg16: memref<66x64xf32, #tpu.memory_space<vmem>>) attributes {dimension_semantics = [#tpu.dimension_semantics<arbitrary>], iteration_bounds = array<i64: 1>, scalar_prefetch = 0 : i64, scratch_operands = 5 : i64, tpu.core_type = #tpu.core_type<tc>, window_params = [{pipeline_mode = #tpu.pipeline_mode<synchronous>, transform_indices = @transform_0, window_bounds = array<i64: 64, 32>}, {pipeline_mode = #tpu.pipeline_mode<synchronous>, transform_indices = @transform_1, window_bounds = array<i64: 12, 32, 64>}, {pipeline_mode = #tpu.pipeline_mode<synchronous>, transform_indices = @transform_2, window_bounds = array<i64: 6, 64, 64>}, {pipeline_mode = #tpu.pipeline_mode<synchronous>, transform_indices = @transform_3, window_bounds = array<i64: 6, 64, 64>}, {pipeline_mode = #tpu.pipeline_mode<synchronous>, transform_indices = @transform_4, window_bounds = array<i64: 6, 64, 64>}, {pipeline_mode = #tpu.pipeline_mode<synchronous>, transform_indices = @transform_5, window_bounds = array<i64: 4, 64>}, {pipeline_mode = #tpu.pipeline_mode<synchronous>, transform_indices = @transform_6, window_bounds = array<i64: 4, 64>}, {pipeline_mode = #tpu.pipeline_mode<synchronous>, transform_indices = @transform_7, window_bounds = array<i64: 16, 64>}, {pipeline_mode = #tpu.pipeline_mode<synchronous>, transform_indices = @transform_8, window_bounds = array<i64: 8, 64>}, {pipeline_mode = #tpu.pipeline_mode<synchronous>, transform_indices = @transform_9, window_bounds = array<i64: 4, 64>}, {pipeline_mode = #tpu.pipeline_mode<synchronous>, transform_indices = @transform_10, window_bounds = array<i64: 2, 64>}]} {
    %c0 = arith.constant 0 : index
    %c0_0 = arith.constant 0 : index
    %0 = vector.load %arg6[%c0, %c0_0] : memref<4x64xf32, #tpu.memory_space<vmem>>, vector<4x64xf32>
    %c0_1 = arith.constant 0 : index
    %c0_2 = arith.constant 0 : index
    %1 = vector.load %arg7[%c0_1, %c0_2] : memref<4x64xf32, #tpu.memory_space<vmem>>, vector<4x64xf32>
    %cst = arith.constant 0.000000e+00 : f32
    %2 = vector.broadcast %cst : f32 to vector<68x32xf32>
    %c0_3 = arith.constant 0 : index
    %c0_4 = arith.constant 0 : index
    %3 = vector.load %arg12[%c0_3, %c0_4] : memref<68x32xf32, #tpu.memory_space<vmem>>, vector<68x32xf32>
    tpu.vector_store %arg12[%c0_3, %c0_4], %2 {strides = array<i32>} : memref<68x32xf32, #tpu.memory_space<vmem>>, vector<68x32xf32>,
    %cst_5 = arith.constant 0.000000e+00 : f32
    %4 = vector.broadcast %cst_5 : f32 to vector<20x64xf32>
    %c0_6 = arith.constant 0 : index
    %c0_7 = arith.constant 0 : index
    %5 = vector.load %arg13[%c0_6, %c0_7] : memref<20x64xf32, #tpu.memory_space<vmem>>, vector<20x64xf32>
    tpu.vector_store %arg13[%c0_6, %c0_7], %4 {strides = array<i32>} : memref<20x64xf32, #tpu.memory_space<vmem>>, vector<20x64xf32>,
    %cst_8 = arith.constant 0.000000e+00 : f32
    %6 = vector.broadcast %cst_8 : f32 to vector<12x64xf32>
    %c0_9 = arith.constant 0 : index
    %c0_10 = arith.constant 0 : index
    %7 = vector.load %arg14[%c0_9, %c0_10] : memref<12x64xf32, #tpu.memory_space<vmem>>, vector<12x64xf32>
    tpu.vector_store %arg14[%c0_9, %c0_10], %6 {strides = array<i32>} : memref<12x64xf32, #tpu.memory_space<vmem>>, vector<12x64xf32>,
    %cst_11 = arith.constant 0.000000e+00 : f32
    %8 = vector.broadcast %cst_11 : f32 to vector<8x64xf32>
    %c0_12 = arith.constant 0 : index
    %c0_13 = arith.constant 0 : index
    %9 = vector.load %arg15[%c0_12, %c0_13] : memref<8x64xf32, #tpu.memory_space<vmem>>, vector<8x64xf32>
    tpu.vector_store %arg15[%c0_12, %c0_13], %8 {strides = array<i32>} : memref<8x64xf32, #tpu.memory_space<vmem>>, vector<8x64xf32>,
    %c0_14 = arith.constant 0 : index
    %c0_15 = arith.constant 0 : index
    %10 = vector.load %arg1[%c0_14, %c0_15] : memref<64x32xf32, #tpu.memory_space<vmem>>, vector<32x32xf32>
    %c1 = arith.constant 1 : index
    %c0_16 = arith.constant 0 : index
    %11 = vector.load %arg12[%c1, %c0_16] : memref<68x32xf32, #tpu.memory_space<vmem>>, vector<32x32xf32>
    tpu.vector_store %arg12[%c1, %c0_16], %10 {strides = array<i32>} : memref<68x32xf32, #tpu.memory_space<vmem>>, vector<32x32xf32>,
    %c32 = arith.constant 32 : index
    %c0_17 = arith.constant 0 : index
    %12 = vector.load %arg1[%c32, %c0_17] : memref<64x32xf32, #tpu.memory_space<vmem>>, vector<32x32xf32>
    %c35 = arith.constant 35 : index
    %c0_18 = arith.constant 0 : index
    %13 = vector.load %arg12[%c35, %c0_18] : memref<68x32xf32, #tpu.memory_space<vmem>>, vector<32x32xf32>
    tpu.vector_store %arg12[%c35, %c0_18], %12 {strides = array<i32>} : memref<68x32xf32, #tpu.memory_space<vmem>>, vector<32x32xf32>,
    %14 = vector.extract_strided_slice %0 {offsets = [0, 0], sizes = [1, 64], strides = [1, 1]} : vector<4x64xf32> to vector<1x64xf32>
    %15 = vector.extract_strided_slice %1 {offsets = [0, 0], sizes = [1, 64], strides = [1, 1]} : vector<4x64xf32> to vector<1x64xf32>
    %c0_19 = arith.constant 0 : index
    %c0_20 = arith.constant 0 : index
    %16 = vector.load %arg12[%c0_19, %c0_20] : memref<68x32xf32, #tpu.memory_space<vmem>>, vector<66x32xf32>
    %c0_21 = arith.constant 0 : index
    %c0_22 = arith.constant 0 : index
    %c0_23 = arith.constant 0 : index
    %17 = vector.load %arg2[%c0_21, %c0_22, %c0_23] : memref<12x32x64xf32, #tpu.memory_space<vmem>>, vector<1x32x64xf32>
    %18 = vector.shape_cast %17 : vector<1x32x64xf32> to vector<32x64xf32>
    %cst_24 = arith.constant dense<0.000000e+00> : vector<66x64xf32>
    %19 = tpu.matmul %16, %18, %cst_24 {dimension_numbers = #tpu.dot_dimension_numbers<[1], [0], [0], [1], [0, 0, 1, 1], [], []>} : vector<66x32xf32>, vector<32x64xf32>, vector<66x64xf32> -> vector<66x64xf32>
    %c1_25 = arith.constant 1 : index
    %c0_26 = arith.constant 0 : index
    %20 = vector.load %arg12[%c1_25, %c0_26] : memref<68x32xf32, #tpu.memory_space<vmem>>, vector<66x32xf32>
    %c4 = arith.constant 4 : index
    %c0_27 = arith.constant 0 : index
    %c0_28 = arith.constant 0 : index
    %21 = vector.load %arg2[%c4, %c0_27, %c0_28] : memref<12x32x64xf32, #tpu.memory_space<vmem>>, vector<1x32x64xf32>
    %22 = vector.shape_cast %21 : vector<1x32x64xf32> to vector<32x64xf32>
    %cst_29 = arith.constant dense<0.000000e+00> : vector<66x64xf32>
    %23 = tpu.matmul %20, %22, %cst_29 {dimension_numbers = #tpu.dot_dimension_numbers<[1], [0], [0], [1], [0, 0, 1, 1], [], []>} : vector<66x32xf32>, vector<32x64xf32>, vector<66x64xf32> -> vector<66x64xf32>
    %24 = arith.addf %19, %23 : vector<66x64xf32>
    %c2 = arith.constant 2 : index
    %c0_30 = arith.constant 0 : index
    %25 = vector.load %arg12[%c2, %c0_30] : memref<68x32xf32, #tpu.memory_space<vmem>>, vector<66x32xf32>
    %c8 = arith.constant 8 : index
    %c0_31 = arith.constant 0 : index
    %c0_32 = arith.constant 0 : index
    %26 = vector.load %arg2[%c8, %c0_31, %c0_32] : memref<12x32x64xf32, #tpu.memory_space<vmem>>, vector<1x32x64xf32>
    %27 = vector.shape_cast %26 : vector<1x32x64xf32> to vector<32x64xf32>
    %cst_33 = arith.constant dense<0.000000e+00> : vector<66x64xf32>
    %28 = tpu.matmul %25, %27, %cst_33 {dimension_numbers = #tpu.dot_dimension_numbers<[1], [0], [0], [1], [0, 0, 1, 1], [], []>} : vector<66x32xf32>, vector<32x64xf32>, vector<66x64xf32> -> vector<66x64xf32>
    %29 = arith.addf %24, %28 : vector<66x64xf32>
    %30 = vector.broadcast %14 : vector<1x64xf32> to vector<66x64xf32>
    %31 = arith.mulf %29, %30 : vector<66x64xf32>
    %32 = vector.broadcast %15 : vector<1x64xf32> to vector<66x64xf32>
    %33 = arith.addf %31, %32 : vector<66x64xf32>
    %c0_34 = arith.constant 0 : index
    %c0_35 = arith.constant 0 : index
    %34 = vector.load %arg12[%c0_34, %c0_35] : memref<68x32xf32, #tpu.memory_space<vmem>>, vector<66x32xf32>
    %c1_36 = arith.constant 1 : index
    %c0_37 = arith.constant 0 : index
    %c0_38 = arith.constant 0 : index
    %35 = vector.load %arg2[%c1_36, %c0_37, %c0_38] : memref<12x32x64xf32, #tpu.memory_space<vmem>>, vector<1x32x64xf32>
    %36 = vector.shape_cast %35 : vector<1x32x64xf32> to vector<32x64xf32>
    %cst_39 = arith.constant dense<0.000000e+00> : vector<66x64xf32>
    %37 = tpu.matmul %34, %36, %cst_39 {dimension_numbers = #tpu.dot_dimension_numbers<[1], [0], [0], [1], [0, 0, 1, 1], [], []>} : vector<66x32xf32>, vector<32x64xf32>, vector<66x64xf32> -> vector<66x64xf32>
    %c1_40 = arith.constant 1 : index
    %c0_41 = arith.constant 0 : index
    %38 = vector.load %arg12[%c1_40, %c0_41] : memref<68x32xf32, #tpu.memory_space<vmem>>, vector<66x32xf32>
    %c5 = arith.constant 5 : index
    %c0_42 = arith.constant 0 : index
    %c0_43 = arith.constant 0 : index
    %39 = vector.load %arg2[%c5, %c0_42, %c0_43] : memref<12x32x64xf32, #tpu.memory_space<vmem>>, vector<1x32x64xf32>
    %40 = vector.shape_cast %39 : vector<1x32x64xf32> to vector<32x64xf32>
    %cst_44 = arith.constant dense<0.000000e+00> : vector<66x64xf32>
    %41 = tpu.matmul %38, %40, %cst_44 {dimension_numbers = #tpu.dot_dimension_numbers<[1], [0], [0], [1], [0, 0, 1, 1], [], []>} : vector<66x32xf32>, vector<32x64xf32>, vector<66x64xf32> -> vector<66x64xf32>
    %42 = arith.addf %37, %41 : vector<66x64xf32>
    %c2_45 = arith.constant 2 : index
    %c0_46 = arith.constant 0 : index
    %43 = vector.load %arg12[%c2_45, %c0_46] : memref<68x32xf32, #tpu.memory_space<vmem>>, vector<66x32xf32>
    %c9 = arith.constant 9 : index
    %c0_47 = arith.constant 0 : index
    %c0_48 = arith.constant 0 : index
    %44 = vector.load %arg2[%c9, %c0_47, %c0_48] : memref<12x32x64xf32, #tpu.memory_space<vmem>>, vector<1x32x64xf32>
    %45 = vector.shape_cast %44 : vector<1x32x64xf32> to vector<32x64xf32>
    %cst_49 = arith.constant dense<0.000000e+00> : vector<66x64xf32>
    %46 = tpu.matmul %43, %45, %cst_49 {dimension_numbers = #tpu.dot_dimension_numbers<[1], [0], [0], [1], [0, 0, 1, 1], [], []>} : vector<66x32xf32>, vector<32x64xf32>, vector<66x64xf32> -> vector<66x64xf32>
    %47 = arith.addf %42, %46 : vector<66x64xf32>
    %48 = vector.broadcast %14 : vector<1x64xf32> to vector<66x64xf32>
    %49 = arith.mulf %47, %48 : vector<66x64xf32>
    %50 = vector.broadcast %15 : vector<1x64xf32> to vector<66x64xf32>
    %51 = arith.addf %49, %50 : vector<66x64xf32>
    %52 = arith.maximumf %33, %51 : vector<66x64xf32>
    %c0_50 = arith.constant 0 : index
    %c0_51 = arith.constant 0 : index
    %53 = vector.load %arg12[%c0_50, %c0_51] : memref<68x32xf32, #tpu.memory_space<vmem>>, vector<66x32xf32>
    %c2_52 = arith.constant 2 : index
    %c0_53 = arith.constant 0 : index
    %c0_54 = arith.constant 0 : index
    %54 = vector.load %arg2[%c2_52, %c0_53, %c0_54] : memref<12x32x64xf32, #tpu.memory_space<vmem>>, vector<1x32x64xf32>
    %55 = vector.shape_cast %54 : vector<1x32x64xf32> to vector<32x64xf32>
    %cst_55 = arith.constant dense<0.000000e+00> : vector<66x64xf32>
    %56 = tpu.matmul %53, %55, %cst_55 {dimension_numbers = #tpu.dot_dimension_numbers<[1], [0], [0], [1], [0, 0, 1, 1], [], []>} : vector<66x32xf32>, vector<32x64xf32>, vector<66x64xf32> -> vector<66x64xf32>
    %c1_56 = arith.constant 1 : index
    %c0_57 = arith.constant 0 : index
    %57 = vector.load %arg12[%c1_56, %c0_57] : memref<68x32xf32, #tpu.memory_space<vmem>>, vector<66x32xf32>
    %c6 = arith.constant 6 : index
    %c0_58 = arith.constant 0 : index
    %c0_59 = arith.constant 0 : index
    %58 = vector.load %arg2[%c6, %c0_58, %c0_59] : memref<12x32x64xf32, #tpu.memory_space<vmem>>, vector<1x32x64xf32>
    %59 = vector.shape_cast %58 : vector<1x32x64xf32> to vector<32x64xf32>
    %cst_60 = arith.constant dense<0.000000e+00> : vector<66x64xf32>
    %60 = tpu.matmul %57, %59, %cst_60 {dimension_numbers = #tpu.dot_dimension_numbers<[1], [0], [0], [1], [0, 0, 1, 1], [], []>} : vector<66x32xf32>, vector<32x64xf32>, vector<66x64xf32> -> vector<66x64xf32>
    %61 = arith.addf %56, %60 : vector<66x64xf32>
    %c2_61 = arith.constant 2 : index
    %c0_62 = arith.constant 0 : index
    %62 = vector.load %arg12[%c2_61, %c0_62] : memref<68x32xf32, #tpu.memory_space<vmem>>, vector<66x32xf32>
    %c10 = arith.constant 10 : index
    %c0_63 = arith.constant 0 : index
    %c0_64 = arith.constant 0 : index
    %63 = vector.load %arg2[%c10, %c0_63, %c0_64] : memref<12x32x64xf32, #tpu.memory_space<vmem>>, vector<1x32x64xf32>
    %64 = vector.shape_cast %63 : vector<1x32x64xf32> to vector<32x64xf32>
    %cst_65 = arith.constant dense<0.000000e+00> : vector<66x64xf32>
    %65 = tpu.matmul %62, %64, %cst_65 {dimension_numbers = #tpu.dot_dimension_numbers<[1], [0], [0], [1], [0, 0, 1, 1], [], []>} : vector<66x32xf32>, vector<32x64xf32>, vector<66x64xf32> -> vector<66x64xf32>
    %66 = arith.addf %61, %65 : vector<66x64xf32>
    %67 = vector.broadcast %14 : vector<1x64xf32> to vector<66x64xf32>
    %68 = arith.mulf %66, %67 : vector<66x64xf32>
    %69 = vector.broadcast %15 : vector<1x64xf32> to vector<66x64xf32>
    %70 = arith.addf %68, %69 : vector<66x64xf32>
    %71 = arith.maximumf %52, %70 : vector<66x64xf32>
    %c0_66 = arith.constant 0 : index
    %c0_67 = arith.constant 0 : index
    %72 = vector.load %arg12[%c0_66, %c0_67] : memref<68x32xf32, #tpu.memory_space<vmem>>, vector<66x32xf32>
    %c3 = arith.constant 3 : index
    %c0_68 = arith.constant 0 : index
    %c0_69 = arith.constant 0 : index
    %73 = vector.load %arg2[%c3, %c0_68, %c0_69] : memref<12x32x64xf32, #tpu.memory_space<vmem>>, vector<1x32x64xf32>
    %74 = vector.shape_cast %73 : vector<1x32x64xf32> to vector<32x64xf32>
    %cst_70 = arith.constant dense<0.000000e+00> : vector<66x64xf32>
    %75 = tpu.matmul %72, %74, %cst_70 {dimension_numbers = #tpu.dot_dimension_numbers<[1], [0], [0], [1], [0, 0, 1, 1], [], []>} : vector<66x32xf32>, vector<32x64xf32>, vector<66x64xf32> -> vector<66x64xf32>
    %c1_71 = arith.constant 1 : index
    %c0_72 = arith.constant 0 : index
    %76 = vector.load %arg12[%c1_71, %c0_72] : memref<68x32xf32, #tpu.memory_space<vmem>>, vector<66x32xf32>
    %c7 = arith.constant 7 : index
    %c0_73 = arith.constant 0 : index
    %c0_74 = arith.constant 0 : index
    %77 = vector.load %arg2[%c7, %c0_73, %c0_74] : memref<12x32x64xf32, #tpu.memory_space<vmem>>, vector<1x32x64xf32>
    %78 = vector.shape_cast %77 : vector<1x32x64xf32> to vector<32x64xf32>
    %cst_75 = arith.constant dense<0.000000e+00> : vector<66x64xf32>
    %79 = tpu.matmul %76, %78, %cst_75 {dimension_numbers = #tpu.dot_dimension_numbers<[1], [0], [0], [1], [0, 0, 1, 1], [], []>} : vector<66x32xf32>, vector<32x64xf32>, vector<66x64xf32> -> vector<66x64xf32>
    %80 = arith.addf %75, %79 : vector<66x64xf32>
    %c2_76 = arith.constant 2 : index
    %c0_77 = arith.constant 0 : index
    %81 = vector.load %arg12[%c2_76, %c0_77] : memref<68x32xf32, #tpu.memory_space<vmem>>, vector<66x32xf32>
    %c11 = arith.constant 11 : index
    %c0_78 = arith.constant 0 : index
    %c0_79 = arith.constant 0 : index
    %82 = vector.load %arg2[%c11, %c0_78, %c0_79] : memref<12x32x64xf32, #tpu.memory_space<vmem>>, vector<1x32x64xf32>
    %83 = vector.shape_cast %82 : vector<1x32x64xf32> to vector<32x64xf32>
    %cst_80 = arith.constant dense<0.000000e+00> : vector<66x64xf32>
    %84 = tpu.matmul %81, %83, %cst_80 {dimension_numbers = #tpu.dot_dimension_numbers<[1], [0], [0], [1], [0, 0, 1, 1], [], []>} : vector<66x32xf32>, vector<32x64xf32>, vector<66x64xf32> -> vector<66x64xf32>
    %85 = arith.addf %80, %84 : vector<66x64xf32>
    %86 = vector.broadcast %14 : vector<1x64xf32> to vector<66x64xf32>
    %87 = arith.mulf %85, %86 : vector<66x64xf32>
    %88 = vector.broadcast %15 : vector<1x64xf32> to vector<66x64xf32>
    %89 = arith.addf %87, %88 : vector<66x64xf32>
    %90 = arith.maximumf %71, %89 : vector<66x64xf32>
    %c0_81 = arith.constant 0 : index
    %c0_82 = arith.constant 0 : index
    %91 = vector.load %arg16[%c0_81, %c0_82] : memref<66x64xf32, #tpu.memory_space<vmem>>, vector<66x64xf32>
    tpu.vector_store %arg16[%c0_81, %c0_82], %90 {strides = array<i32>} : memref<66x64xf32, #tpu.memory_space<vmem>>, vector<66x64xf32>,
    %c0_83 = arith.constant 0 : index
    %c0_84 = arith.constant 0 : index
    %92 = tpu.strided_load %arg16[%c0_83, %c0_84] {strides = array<i32: 4, 1>} : memref<66x64xf32, #tpu.memory_space<vmem>>, vector<8x64xf32>
    %c1_85 = arith.constant 1 : index
    %c0_86 = arith.constant 0 : index
    %93 = tpu.strided_load %arg16[%c1_85, %c0_86] {strides = array<i32: 4, 1>} : memref<66x64xf32, #tpu.memory_space<vmem>>, vector<8x64xf32>
    %94 = arith.maximumf %92, %93 : vector<8x64xf32>
    %c2_87 = arith.constant 2 : index
    %c0_88 = arith.constant 0 : index
    %95 = tpu.strided_load %arg16[%c2_87, %c0_88] {strides = array<i32: 4, 1>} : memref<66x64xf32, #tpu.memory_space<vmem>>, vector<8x64xf32>
    %96 = arith.maximumf %94, %95 : vector<8x64xf32>
    %c3_89 = arith.constant 3 : index
    %c0_90 = arith.constant 0 : index
    %97 = tpu.strided_load %arg16[%c3_89, %c0_90] {strides = array<i32: 4, 1>} : memref<66x64xf32, #tpu.memory_space<vmem>>, vector<8x64xf32>
    %98 = arith.maximumf %96, %97 : vector<8x64xf32>
    %cst_91 = arith.constant 0.000000e+00 : f32
    %99 = vector.broadcast %cst_91 : f32 to vector<8x64xf32>
    %100 = arith.maximumf %98, %99 : vector<8x64xf32>
    %c0_92 = arith.constant 0 : index
    %c0_93 = arith.constant 0 : index
    %101 = vector.load %arg8[%c0_92, %c0_93] : memref<16x64xf32, #tpu.memory_space<vmem>>, vector<8x64xf32>
    tpu.vector_store %arg8[%c0_92, %c0_93], %100 {strides = array<i32>} : memref<16x64xf32, #tpu.memory_space<vmem>>, vector<8x64xf32>,
    %c1_94 = arith.constant 1 : index
    %c0_95 = arith.constant 0 : index
    %102 = vector.load %arg13[%c1_94, %c0_95] : memref<20x64xf32, #tpu.memory_space<vmem>>, vector<8x64xf32>
    tpu.vector_store %arg13[%c1_94, %c0_95], %100 {strides = array<i32>} : memref<20x64xf32, #tpu.memory_space<vmem>>, vector<8x64xf32>,
    %c34 = arith.constant 34 : index
    %c0_96 = arith.constant 0 : index
    %103 = tpu.strided_load %arg16[%c34, %c0_96] {strides = array<i32: 4, 1>} : memref<66x64xf32, #tpu.memory_space<vmem>>, vector<8x64xf32>
    %c35_97 = arith.constant 35 : index
    %c0_98 = arith.constant 0 : index
    %104 = tpu.strided_load %arg16[%c35_97, %c0_98] {strides = array<i32: 4, 1>} : memref<66x64xf32, #tpu.memory_space<vmem>>, vector<8x64xf32>
    %105 = arith.maximumf %103, %104 : vector<8x64xf32>
    %c36 = arith.constant 36 : index
    %c0_99 = arith.constant 0 : index
    %106 = tpu.strided_load %arg16[%c36, %c0_99] {strides = array<i32: 4, 1>} : memref<66x64xf32, #tpu.memory_space<vmem>>, vector<8x64xf32>
    %107 = arith.maximumf %105, %106 : vector<8x64xf32>
    %c37 = arith.constant 37 : index
    %c0_100 = arith.constant 0 : index
    %108 = tpu.strided_load %arg16[%c37, %c0_100] {strides = array<i32: 4, 1>} : memref<66x64xf32, #tpu.memory_space<vmem>>, vector<8x64xf32>
    %109 = arith.maximumf %107, %108 : vector<8x64xf32>
    %cst_101 = arith.constant 0.000000e+00 : f32
    %110 = vector.broadcast %cst_101 : f32 to vector<8x64xf32>
    %111 = arith.maximumf %109, %110 : vector<8x64xf32>
    %c8_102 = arith.constant 8 : index
    %c0_103 = arith.constant 0 : index
    %112 = vector.load %arg8[%c8_102, %c0_103] : memref<16x64xf32, #tpu.memory_space<vmem>>, vector<8x64xf32>
    tpu.vector_store %arg8[%c8_102, %c0_103], %111 {strides = array<i32>} : memref<16x64xf32, #tpu.memory_space<vmem>>, vector<8x64xf32>,
    %c11_104 = arith.constant 11 : index
    %c0_105 = arith.constant 0 : index
    %113 = vector.load %arg13[%c11_104, %c0_105] : memref<20x64xf32, #tpu.memory_space<vmem>>, vector<8x64xf32>
    tpu.vector_store %arg13[%c11_104, %c0_105], %111 {strides = array<i32>} : memref<20x64xf32, #tpu.memory_space<vmem>>, vector<8x64xf32>,
    %114 = vector.extract_strided_slice %0 {offsets = [1, 0], sizes = [1, 64], strides = [1, 1]} : vector<4x64xf32> to vector<1x64xf32>
    %115 = vector.extract_strided_slice %1 {offsets = [1, 0], sizes = [1, 64], strides = [1, 1]} : vector<4x64xf32> to vector<1x64xf32>
    %c0_106 = arith.constant 0 : index
    %c0_107 = arith.constant 0 : index
    %116 = vector.load %arg13[%c0_106, %c0_107] : memref<20x64xf32, #tpu.memory_space<vmem>>, vector<18x64xf32>
    %c0_108 = arith.constant 0 : index
    %c0_109 = arith.constant 0 : index
    %c0_110 = arith.constant 0 : index
    %117 = vector.load %arg3[%c0_108, %c0_109, %c0_110] : memref<6x64x64xf32, #tpu.memory_space<vmem>>, vector<1x64x64xf32>
    %118 = vector.shape_cast %117 : vector<1x64x64xf32> to vector<64x64xf32>
    %cst_111 = arith.constant dense<0.000000e+00> : vector<18x64xf32>
    %119 = tpu.matmul %116, %118, %cst_111 {dimension_numbers = #tpu.dot_dimension_numbers<[1], [0], [0], [1], [0, 0, 1, 1], [], []>} : vector<18x64xf32>, vector<64x64xf32>, vector<18x64xf32> -> vector<18x64xf32>
    %c1_112 = arith.constant 1 : index
    %c0_113 = arith.constant 0 : index
    %120 = vector.load %arg13[%c1_112, %c0_113] : memref<20x64xf32, #tpu.memory_space<vmem>>, vector<18x64xf32>
    %c2_114 = arith.constant 2 : index
    %c0_115 = arith.constant 0 : index
    %c0_116 = arith.constant 0 : index
    %121 = vector.load %arg3[%c2_114, %c0_115, %c0_116] : memref<6x64x64xf32, #tpu.memory_space<vmem>>, vector<1x64x64xf32>
    %122 = vector.shape_cast %121 : vector<1x64x64xf32> to vector<64x64xf32>
    %cst_117 = arith.constant dense<0.000000e+00> : vector<18x64xf32>
    %123 = tpu.matmul %120, %122, %cst_117 {dimension_numbers = #tpu.dot_dimension_numbers<[1], [0], [0], [1], [0, 0, 1, 1], [], []>} : vector<18x64xf32>, vector<64x64xf32>, vector<18x64xf32> -> vector<18x64xf32>
    %124 = arith.addf %119, %123 : vector<18x64xf32>
    %c2_118 = arith.constant 2 : index
    %c0_119 = arith.constant 0 : index
    %125 = vector.load %arg13[%c2_118, %c0_119] : memref<20x64xf32, #tpu.memory_space<vmem>>, vector<18x64xf32>
    %c4_120 = arith.constant 4 : index
    %c0_121 = arith.constant 0 : index
    %c0_122 = arith.constant 0 : index
    %126 = vector.load %arg3[%c4_120, %c0_121, %c0_122] : memref<6x64x64xf32, #tpu.memory_space<vmem>>, vector<1x64x64xf32>
    %127 = vector.shape_cast %126 : vector<1x64x64xf32> to vector<64x64xf32>
    %cst_123 = arith.constant dense<0.000000e+00> : vector<18x64xf32>
    %128 = tpu.matmul %125, %127, %cst_123 {dimension_numbers = #tpu.dot_dimension_numbers<[1], [0], [0], [1], [0, 0, 1, 1], [], []>} : vector<18x64xf32>, vector<64x64xf32>, vector<18x64xf32> -> vector<18x64xf32>
    %129 = arith.addf %124, %128 : vector<18x64xf32>
    %130 = vector.broadcast %114 : vector<1x64xf32> to vector<18x64xf32>
    %131 = arith.mulf %129, %130 : vector<18x64xf32>
    %132 = vector.broadcast %115 : vector<1x64xf32> to vector<18x64xf32>
    %133 = arith.addf %131, %132 : vector<18x64xf32>
    %c0_124 = arith.constant 0 : index
    %c0_125 = arith.constant 0 : index
    %134 = vector.load %arg13[%c0_124, %c0_125] : memref<20x64xf32, #tpu.memory_space<vmem>>, vector<18x64xf32>
    %c1_126 = arith.constant 1 : index
    %c0_127 = arith.constant 0 : index
    %c0_128 = arith.constant 0 : index
    %135 = vector.load %arg3[%c1_126, %c0_127, %c0_128] : memref<6x64x64xf32, #tpu.memory_space<vmem>>, vector<1x64x64xf32>
    %136 = vector.shape_cast %135 : vector<1x64x64xf32> to vector<64x64xf32>
    %cst_129 = arith.constant dense<0.000000e+00> : vector<18x64xf32>
    %137 = tpu.matmul %134, %136, %cst_129 {dimension_numbers = #tpu.dot_dimension_numbers<[1], [0], [0], [1], [0, 0, 1, 1], [], []>} : vector<18x64xf32>, vector<64x64xf32>, vector<18x64xf32> -> vector<18x64xf32>
    %c1_130 = arith.constant 1 : index
    %c0_131 = arith.constant 0 : index
    %138 = vector.load %arg13[%c1_130, %c0_131] : memref<20x64xf32, #tpu.memory_space<vmem>>, vector<18x64xf32>
    %c3_132 = arith.constant 3 : index
    %c0_133 = arith.constant 0 : index
    %c0_134 = arith.constant 0 : index
    %139 = vector.load %arg3[%c3_132, %c0_133, %c0_134] : memref<6x64x64xf32, #tpu.memory_space<vmem>>, vector<1x64x64xf32>
    %140 = vector.shape_cast %139 : vector<1x64x64xf32> to vector<64x64xf32>
    %cst_135 = arith.constant dense<0.000000e+00> : vector<18x64xf32>
    %141 = tpu.matmul %138, %140, %cst_135 {dimension_numbers = #tpu.dot_dimension_numbers<[1], [0], [0], [1], [0, 0, 1, 1], [], []>} : vector<18x64xf32>, vector<64x64xf32>, vector<18x64xf32> -> vector<18x64xf32>
    %142 = arith.addf %137, %141 : vector<18x64xf32>
    %c2_136 = arith.constant 2 : index
    %c0_137 = arith.constant 0 : index
    %143 = vector.load %arg13[%c2_136, %c0_137] : memref<20x64xf32, #tpu.memory_space<vmem>>, vector<18x64xf32>
    %c5_138 = arith.constant 5 : index
    %c0_139 = arith.constant 0 : index
    %c0_140 = arith.constant 0 : index
    %144 = vector.load %arg3[%c5_138, %c0_139, %c0_140] : memref<6x64x64xf32, #tpu.memory_space<vmem>>, vector<1x64x64xf32>
    %145 = vector.shape_cast %144 : vector<1x64x64xf32> to vector<64x64xf32>
    %cst_141 = arith.constant dense<0.000000e+00> : vector<18x64xf32>
    %146 = tpu.matmul %143, %145, %cst_141 {dimension_numbers = #tpu.dot_dimension_numbers<[1], [0], [0], [1], [0, 0, 1, 1], [], []>} : vector<18x64xf32>, vector<64x64xf32>, vector<18x64xf32> -> vector<18x64xf32>
    %147 = arith.addf %142, %146 : vector<18x64xf32>
    %148 = vector.broadcast %114 : vector<1x64xf32> to vector<18x64xf32>
    %149 = arith.mulf %147, %148 : vector<18x64xf32>
    %150 = vector.broadcast %115 : vector<1x64xf32> to vector<18x64xf32>
    %151 = arith.addf %149, %150 : vector<18x64xf32>
    %152 = arith.maximumf %133, %151 : vector<18x64xf32>
    %c0_142 = arith.constant 0 : index
    %c0_143 = arith.constant 0 : index
    %153 = vector.load %arg16[%c0_142, %c0_143] : memref<66x64xf32, #tpu.memory_space<vmem>>, vector<18x64xf32>
    tpu.vector_store %arg16[%c0_142, %c0_143], %152 {strides = array<i32>} : memref<66x64xf32, #tpu.memory_space<vmem>>, vector<18x64xf32>,
    %c0_144 = arith.constant 0 : index
    %c0_145 = arith.constant 0 : index
    %154 = tpu.strided_load %arg16[%c0_144, %c0_145] {strides = array<i32: 2, 1>} : memref<66x64xf32, #tpu.memory_space<vmem>>, vector<4x64xf32>
    %c1_146 = arith.constant 1 : index
    %c0_147 = arith.constant 0 : index
    %155 = tpu.strided_load %arg16[%c1_146, %c0_147] {strides = array<i32: 2, 1>} : memref<66x64xf32, #tpu.memory_space<vmem>>, vector<4x64xf32>
    %156 = arith.maximumf %154, %155 : vector<4x64xf32>
    %cst_148 = arith.constant 0.000000e+00 : f32
    %157 = vector.broadcast %cst_148 : f32 to vector<4x64xf32>
    %158 = arith.maximumf %156, %157 : vector<4x64xf32>
    %c0_149 = arith.constant 0 : index
    %c0_150 = arith.constant 0 : index
    %159 = vector.load %arg9[%c0_149, %c0_150] : memref<8x64xf32, #tpu.memory_space<vmem>>, vector<4x64xf32>
    tpu.vector_store %arg9[%c0_149, %c0_150], %158 {strides = array<i32>} : memref<8x64xf32, #tpu.memory_space<vmem>>, vector<4x64xf32>,
    %c1_151 = arith.constant 1 : index
    %c0_152 = arith.constant 0 : index
    %160 = vector.load %arg14[%c1_151, %c0_152] : memref<12x64xf32, #tpu.memory_space<vmem>>, vector<4x64xf32>
    tpu.vector_store %arg14[%c1_151, %c0_152], %158 {strides = array<i32>} : memref<12x64xf32, #tpu.memory_space<vmem>>, vector<4x64xf32>,
    %c10_153 = arith.constant 10 : index
    %c0_154 = arith.constant 0 : index
    %161 = tpu.strided_load %arg16[%c10_153, %c0_154] {strides = array<i32: 2, 1>} : memref<66x64xf32, #tpu.memory_space<vmem>>, vector<4x64xf32>
    %c11_155 = arith.constant 11 : index
    %c0_156 = arith.constant 0 : index
    %162 = tpu.strided_load %arg16[%c11_155, %c0_156] {strides = array<i32: 2, 1>} : memref<66x64xf32, #tpu.memory_space<vmem>>, vector<4x64xf32>
    %163 = arith.maximumf %161, %162 : vector<4x64xf32>
    %cst_157 = arith.constant 0.000000e+00 : f32
    %164 = vector.broadcast %cst_157 : f32 to vector<4x64xf32>
    %165 = arith.maximumf %163, %164 : vector<4x64xf32>
    %c4_158 = arith.constant 4 : index
    %c0_159 = arith.constant 0 : index
    %166 = vector.load %arg9[%c4_158, %c0_159] : memref<8x64xf32, #tpu.memory_space<vmem>>, vector<4x64xf32>
    tpu.vector_store %arg9[%c4_158, %c0_159], %165 {strides = array<i32>} : memref<8x64xf32, #tpu.memory_space<vmem>>, vector<4x64xf32>,
    %c7_160 = arith.constant 7 : index
    %c0_161 = arith.constant 0 : index
    %167 = vector.load %arg14[%c7_160, %c0_161] : memref<12x64xf32, #tpu.memory_space<vmem>>, vector<4x64xf32>
    tpu.vector_store %arg14[%c7_160, %c0_161], %165 {strides = array<i32>} : memref<12x64xf32, #tpu.memory_space<vmem>>, vector<4x64xf32>,
    %168 = vector.extract_strided_slice %0 {offsets = [2, 0], sizes = [1, 64], strides = [1, 1]} : vector<4x64xf32> to vector<1x64xf32>
    %169 = vector.extract_strided_slice %1 {offsets = [2, 0], sizes = [1, 64], strides = [1, 1]} : vector<4x64xf32> to vector<1x64xf32>
    %c0_162 = arith.constant 0 : index
    %c0_163 = arith.constant 0 : index
    %170 = vector.load %arg14[%c0_162, %c0_163] : memref<12x64xf32, #tpu.memory_space<vmem>>, vector<10x64xf32>
    %c0_164 = arith.constant 0 : index
    %c0_165 = arith.constant 0 : index
    %c0_166 = arith.constant 0 : index
    %171 = vector.load %arg4[%c0_164, %c0_165, %c0_166] : memref<6x64x64xf32, #tpu.memory_space<vmem>>, vector<1x64x64xf32>
    %172 = vector.shape_cast %171 : vector<1x64x64xf32> to vector<64x64xf32>
    %cst_167 = arith.constant dense<0.000000e+00> : vector<10x64xf32>
    %173 = tpu.matmul %170, %172, %cst_167 {dimension_numbers = #tpu.dot_dimension_numbers<[1], [0], [0], [1], [0, 0, 1, 1], [], []>} : vector<10x64xf32>, vector<64x64xf32>, vector<10x64xf32> -> vector<10x64xf32>
    %c1_168 = arith.constant 1 : index
    %c0_169 = arith.constant 0 : index
    %174 = vector.load %arg14[%c1_168, %c0_169] : memref<12x64xf32, #tpu.memory_space<vmem>>, vector<10x64xf32>
    %c2_170 = arith.constant 2 : index
    %c0_171 = arith.constant 0 : index
    %c0_172 = arith.constant 0 : index
    %175 = vector.load %arg4[%c2_170, %c0_171, %c0_172] : memref<6x64x64xf32, #tpu.memory_space<vmem>>, vector<1x64x64xf32>
    %176 = vector.shape_cast %175 : vector<1x64x64xf32> to vector<64x64xf32>
    %cst_173 = arith.constant dense<0.000000e+00> : vector<10x64xf32>
    %177 = tpu.matmul %174, %176, %cst_173 {dimension_numbers = #tpu.dot_dimension_numbers<[1], [0], [0], [1], [0, 0, 1, 1], [], []>} : vector<10x64xf32>, vector<64x64xf32>, vector<10x64xf32> -> vector<10x64xf32>
    %178 = arith.addf %173, %177 : vector<10x64xf32>
    %c2_174 = arith.constant 2 : index
    %c0_175 = arith.constant 0 : index
    %179 = vector.load %arg14[%c2_174, %c0_175] : memref<12x64xf32, #tpu.memory_space<vmem>>, vector<10x64xf32>
    %c4_176 = arith.constant 4 : index
    %c0_177 = arith.constant 0 : index
    %c0_178 = arith.constant 0 : index
    %180 = vector.load %arg4[%c4_176, %c0_177, %c0_178] : memref<6x64x64xf32, #tpu.memory_space<vmem>>, vector<1x64x64xf32>
    %181 = vector.shape_cast %180 : vector<1x64x64xf32> to vector<64x64xf32>
    %cst_179 = arith.constant dense<0.000000e+00> : vector<10x64xf32>
    %182 = tpu.matmul %179, %181, %cst_179 {dimension_numbers = #tpu.dot_dimension_numbers<[1], [0], [0], [1], [0, 0, 1, 1], [], []>} : vector<10x64xf32>, vector<64x64xf32>, vector<10x64xf32> -> vector<10x64xf32>
    %183 = arith.addf %178, %182 : vector<10x64xf32>
    %184 = vector.broadcast %168 : vector<1x64xf32> to vector<10x64xf32>
    %185 = arith.mulf %183, %184 : vector<10x64xf32>
    %186 = vector.broadcast %169 : vector<1x64xf32> to vector<10x64xf32>
    %187 = arith.addf %185, %186 : vector<10x64xf32>
    %c0_180 = arith.constant 0 : index
    %c0_181 = arith.constant 0 : index
    %188 = vector.load %arg14[%c0_180, %c0_181] : memref<12x64xf32, #tpu.memory_space<vmem>>, vector<10x64xf32>
    %c1_182 = arith.constant 1 : index
    %c0_183 = arith.constant 0 : index
    %c0_184 = arith.constant 0 : index
    %189 = vector.load %arg4[%c1_182, %c0_183, %c0_184] : memref<6x64x64xf32, #tpu.memory_space<vmem>>, vector<1x64x64xf32>
    %190 = vector.shape_cast %189 : vector<1x64x64xf32> to vector<64x64xf32>
    %cst_185 = arith.constant dense<0.000000e+00> : vector<10x64xf32>
    %191 = tpu.matmul %188, %190, %cst_185 {dimension_numbers = #tpu.dot_dimension_numbers<[1], [0], [0], [1], [0, 0, 1, 1], [], []>} : vector<10x64xf32>, vector<64x64xf32>, vector<10x64xf32> -> vector<10x64xf32>
    %c1_186 = arith.constant 1 : index
    %c0_187 = arith.constant 0 : index
    %192 = vector.load %arg14[%c1_186, %c0_187] : memref<12x64xf32, #tpu.memory_space<vmem>>, vector<10x64xf32>
    %c3_188 = arith.constant 3 : index
    %c0_189 = arith.constant 0 : index
    %c0_190 = arith.constant 0 : index
    %193 = vector.load %arg4[%c3_188, %c0_189, %c0_190] : memref<6x64x64xf32, #tpu.memory_space<vmem>>, vector<1x64x64xf32>
    %194 = vector.shape_cast %193 : vector<1x64x64xf32> to vector<64x64xf32>
    %cst_191 = arith.constant dense<0.000000e+00> : vector<10x64xf32>
    %195 = tpu.matmul %192, %194, %cst_191 {dimension_numbers = #tpu.dot_dimension_numbers<[1], [0], [0], [1], [0, 0, 1, 1], [], []>} : vector<10x64xf32>, vector<64x64xf32>, vector<10x64xf32> -> vector<10x64xf32>
    %196 = arith.addf %191, %195 : vector<10x64xf32>
    %c2_192 = arith.constant 2 : index
    %c0_193 = arith.constant 0 : index
    %197 = vector.load %arg14[%c2_192, %c0_193] : memref<12x64xf32, #tpu.memory_space<vmem>>, vector<10x64xf32>
    %c5_194 = arith.constant 5 : index
    %c0_195 = arith.constant 0 : index
    %c0_196 = arith.constant 0 : index
    %198 = vector.load %arg4[%c5_194, %c0_195, %c0_196] : memref<6x64x64xf32, #tpu.memory_space<vmem>>, vector<1x64x64xf32>
    %199 = vector.shape_cast %198 : vector<1x64x64xf32> to vector<64x64xf32>
    %cst_197 = arith.constant dense<0.000000e+00> : vector<10x64xf32>
    %200 = tpu.matmul %197, %199, %cst_197 {dimension_numbers = #tpu.dot_dimension_numbers<[1], [0], [0], [1], [0, 0, 1, 1], [], []>} : vector<10x64xf32>, vector<64x64xf32>, vector<10x64xf32> -> vector<10x64xf32>
    %201 = arith.addf %196, %200 : vector<10x64xf32>
    %202 = vector.broadcast %168 : vector<1x64xf32> to vector<10x64xf32>
    %203 = arith.mulf %201, %202 : vector<10x64xf32>
    %204 = vector.broadcast %169 : vector<1x64xf32> to vector<10x64xf32>
    %205 = arith.addf %203, %204 : vector<10x64xf32>
    %206 = arith.maximumf %187, %205 : vector<10x64xf32>
    %c0_198 = arith.constant 0 : index
    %c0_199 = arith.constant 0 : index
    %207 = vector.load %arg16[%c0_198, %c0_199] : memref<66x64xf32, #tpu.memory_space<vmem>>, vector<10x64xf32>
    tpu.vector_store %arg16[%c0_198, %c0_199], %206 {strides = array<i32>} : memref<66x64xf32, #tpu.memory_space<vmem>>, vector<10x64xf32>,
    %c0_200 = arith.constant 0 : index
    %c0_201 = arith.constant 0 : index
    %208 = tpu.strided_load %arg16[%c0_200, %c0_201] {strides = array<i32: 2, 1>} : memref<66x64xf32, #tpu.memory_space<vmem>>, vector<2x64xf32>
    %c1_202 = arith.constant 1 : index
    %c0_203 = arith.constant 0 : index
    %209 = tpu.strided_load %arg16[%c1_202, %c0_203] {strides = array<i32: 2, 1>} : memref<66x64xf32, #tpu.memory_space<vmem>>, vector<2x64xf32>
    %210 = arith.maximumf %208, %209 : vector<2x64xf32>
    %cst_204 = arith.constant 0.000000e+00 : f32
    %211 = vector.broadcast %cst_204 : f32 to vector<2x64xf32>
    %212 = arith.maximumf %210, %211 : vector<2x64xf32>
    %c0_205 = arith.constant 0 : index
    %c0_206 = arith.constant 0 : index
    %213 = vector.load %arg10[%c0_205, %c0_206] : memref<4x64xf32, #tpu.memory_space<vmem>>, vector<2x64xf32>
    tpu.vector_store %arg10[%c0_205, %c0_206], %212 {strides = array<i32>} : memref<4x64xf32, #tpu.memory_space<vmem>>, vector<2x64xf32>,
    %c1_207 = arith.constant 1 : index
    %c0_208 = arith.constant 0 : index
    %214 = vector.load %arg15[%c1_207, %c0_208] : memref<8x64xf32, #tpu.memory_space<vmem>>, vector<2x64xf32>
    tpu.vector_store %arg15[%c1_207, %c0_208], %212 {strides = array<i32>} : memref<8x64xf32, #tpu.memory_space<vmem>>, vector<2x64xf32>,
    %c6_209 = arith.constant 6 : index
    %c0_210 = arith.constant 0 : index
    %215 = tpu.strided_load %arg16[%c6_209, %c0_210] {strides = array<i32: 2, 1>} : memref<66x64xf32, #tpu.memory_space<vmem>>, vector<2x64xf32>
    %c7_211 = arith.constant 7 : index
    %c0_212 = arith.constant 0 : index
    %216 = tpu.strided_load %arg16[%c7_211, %c0_212] {strides = array<i32: 2, 1>} : memref<66x64xf32, #tpu.memory_space<vmem>>, vector<2x64xf32>
    %217 = arith.maximumf %215, %216 : vector<2x64xf32>
    %cst_213 = arith.constant 0.000000e+00 : f32
    %218 = vector.broadcast %cst_213 : f32 to vector<2x64xf32>
    %219 = arith.maximumf %217, %218 : vector<2x64xf32>
    %c2_214 = arith.constant 2 : index
    %c0_215 = arith.constant 0 : index
    %220 = vector.load %arg10[%c2_214, %c0_215] : memref<4x64xf32, #tpu.memory_space<vmem>>, vector<2x64xf32>
    tpu.vector_store %arg10[%c2_214, %c0_215], %219 {strides = array<i32>} : memref<4x64xf32, #tpu.memory_space<vmem>>, vector<2x64xf32>,
    %c5_216 = arith.constant 5 : index
    %c0_217 = arith.constant 0 : index
    %221 = vector.load %arg15[%c5_216, %c0_217] : memref<8x64xf32, #tpu.memory_space<vmem>>, vector<2x64xf32>
    tpu.vector_store %arg15[%c5_216, %c0_217], %219 {strides = array<i32>} : memref<8x64xf32, #tpu.memory_space<vmem>>, vector<2x64xf32>,
    %222 = vector.extract_strided_slice %0 {offsets = [3, 0], sizes = [1, 64], strides = [1, 1]} : vector<4x64xf32> to vector<1x64xf32>
    %223 = vector.extract_strided_slice %1 {offsets = [3, 0], sizes = [1, 64], strides = [1, 1]} : vector<4x64xf32> to vector<1x64xf32>
    %c0_218 = arith.constant 0 : index
    %c0_219 = arith.constant 0 : index
    %224 = vector.load %arg15[%c0_218, %c0_219] : memref<8x64xf32, #tpu.memory_space<vmem>>, vector<6x64xf32>
    %c0_220 = arith.constant 0 : index
    %c0_221 = arith.constant 0 : index
    %c0_222 = arith.constant 0 : index
    %225 = vector.load %arg5[%c0_220, %c0_221, %c0_222] : memref<6x64x64xf32, #tpu.memory_space<vmem>>, vector<1x64x64xf32>
    %226 = vector.shape_cast %225 : vector<1x64x64xf32> to vector<64x64xf32>
    %cst_223 = arith.constant dense<0.000000e+00> : vector<6x64xf32>
    %227 = tpu.matmul %224, %226, %cst_223 {dimension_numbers = #tpu.dot_dimension_numbers<[1], [0], [0], [1], [0, 0, 1, 1], [], []>} : vector<6x64xf32>, vector<64x64xf32>, vector<6x64xf32> -> vector<6x64xf32>
    %c1_224 = arith.constant 1 : index
    %c0_225 = arith.constant 0 : index
    %228 = vector.load %arg15[%c1_224, %c0_225] : memref<8x64xf32, #tpu.memory_space<vmem>>, vector<6x64xf32>
    %c2_226 = arith.constant 2 : index
    %c0_227 = arith.constant 0 : index
    %c0_228 = arith.constant 0 : index
    %229 = vector.load %arg5[%c2_226, %c0_227, %c0_228] : memref<6x64x64xf32, #tpu.memory_space<vmem>>, vector<1x64x64xf32>
    %230 = vector.shape_cast %229 : vector<1x64x64xf32> to vector<64x64xf32>
    %cst_229 = arith.constant dense<0.000000e+00> : vector<6x64xf32>
    %231 = tpu.matmul %228, %230, %cst_229 {dimension_numbers = #tpu.dot_dimension_numbers<[1], [0], [0], [1], [0, 0, 1, 1], [], []>} : vector<6x64xf32>, vector<64x64xf32>, vector<6x64xf32> -> vector<6x64xf32>
    %232 = arith.addf %227, %231 : vector<6x64xf32>
    %c2_230 = arith.constant 2 : index
    %c0_231 = arith.constant 0 : index
    %233 = vector.load %arg15[%c2_230, %c0_231] : memref<8x64xf32, #tpu.memory_space<vmem>>, vector<6x64xf32>
    %c4_232 = arith.constant 4 : index
    %c0_233 = arith.constant 0 : index
    %c0_234 = arith.constant 0 : index
    %234 = vector.load %arg5[%c4_232, %c0_233, %c0_234] : memref<6x64x64xf32, #tpu.memory_space<vmem>>, vector<1x64x64xf32>
    %235 = vector.shape_cast %234 : vector<1x64x64xf32> to vector<64x64xf32>
    %cst_235 = arith.constant dense<0.000000e+00> : vector<6x64xf32>
    %236 = tpu.matmul %233, %235, %cst_235 {dimension_numbers = #tpu.dot_dimension_numbers<[1], [0], [0], [1], [0, 0, 1, 1], [], []>} : vector<6x64xf32>, vector<64x64xf32>, vector<6x64xf32> -> vector<6x64xf32>
    %237 = arith.addf %232, %236 : vector<6x64xf32>
    %238 = vector.broadcast %222 : vector<1x64xf32> to vector<6x64xf32>
    %239 = arith.mulf %237, %238 : vector<6x64xf32>
    %240 = vector.broadcast %223 : vector<1x64xf32> to vector<6x64xf32>
    %241 = arith.addf %239, %240 : vector<6x64xf32>
    %c0_236 = arith.constant 0 : index
    %c0_237 = arith.constant 0 : index
    %242 = vector.load %arg15[%c0_236, %c0_237] : memref<8x64xf32, #tpu.memory_space<vmem>>, vector<6x64xf32>
    %c1_238 = arith.constant 1 : index
    %c0_239 = arith.constant 0 : index
    %c0_240 = arith.constant 0 : index
    %243 = vector.load %arg5[%c1_238, %c0_239, %c0_240] : memref<6x64x64xf32, #tpu.memory_space<vmem>>, vector<1x64x64xf32>
    %244 = vector.shape_cast %243 : vector<1x64x64xf32> to vector<64x64xf32>
    %cst_241 = arith.constant dense<0.000000e+00> : vector<6x64xf32>
    %245 = tpu.matmul %242, %244, %cst_241 {dimension_numbers = #tpu.dot_dimension_numbers<[1], [0], [0], [1], [0, 0, 1, 1], [], []>} : vector<6x64xf32>, vector<64x64xf32>, vector<6x64xf32> -> vector<6x64xf32>
    %c1_242 = arith.constant 1 : index
    %c0_243 = arith.constant 0 : index
    %246 = vector.load %arg15[%c1_242, %c0_243] : memref<8x64xf32, #tpu.memory_space<vmem>>, vector<6x64xf32>
    %c3_244 = arith.constant 3 : index
    %c0_245 = arith.constant 0 : index
    %c0_246 = arith.constant 0 : index
    %247 = vector.load %arg5[%c3_244, %c0_245, %c0_246] : memref<6x64x64xf32, #tpu.memory_space<vmem>>, vector<1x64x64xf32>
    %248 = vector.shape_cast %247 : vector<1x64x64xf32> to vector<64x64xf32>
    %cst_247 = arith.constant dense<0.000000e+00> : vector<6x64xf32>
    %249 = tpu.matmul %246, %248, %cst_247 {dimension_numbers = #tpu.dot_dimension_numbers<[1], [0], [0], [1], [0, 0, 1, 1], [], []>} : vector<6x64xf32>, vector<64x64xf32>, vector<6x64xf32> -> vector<6x64xf32>
    %250 = arith.addf %245, %249 : vector<6x64xf32>
    %c2_248 = arith.constant 2 : index
    %c0_249 = arith.constant 0 : index
    %251 = vector.load %arg15[%c2_248, %c0_249] : memref<8x64xf32, #tpu.memory_space<vmem>>, vector<6x64xf32>
    %c5_250 = arith.constant 5 : index
    %c0_251 = arith.constant 0 : index
    %c0_252 = arith.constant 0 : index
    %252 = vector.load %arg5[%c5_250, %c0_251, %c0_252] : memref<6x64x64xf32, #tpu.memory_space<vmem>>, vector<1x64x64xf32>
    %253 = vector.shape_cast %252 : vector<1x64x64xf32> to vector<64x64xf32>
    %cst_253 = arith.constant dense<0.000000e+00> : vector<6x64xf32>
    %254 = tpu.matmul %251, %253, %cst_253 {dimension_numbers = #tpu.dot_dimension_numbers<[1], [0], [0], [1], [0, 0, 1, 1], [], []>} : vector<6x64xf32>, vector<64x64xf32>, vector<6x64xf32> -> vector<6x64xf32>
    %255 = arith.addf %250, %254 : vector<6x64xf32>
    %256 = vector.broadcast %222 : vector<1x64xf32> to vector<6x64xf32>
    %257 = arith.mulf %255, %256 : vector<6x64xf32>
    %258 = vector.broadcast %223 : vector<1x64xf32> to vector<6x64xf32>
    %259 = arith.addf %257, %258 : vector<6x64xf32>
    %260 = arith.maximumf %241, %259 : vector<6x64xf32>
    %c0_254 = arith.constant 0 : index
    %c0_255 = arith.constant 0 : index
    %261 = vector.load %arg16[%c0_254, %c0_255] : memref<66x64xf32, #tpu.memory_space<vmem>>, vector<6x64xf32>
    tpu.vector_store %arg16[%c0_254, %c0_255], %260 {strides = array<i32>} : memref<66x64xf32, #tpu.memory_space<vmem>>, vector<6x64xf32>,
    %c0_256 = arith.constant 0 : index
    %c0_257 = arith.constant 0 : index
    %262 = tpu.strided_load %arg16[%c0_256, %c0_257] {strides = array<i32: 2, 1>} : memref<66x64xf32, #tpu.memory_space<vmem>>, vector<1x64xf32>
    %c1_258 = arith.constant 1 : index
    %c0_259 = arith.constant 0 : index
    %263 = tpu.strided_load %arg16[%c1_258, %c0_259] {strides = array<i32: 2, 1>} : memref<66x64xf32, #tpu.memory_space<vmem>>, vector<1x64xf32>
    %264 = arith.maximumf %262, %263 : vector<1x64xf32>
    %cst_260 = arith.constant 0.000000e+00 : f32
    %265 = vector.broadcast %cst_260 : f32 to vector<1x64xf32>
    %266 = arith.maximumf %264, %265 : vector<1x64xf32>
    %c0_261 = arith.constant 0 : index
    %c0_262 = arith.constant 0 : index
    %267 = vector.load %arg11[%c0_261, %c0_262] : memref<2x64xf32, #tpu.memory_space<vmem>>, vector<1x64xf32>
    tpu.vector_store %arg11[%c0_261, %c0_262], %266 {strides = array<i32>} : memref<2x64xf32, #tpu.memory_space<vmem>>, vector<1x64xf32>,
    %c4_263 = arith.constant 4 : index
    %c0_264 = arith.constant 0 : index
    %268 = tpu.strided_load %arg16[%c4_263, %c0_264] {strides = array<i32: 2, 1>} : memref<66x64xf32, #tpu.memory_space<vmem>>, vector<1x64xf32>
    %c5_265 = arith.constant 5 : index
    %c0_266 = arith.constant 0 : index
    %269 = tpu.strided_load %arg16[%c5_265, %c0_266] {strides = array<i32: 2, 1>} : memref<66x64xf32, #tpu.memory_space<vmem>>, vector<1x64xf32>
    %270 = arith.maximumf %268, %269 : vector<1x64xf32>
    %cst_267 = arith.constant 0.000000e+00 : f32
    %271 = vector.broadcast %cst_267 : f32 to vector<1x64xf32>
    %272 = arith.maximumf %270, %271 : vector<1x64xf32>
    %c1_268 = arith.constant 1 : index
    %c0_269 = arith.constant 0 : index
    %273 = vector.load %arg11[%c1_268, %c0_269] : memref<2x64xf32, #tpu.memory_space<vmem>>, vector<1x64xf32>
    tpu.vector_store %arg11[%c1_268, %c0_269], %272 {strides = array<i32>} : memref<2x64xf32, #tpu.memory_space<vmem>>, vector<1x64xf32>,
    return
  }
  func.func @transform_0(%arg0: i32) -> (i32, i32) {
    %c0_i32 = arith.constant 0 : i32
    %c0_i32_0 = arith.constant 0 : i32
    %c0_i32_1 = arith.constant 0 : i32
    return %c0_i32, %c0_i32_0 : i32, i32
  }
  func.func @transform_1(%arg0: i32) -> (i32, i32, i32) {
    %c0_i32 = arith.constant 0 : i32
    %c0_i32_0 = arith.constant 0 : i32
    %c0_i32_1 = arith.constant 0 : i32
    %c0_i32_2 = arith.constant 0 : i32
    return %c0_i32, %c0_i32_0, %c0_i32_1 : i32, i32, i32
  }
  func.func @transform_2(%arg0: i32) -> (i32, i32, i32) {
    %c0_i32 = arith.constant 0 : i32
    %c0_i32_0 = arith.constant 0 : i32
    %c0_i32_1 = arith.constant 0 : i32
    %c0_i32_2 = arith.constant 0 : i32
    return %c0_i32, %c0_i32_0, %c0_i32_1 : i32, i32, i32
  }
  func.func @transform_3(%arg0: i32) -> (i32, i32, i32) {
    %c0_i32 = arith.constant 0 : i32
    %c0_i32_0 = arith.constant 0 : i32
    %c0_i32_1 = arith.constant 0 : i32
    %c0_i32_2 = arith.constant 0 : i32
    return %c0_i32, %c0_i32_0, %c0_i32_1 : i32, i32, i32
  }
  func.func @transform_4(%arg0: i32) -> (i32, i32, i32) {
    %c0_i32 = arith.constant 0 : i32
    %c0_i32_0 = arith.constant 0 : i32
    %c0_i32_1 = arith.constant 0 : i32
    %c0_i32_2 = arith.constant 0 : i32
    return %c0_i32, %c0_i32_0, %c0_i32_1 : i32, i32, i32
  }
  func.func @transform_5(%arg0: i32) -> (i32, i32) {
    %c0_i32 = arith.constant 0 : i32
    %c0_i32_0 = arith.constant 0 : i32
    %c0_i32_1 = arith.constant 0 : i32
    return %c0_i32, %c0_i32_0 : i32, i32
  }
  func.func @transform_6(%arg0: i32) -> (i32, i32) {
    %c0_i32 = arith.constant 0 : i32
    %c0_i32_0 = arith.constant 0 : i32
    %c0_i32_1 = arith.constant 0 : i32
    return %c0_i32, %c0_i32_0 : i32, i32
  }
  func.func @transform_7(%arg0: i32) -> (i32, i32) {
    %c0_i32 = arith.constant 0 : i32
    %c0_i32_0 = arith.constant 0 : i32
    %c0_i32_1 = arith.constant 0 : i32
    return %c0_i32, %c0_i32_0 : i32, i32
  }
  func.func @transform_8(%arg0: i32) -> (i32, i32) {
    %c0_i32 = arith.constant 0 : i32
    %c0_i32_0 = arith.constant 0 : i32
    %c0_i32_1 = arith.constant 0 : i32
    return %c0_i32, %c0_i32_0 : i32, i32
  }
  func.func @transform_9(%arg0: i32) -> (i32, i32) {
    %c0_i32 = arith.constant 0 : i32
    %c0_i32_0 = arith.constant 0 : i32
    %c0_i32_1 = arith.constant 0 : i32
    return %c0_i32, %c0_i32_0 : i32, i32
  }
  func.func @transform_10(%arg0: i32) -> (i32, i32) {
    %c0_i32 = arith.constant 0 : i32
    %c0_i32_0 = arith.constant 0 : i32
    %c0_i32_1 = arith.constant 0 : i32
    return %c0_i32, %c0_i32_0 : i32, i32
  }
}

</mosaic_0001>

<llo_original>
// kernel: _hier_impl.1
$region0: #{_hier_impl.1}
  #allocation0 [shape = 'u32[]', space=smem, size = 0x4, offset = 0x4, fixed_abs, tag = 'smem constant byte address 0x4 - core index']
  #allocation1 [shape = 'u32[144,128]{1,0:T(1,128)}', space=vmem, size = 0x12000, scoped, tag = 'internal scratch']
  #allocation2 [shape = 'f32[68,32]{1,0:T(8,128)}', space=vmem, size = 0x9000, scoped, tag = 'scratch operand']
  #allocation3 [shape = 'f32[20,64]{1,0:T(8,128)}', space=vmem, size = 0x3000, scoped, tag = 'scratch operand']
  #allocation4 [shape = 'f32[12,64]{1,0:T(8,128)}', space=vmem, size = 0x2000, scoped, tag = 'scratch operand']
  #allocation5 [shape = 'f32[8,64]{1,0:T(8,128)}', space=vmem, size = 0x1000, scoped, tag = 'scratch operand']
  #allocation6 [shape = 'f32[66,64]{1,0:T(8,128)}', space=vmem, size = 0x9000, scoped, tag = 'scratch operand']
  %s0 = inlined_call_operand.hbm [shape: f32[64,32], index: 0, kind: input, shape index: {}]
  %s1 = inlined_call_operand.hbm [shape: f32[12,32,64], index: 1, kind: input, shape index: {}]
  %s2 = inlined_call_operand.hbm [shape: f32[6,64,64], index: 2, kind: input, shape index: {}]
  %s3 = inlined_call_operand.hbm [shape: f32[6,64,64], index: 3, kind: input, shape index: {}]
  %s4 = inlined_call_operand.hbm [shape: f32[6,64,64], index: 4, kind: input, shape index: {}]
  %s5 = inlined_call_operand.vmem [shape: f32[4,64], index: 5, kind: input, shape index: {}]
  %s6 = inlined_call_operand.vmem [shape: f32[4,64], index: 6, kind: input, shape index: {}]
  %s7 = inlined_call_operand.vmem [shape: f32[16,64], index: 7, kind: output, shape index: {0}]
  %s8 = inlined_call_operand.vmem [shape: f32[8,64], index: 8, kind: output, shape index: {1}]
  %s9 = inlined_call_operand.vmem [shape: f32[4,64], index: 9, kind: output, shape index: {2}]
  %s10 = inlined_call_operand.hbm [shape: f32[2,64], index: 10, kind: output, shape index: {3}]
  %11 = xla_tuple %s7, %s8, %s9, %s10
  %s12 = sld [smem:[#allocation0]]
  $region82: #{_hier_impl.1} parent=0
    _
  %s14 = ssub.s32 1, %s12
  %s15 = scalar_select 0, %s14, %s12
  $region1: #{_hier_impl.1} parent=0
    #allocation7 [shape = 'u8[32768]{0}', space=vmem, size = 0x8000, scoped, tag = 'input window, operand 0, single buffered']
    #allocation8 [shape = 's32[1]{0}', space=sflag, size = 0x4, scoped, tag = 'scoped memory for _hier_impl.1']
    #allocation9 [shape = 's32[1]{0}', space=sflag, size = 0x4, scoped, tag = 'scoped memory for _hier_impl.1']
    #allocation10 [shape = 'u8[196608]{0}', space=vmem, size = 0x30000, scoped, tag = 'input window, operand 1, single buffered']
    #allocation11 [shape = 's32[1]{0}', space=sflag, size = 0x4, scoped, tag = 'scoped memory for _hier_impl.1']
    #allocation12 [shape = 'u8[196608]{0}', space=vmem, size = 0x30000, scoped, tag = 'input window, operand 2, single buffered']
    #allocation13 [shape = 'u8[196608]{0}', space=vmem, size = 0x30000, scoped, tag = 'input window, operand 3, single buffered']
    #allocation14 [shape = 's32[1]{0}', space=sflag, size = 0x4, scoped, tag = 'scoped memory for _hier_impl.1']
    #allocation15 [shape = 'u8[196608]{0}', space=vmem, size = 0x30000, scoped, tag = 'input window, operand 4, single buffered']
    #allocation16 [shape = 'u8[1024]{0}', space=vmem, size = 0x400, scoped, tag = 'output window, operand 3, single buffered']
    %16 = vsyncpa [#allocation8], 0
    %17 = vsyncpa [#allocation11], 0
    %18 = vsyncpa [#allocation14], 0
    %19 = vsyncpa [#allocation9], 0
    // Predicated region
    $region2: #{_hier_impl.1} parent=1 // pred_check
      _
    $region3: #{_hier_impl.1} parent=1 // pred_check_branch
      %21 = sbr.rel (0) target = $region5
    $region4: #{_hier_impl.1} parent=1 // pred_region
      %s23 = ssub.s32 1024, 1024
      %24 = vsyncadd [#allocation8], %s23
      %s25 = sshll.u32 [#allocation7], 4
      %s26 = int_to_ptr.vmem [resolvable:$true] %s25
      %31 = dma.hbm_to_vmem [thread:$0]  %s0, 1024, %s26, [#allocation8], 128, 128, 8
    $region5: #{_hier_impl.1} parent=1 // pred_fallthru
      _
    // Predicated region
    $region6: #{_hier_impl.1} parent=1 // pred_check
      _
    $region7: #{_hier_impl.1} parent=1 // pred_check_branch
      %33 = sbr.rel (0) target = $region9
    $region8: #{_hier_impl.1} parent=1 // pred_region
      %s35 = ssub.s32 6144, 6144
      %36 = vsyncadd [#allocation11], %s35
      %s37 = sshll.u32 [#allocation10], 4
      %s38 = int_to_ptr.vmem [resolvable:$true] %s37
      %43 = dma.hbm_to_vmem [thread:$0]  %s1, 6144, %s38, [#allocation11], 128, 128, 8
    $region9: #{_hier_impl.1} parent=1 // pred_fallthru
      _
    // Predicated region
    $region10: #{_hier_impl.1} parent=1 // pred_check
      _
    $region11: #{_hier_impl.1} parent=1 // pred_check_branch
      %45 = sbr.rel (0) target = $region13
    $region12: #{_hier_impl.1} parent=1 // pred_region
      %s47 = ssub.s32 6144, 6144
      %48 = vsyncadd [#allocation11], %s47
      %s49 = sshll.u32 [#allocation12], 4
      %s50 = int_to_ptr.vmem [resolvable:$true] %s49
      %55 = dma.hbm_to_vmem [thread:$0]  %s2, 6144, %s50, [#allocation11], 128, 128, 8
    $region13: #{_hier_impl.1} parent=1 // pred_fallthru
      _
    // Predicated region
    $region14: #{_hier_impl.1} parent=1 // pred_check
      _
    $region15: #{_hier_impl.1} parent=1 // pred_check_branch
      %57 = sbr.rel (0) target = $region17
    $region16: #{_hier_impl.1} parent=1 // pred_region
      %s59 = ssub.s32 6144, 6144
      %60 = vsyncadd [#allocation14], %s59
      %s61 = sshll.u32 [#allocation13], 4
      %s62 = int_to_ptr.vmem [resolvable:$true] %s61
      %67 = dma.hbm_to_vmem [thread:$0]  %s3, 6144, %s62, [#allocation14], 128, 128, 8
    $region17: #{_hier_impl.1} parent=1 // pred_fallthru
      _
    // Predicated region
    $region18: #{_hier_impl.1} parent=1 // pred_check
      _
    $region19: #{_hier_impl.1} parent=1 // pred_check_branch
      %69 = sbr.rel (0) target = $region21
    $region20: #{_hier_impl.1} parent=1 // pred_region
      %s71 = ssub.s32 6144, 6144
      %72 = vsyncadd [#allocation14], %s71
      %s73 = sshll.u32 [#allocation15], 4
      %s74 = int_to_ptr.vmem [resolvable:$true] %s73
      %79 = dma.hbm_to_vmem [thread:$0]  %s4, 6144, %s74, [#allocation14], 128, 128, 8
    $region21: #{_hier_impl.1} parent=1 // pred_fallthru
      _
    // Predicated region
    $region22: #{_hier_impl.1} parent=1 // pred_check
      _
    $region23: #{_hier_impl.1} parent=1 // pred_check_branch
      %81 = sbr.rel (0) target = $region25
    $region24: #{_hier_impl.1} parent=1 // pred_region
      _
    $region25: #{_hier_impl.1} parent=1 // pred_fallthru
      _
    // Predicated region
    $region26: #{_hier_impl.1} parent=1 // pred_check
      _
    $region27: #{_hier_impl.1} parent=1 // pred_check_branch
      %83 = sbr.rel (0) target = $region29
    $region28: #{_hier_impl.1} parent=1 // pred_region
      _
    $region29: #{_hier_impl.1} parent=1 // pred_fallthru
      _
    // Predicated region
    $region30: #{_hier_impl.1} parent=1 // pred_check
      _
    $region31: #{_hier_impl.1} parent=1 // pred_check_branch
      %85 = sbr.rel (0) target = $region33
    $region32: #{_hier_impl.1} parent=1 // pred_region
      %86 = dma.done [#allocation8], 1024
    $region33: #{_hier_impl.1} parent=1 // pred_fallthru
      _
    // Predicated region
    $region34: #{_hier_impl.1} parent=1 // pred_check
      _
    $region35: #{_hier_impl.1} parent=1 // pred_check_branch
      %88 = sbr.rel (0) target = $region37
    $region36: #{_hier_impl.1} parent=1 // pred_region
      %89 = dma.done [#allocation11], 6144
    $region37: #{_hier_impl.1} parent=1 // pred_fallthru
      _
    // Predicated region
    $region38: #{_hier_impl.1} parent=1 // pred_check
      _
    $region39: #{_hier_impl.1} parent=1 // pred_check_branch
      %91 = sbr.rel (0) target = $region41
    $region40: #{_hier_impl.1} parent=1 // pred_region
      %92 = dma.done [#allocation11], 6144
    $region41: #{_hier_impl.1} parent=1 // pred_fallthru
      _
    // Predicated region
    $region42: #{_hier_impl.1} parent=1 // pred_check
      _
    $region43: #{_hier_impl.1} parent=1 // pred_check_branch
      %94 = sbr.rel (0) target = $region45
    $region44: #{_hier_impl.1} parent=1 // pred_region
      %95 = dma.done [#allocation14], 6144
    $region45: #{_hier_impl.1} parent=1 // pred_fallthru
      _
    // Predicated region
    $region46: #{_hier_impl.1} parent=1 // pred_check
      _
    $region47: #{_hier_impl.1} parent=1 // pred_check_branch
      %97 = sbr.rel (0) target = $region49
    $region48: #{_hier_impl.1} parent=1 // pred_region
      %98 = dma.done [#allocation14], 6144
    $region49: #{_hier_impl.1} parent=1 // pred_fallthru
      _
    %v99 = vld [vmem:[%s5] sm:$0xf]
    %v100 = vld [vmem:[%s6] sm:$0xf]
    %vm101 = vcmask 261120
    %102 = vst.msk [vmem:[#allocation2] sm:$0xff] %vm101, 0.0
    %103 = vst.msk [vmem:[#allocation2 + $0x8] sm:$0xff] %vm101, 0.0
    %104 = vst.msk [vmem:[#allocation2 + $0x10] sm:$0xff] %vm101, 0.0
    %105 = vst.msk [vmem:[#allocation2 + $0x18] sm:$0xff] %vm101, 0.0
    %106 = vst.msk [vmem:[#allocation2 + $0x20] sm:$0xff] %vm101, 0.0
    %107 = vst.msk [vmem:[#allocation2 + $0x28] sm:$0xff] %vm101, 0.0
    %108 = vst.msk [vmem:[#allocation2 + $0x30] sm:$0xff] %vm101, 0.0
    %109 = vst.msk [vmem:[#allocation2 + $0x38] sm:$0xff] %vm101, 0.0
    %vm110 = vcmask 257024
    %111 = vst.msk [vmem:[#allocation2 + $0x40] sm:$0xf] %vm110, 0.0
    %vm112 = vcmask 523264
    %113 = vst.msk [vmem:[#allocation3] sm:$0xff] %vm112, 0.0
    %114 = vst.msk [vmem:[#allocation3 + $0x8] sm:$0xff] %vm112, 0.0
    %vm115 = vcmask 519168
    %116 = vst.msk [vmem:[#allocation3 + $0x10] sm:$0xf] %vm115, 0.0
    %117 = vst.msk [vmem:[#allocation4] sm:$0xff] %vm112, 0.0
    %118 = vst.msk [vmem:[#allocation4 + $0x8] sm:$0xf] %vm115, 0.0
    %119 = vst.msk [vmem:[#allocation5] sm:$0xff] %vm112, 0.0
    %v120 = vld [vmem:[#allocation7] sm:$0xff]
    %v121 = vld [vmem:[#allocation7 + $0x8] sm:$0xff]
    %v122 = vld [vmem:[#allocation7 + $0x10] sm:$0xff]
    %v123 = vld [vmem:[#allocation7 + $0x18] sm:$0xff]
    %124 = vst.msk [vmem:[#allocation2 + $0x1] sm:$0xff] %vm101, %v120
    %125 = vst.msk [vmem:[#allocation2 + $0x9] sm:$0xff] %vm101, %v121
    %126 = vst.msk [vmem:[#allocation2 + $0x11] sm:$0xff] %vm101, %v122
    %127 = vst.msk [vmem:[#allocation2 + $0x19] sm:$0xff] %vm101, %v123
    %v128 = vld [vmem:[#allocation7 + $0x20] sm:$0xff]
    %v129 = vld [vmem:[#allocation7 + $0x28] sm:$0xff]
    %v130 = vld [vmem:[#allocation7 + $0x30] sm:$0xff]
    %v131 = vld [vmem:[#allocation7 + $0x38] sm:$0xff]
    %132 = vst.msk [vmem:[#allocation2 + $0x23] sm:$0xff] %vm101, %v128
    %133 = vst.msk [vmem:[#allocation2 + $0x2b] sm:$0xff] %vm101, %v129
    %134 = vst.msk [vmem:[#allocation2 + $0x33] sm:$0xff] %vm101, %v130
    %135 = vst.msk [vmem:[#allocation2 + $0x3b] sm:$0xff] %vm101, %v131
    %v136 = vld [vmem:[#allocation2] sm:$0xff]
    %v137 = vld [vmem:[#allocation2 + $0x8] sm:$0xff]
    %v138 = vld [vmem:[#allocation2 + $0x10] sm:$0xff]
    %v139 = vld [vmem:[#allocation2 + $0x18] sm:$0xff]
    %v140 = vld [vmem:[#allocation2 + $0x20] sm:$0xff]
    %v141 = vld [vmem:[#allocation2 + $0x28] sm:$0xff]
    %v142 = vld [vmem:[#allocation2 + $0x30] sm:$0xff]
    %v143 = vld [vmem:[#allocation2 + $0x38] sm:$0xff]
    %v144 = vld [vmem:[#allocation2 + $0x40] sm:$0x3]
    %v145 = vld [vmem:[#allocation10] sm:$0xff]
    %v146 = vld [vmem:[#allocation10 + $0x8] sm:$0xff]
    %v147 = vld [vmem:[#allocation10 + $0x10] sm:$0xff]
    %v148 = vld [vmem:[#allocation10 + $0x18] sm:$0xff]
    %v149 = vld [vmem:[#allocation2 + $0x1] sm:$0xff]
    %v150 = vld [vmem:[#allocation2 + $0x9] sm:$0xff]
    %v151 = vld [vmem:[#allocation2 + $0x11] sm:$0xff]
    %v152 = vld [vmem:[#allocation2 + $0x19] sm:$0xff]
    %v153 = vld [vmem:[#allocation2 + $0x21] sm:$0xff]
    %v154 = vld [vmem:[#allocation2 + $0x29] sm:$0xff]
    %v155 = vld [vmem:[#allocation2 + $0x31] sm:$0xff]
    %v156 = vld [vmem:[#allocation2 + $0x39] sm:$0xff]
    %v157 = vld [vmem:[#allocation2 + $0x41] sm:$0x3]
    %s158 = scalar_lea.vmem [#allocation10], 128
    %v159 = vld [vmem:[%s158] sm:$0xff]
    %v160 = vld [vmem:[%s158 + $0x8] sm:$0xff]
    %v161 = vld [vmem:[%s158 + $0x10] sm:$0xff]
    %v162 = vld [vmem:[%s158 + $0x18] sm:$0xff]
    %v164 = vsel %vm101, %v149, 0
    %v167 = vsel %vm101, %v150, 0
    %v170 = vsel %vm101, %v151, 0
    %v173 = vsel %vm101, %v152, 0
    %v176 = vsel %vm101, %v153, 0
    %v179 = vsel %vm101, %v154, 0
    %v182 = vsel %vm101, %v155, 0
    %v185 = vsel %vm101, %v156, 0
    %v188 = vsel %vm101, %v157, 0
    %190 = vmatprep.subr.mxu0 0.0
    %191 = vmatpush1.msra.mxu0 %v159
    %192 = vmatprep.subr.mxu0 0.0
    %193 = vmatpush1.msra.mxu0 %v160
    %194 = vmatprep.subr.mxu0 0.0
    %195 = vmatpush1.msra.mxu0 %v161
    %196 = vmatprep.subr.mxu0 0.0
    %197 = vmatpush1.msra.mxu0 %v162
    %198 = vmatprep.subr.mxu0 0.0
    %199 = vmatpush1.msra.mxu0 0.0
    %200 = vmatprep.subr.mxu0 0.0
    %201 = vmatpush1.msra.mxu0 0.0
    %202 = vmatprep.subr.mxu0 0.0
    %203 = vmatpush1.msra.mxu0 0.0
    %204 = vmatprep.subr.mxu0 0.0
    %205 = vmatpush1.msra.mxu0 0.0
    %206 = vmatprep.subr.mxu0 0.0
    %207 = vmatpush1.msra.mxu0 0.0
    %208 = vmatprep.subr.mxu0 0.0
    %209 = vmatpush1.msra.mxu0 0.0
    %210 = vmatprep.subr.mxu0 0.0
    %211 = vmatpush1.msra.mxu0 0.0
    %212 = vmatprep.subr.mxu0 0.0
    %213 = vmatpush1.msra.mxu0 0.0
    %214 = vmatprep.subr.mxu0 0.0
    %215 = vmatpush1.msra.mxu0 0.0
    %216 = vmatprep.subr.mxu0 0.0
    %217 = vmatpush1.msra.mxu0 0.0
    %218 = vmatprep.subr.mxu0 0.0
    %219 = vmatpush1.msra.mxu0 0.0
    %220 = vmatprep.subr.mxu0 0.0
    %221 = vmatpush1.msra.mxu0 0.0
    %222 = vmatprep.subr.mxu0 0.0
    %223 = vmatpush1.msra.mxu0 0.0
    %224 = vmatprep.subr.mxu0 0.0
    %225 = vmatpush1.msra.mxu0 0.0
    %226 = vmatprep.subr.mxu0 0.0
    %227 = vmatpush1.msra.mxu0 0.0
    %228 = vmatprep.subr.mxu0 0.0
    %229 = vmatpush1.msra.mxu0 0.0
    %230 = vmatprep.subr.mxu0 0.0
    %231 = vmatpush1.msra.mxu0 0.0
    %232 = vmatprep.subr.mxu0 0.0
    %233 = vmatpush1.msra.mxu0 0.0
    %234 = vmatprep.subr.mxu0 0.0
    %235 = vmatpush1.msra.mxu0 0.0
    %236 = vmatprep.subr.mxu0 0.0
    %237 = vmatpush1.msra.mxu0 0.0
    %238 = vmatprep.subr.mxu0 0.0
    %239 = vmatpush1.msra.mxu0 0.0
    %240 = vmatprep.subr.mxu0 0.0
    %241 = vmatpush1.msra.mxu0 0.0
    %242 = vmatprep.subr.mxu0 0.0
    %243 = vmatpush1.msra.mxu0 0.0
    %244 = vmatprep.subr.mxu0 0.0
    %245 = vmatpush1.msra.mxu0 0.0
    %246 = vmatprep.subr.mxu0 0.0
    %247 = vmatpush1.msra.mxu0 0.0
    %248 = vmatprep.subr.mxu0 0.0
    %249 = vmatpush1.msra.mxu0 0.0
    %250 = vmatprep.subr.mxu0 0.0
    %251 = vmatpush1.msra.mxu0 0.0
    %252 = vmatprep.subr.mxu0 0.0
    %253 = vmatpush1.msra.mxu0 0.0
    %254 = vmatprep.mubr.f32.mxu0 0.0
    %255 = vmatmul.mubr.f32.gmra.mrb[0].mxu0 %v164
    %v256 = vpop.f32.mrb[0].mxu0
    %v257 = vadd.f32 0.0, %v256
    %v258 = vpop.f32.mrb[0].mxu0
    %259 = vmatprep.mubr.f32.mxu0 0.0
    %260 = vmatmul.mubr.f32.gmra.mrb[0].mxu0 %v167
    %v261 = vpop.f32.mrb[0].mxu0
    %v262 = vadd.f32 0.0, %v261
    %v263 = vpop.f32.mrb[0].mxu0
    %264 = vmatprep.mubr.f32.mxu0 0.0
    %265 = vmatmul.mubr.f32.gmra.mrb[0].mxu0 %v170
    %v266 = vpop.f32.mrb[0].mxu0
    %v267 = vadd.f32 0.0, %v266
    %v268 = vpop.f32.mrb[0].mxu0
    %269 = vmatprep.mubr.f32.mxu0 0.0
    %270 = vmatmul.mubr.f32.gmra.mrb[0].mxu0 %v173
    %v271 = vpop.f32.mrb[0].mxu0
    %v272 = vadd.f32 0.0, %v271
    %v273 = vpop.f32.mrb[0].mxu0
    %274 = vmatprep.mubr.f32.mxu0 0.0
    %275 = vmatmul.mubr.f32.gmra.mrb[0].mxu0 %v176
    %v276 = vpop.f32.mrb[0].mxu0
    %v277 = vadd.f32 0.0, %v276
    %v278 = vpop.f32.mrb[0].mxu0
    %279 = vmatprep.mubr.f32.mxu0 0.0
    %280 = vmatmul.mubr.f32.gmra.mrb[0].mxu0 %v179
    %v281 = vpop.f32.mrb[0].mxu0
    %v282 = vadd.f32 0.0, %v281
    %v283 = vpop.f32.mrb[0].mxu0
    %284 = vmatprep.mubr.f32.mxu0 0.0
    %285 = vmatmul.mubr.f32.gmra.mrb[0].mxu0 %v182
    %v286 = vpop.f32.mrb[0].mxu0
    %v287 = vadd.f32 0.0, %v286
    %v288 = vpop.f32.mrb[0].mxu0
    %289 = vmatprep.mubr.f32.mxu0 0.0
    %290 = vmatmul.mubr.f32.gmra.mrb[0].mxu0 %v185
    %v291 = vpop.f32.mrb[0].mxu0
    %v292 = vadd.f32 0.0, %v291
    %v293 = vpop.f32.mrb[0].mxu0
    %294 = vmatprep.mubr.f32.mxu0 0.0
    %295 = vmatmul.mubr.f32.gmra.mrb[0].mxu0 %v188
    %v296 = vpop.f32.mrb[0].mxu0
    %v297 = vadd.f32 0.0, %v296
    %v298 = vpop.f32.mrb[0].mxu0
    %299 = vdwg.mxu0
    %v301 = vsel %vm101, %v136, 0
    %v304 = vsel %vm101, %v137, 0
    %v307 = vsel %vm101, %v138, 0
    %v310 = vsel %vm101, %v139, 0
    %v313 = vsel %vm101, %v140, 0
    %v316 = vsel %vm101, %v141, 0
    %v319 = vsel %vm101, %v142, 0
    %v322 = vsel %vm101, %v143, 0
    %v325 = vsel %vm101, %v144, 0
    %327 = vmatprep.subr.mxu0 0.0
    %328 = vmatpush1.msra.mxu0 %v145
    %329 = vmatprep.subr.mxu0 0.0
    %330 = vmatpush1.msra.mxu0 %v146
    %331 = vmatprep.subr.mxu0 0.0
    %332 = vmatpush1.msra.mxu0 %v147
    %333 = vmatprep.subr.mxu0 0.0
    %334 = vmatpush1.msra.mxu0 %v148
    %335 = vmatprep.subr.mxu0 0.0
    %336 = vmatpush1.msra.mxu0 0.0
    %337 = vmatprep.subr.mxu0 0.0
    %338 = vmatpush1.msra.mxu0 0.0
    %339 = vmatprep.subr.mxu0 0.0
    %340 = vmatpush1.msra.mxu0 0.0
    %341 = vmatprep.subr.mxu0 0.0
    %342 = vmatpush1.msra.mxu0 0.0
    %343 = vmatprep.subr.mxu0 0.0
    %344 = vmatpush1.msra.mxu0 0.0
    %345 = vmatprep.subr.mxu0 0.0
    %346 = vmatpush1.msra.mxu0 0.0
    %347 = vmatprep.subr.mxu0 0.0
    %348 = vmatpush1.msra.mxu0 0.0
    %349 = vmatprep.subr.mxu0 0.0
    %350 = vmatpush1.msra.mxu0 0.0
    %351 = vmatprep.subr.mxu0 0.0
    %352 = vmatpush1.msra.mxu0 0.0
    %353 = vmatprep.subr.mxu0 0.0
    %354 = vmatpush1.msra.mxu0 0.0
    %355 = vmatprep.subr.mxu0 0.0
    %356 = vmatpush1.msra.mxu0 0.0
    %357 = vmatprep.subr.mxu0 0.0
    %358 = vmatpush1.msra.mxu0 0.0
    %359 = vmatprep.subr.mxu0 0.0
    %360 = vmatpush1.msra.mxu0 0.0
    %361 = vmatprep.subr.mxu0 0.0
    %362 = vmatpush1.msra.mxu0 0.0
    %363 = vmatprep.subr.mxu0 0.0
    %364 = vmatpush1.msra.mxu0 0.0
    %365 = vmatprep.subr.mxu0 0.0
    %366 = vmatpush1.msra.mxu0 0.0
    %367 = vmatprep.subr.mxu0 0.0
    %368 = vmatpush1.msra.mxu0 0.0
    %369 = vmatprep.subr.mxu0 0.0
    %370 = vmatpush1.msra.mxu0 0.0
    %371 = vmatprep.subr.mxu0 0.0
    %372 = vmatpush1.msra.mxu0 0.0
    %373 = vmatprep.subr.mxu0 0.0
    %374 = vmatpush1.msra.mxu0 0.0
    %375 = vmatprep.subr.mxu0 0.0
    %376 = vmatpush1.msra.mxu0 0.0
    %377 = vmatprep.subr.mxu0 0.0
    %378 = vmatpush1.msra.mxu0 0.0
    %379 = vmatprep.subr.mxu0 0.0
    %380 = vmatpush1.msra.mxu0 0.0
    %381 = vmatprep.subr.mxu0 0.0
    %382 = vmatpush1.msra.mxu0 0.0
    %383 = vmatprep.subr.mxu0 0.0
    %384 = vmatpush1.msra.mxu0 0.0
    %385 = vmatprep.subr.mxu0 0.0
    %386 = vmatpush1.msra.mxu0 0.0
    %387 = vmatprep.subr.mxu0 0.0
    %388 = vmatpush1.msra.mxu0 0.0
    %389 = vmatprep.subr.mxu0 0.0
    %390 = vmatpush1.msra.mxu0 0.0
    %391 = vmatprep.mubr.f32.mxu0 0.0
    %392 = vmatmul.mubr.f32.gmra.mrb[0].mxu0 %v301
    %v393 = vpop.f32.mrb[0].mxu0
    %v394 = vadd.f32 %v257, %v393
    %v395 = vpop.f32.mrb[0].mxu0
    %396 = vmatprep.mubr.f32.mxu0 0.0
    %397 = vmatmul.mubr.f32.gmra.mrb[0].mxu0 %v304
    %v398 = vpop.f32.mrb[0].mxu0
    %v399 = vadd.f32 %v262, %v398
    %v400 = vpop.f32.mrb[0].mxu0
    %401 = vmatprep.mubr.f32.mxu0 0.0
    %402 = vmatmul.mubr.f32.gmra.mrb[0].mxu0 %v307
    %v403 = vpop.f32.mrb[0].mxu0
    %v404 = vadd.f32 %v267, %v403
    %v405 = vpop.f32.mrb[0].mxu0
    %406 = vmatprep.mubr.f32.mxu0 0.0
    %407 = vmatmul.mubr.f32.gmra.mrb[0].mxu0 %v310
    %v408 = vpop.f32.mrb[0].mxu0
    %v409 = vadd.f32 %v272, %v408
    %v410 = vpop.f32.mrb[0].mxu0
    %411 = vmatprep.mubr.f32.mxu0 0.0
    %412 = vmatmul.mubr.f32.gmra.mrb[0].mxu0 %v313
    %v413 = vpop.f32.mrb[0].mxu0
    %v414 = vadd.f32 %v277, %v413
    %v415 = vpop.f32.mrb[0].mxu0
    %416 = vmatprep.mubr.f32.mxu0 0.0
    %417 = vmatmul.mubr.f32.gmra.mrb[0].mxu0 %v316
    %v418 = vpop.f32.mrb[0].mxu0
    %v419 = vadd.f32 %v282, %v418
    %v420 = vpop.f32.mrb[0].mxu0
    %421 = vmatprep.mubr.f32.mxu0 0.0
    %422 = vmatmul.mubr.f32.gmra.mrb[0].mxu0 %v319
    %v423 = vpop.f32.mrb[0].mxu0
    %v424 = vadd.f32 %v287, %v423
    %v425 = vpop.f32.mrb[0].mxu0
    %426 = vmatprep.mubr.f32.mxu0 0.0
    %427 = vmatmul.mubr.f32.gmra.mrb[0].mxu0 %v322
    %v428 = vpop.f32.mrb[0].mxu0
    %v429 = vadd.f32 %v292, %v428
    %v430 = vpop.f32.mrb[0].mxu0
    %431 = vmatprep.mubr.f32.mxu0 0.0
    %432 = vmatmul.mubr.f32.gmra.mrb[0].mxu0 %v325
    %v433 = vpop.f32.mrb[0].mxu0
    %v434 = vadd.f32 %v297, %v433
    %v435 = vpop.f32.mrb[0].mxu0
    %436 = vdwg.mxu0
    %v437 = vld [vmem:[#allocation2 + $0x2] sm:$0xff]
    %v438 = vld [vmem:[#allocation2 + $0xa] sm:$0xff]
    %v439 = vld [vmem:[#allocation2 + $0x12] sm:$0xff]
    %v440 = vld [vmem:[#allocation2 + $0x1a] sm:$0xff]
    %v441 = vld [vmem:[#allocation2 + $0x22] sm:$0xff]
    %v442 = vld [vmem:[#allocation2 + $0x2a] sm:$0xff]
    %v443 = vld [vmem:[#allocation2 + $0x32] sm:$0xff]
    %v444 = vld [vmem:[#allocation2 + $0x3a] sm:$0xff]
    %v445 = vld [vmem:[#allocation2 + $0x42] sm:$0x3]
    %s446 = scalar_lea.vmem [#allocation10], 256
    %v447 = vld [vmem:[%s446] sm:$0xff]
    %v448 = vld [vmem:[%s446 + $0x8] sm:$0xff]
    %v449 = vld [vmem:[%s446 + $0x10] sm:$0xff]
    %v450 = vld [vmem:[%s446 + $0x18] sm:$0xff]
    %v452 = vsel %vm101, %v437, 0
    %v455 = vsel %vm101, %v438, 0
    %v458 = vsel %vm101, %v439, 0
    %v461 = vsel %vm101, %v440, 0
    %v464 = vsel %vm101, %v441, 0
    %v467 = vsel %vm101, %v442, 0
    %v470 = vsel %vm101, %v443, 0
    %v473 = vsel %vm101, %v444, 0
    %v476 = vsel %vm101, %v445, 0
    %478 = vmatprep.subr.mxu0 0.0
    %479 = vmatpush1.msra.mxu0 %v447
    %480 = vmatprep.subr.mxu0 0.0
    %481 = vmatpush1.msra.mxu0 %v448
    %482 = vmatprep.subr.mxu0 0.0
    %483 = vmatpush1.msra.mxu0 %v449
    %484 = vmatprep.subr.mxu0 0.0
    %485 = vmatpush1.msra.mxu0 %v450
    %486 = vmatprep.subr.mxu0 0.0
    %487 = vmatpush1.msra.mxu0 0.0
    %488 = vmatprep.subr.mxu0 0.0
    %489 = vmatpush1.msra.mxu0 0.0
    %490 = vmatprep.subr.mxu0 0.0
    %491 = vmatpush1.msra.mxu0 0.0
    %492 = vmatprep.subr.mxu0 0.0
    %493 = vmatpush1.msra.mxu0 0.0
    %494 = vmatprep.subr.mxu0 0.0
    %495 = vmatpush1.msra.mxu0 0.0
    %496 = vmatprep.subr.mxu0 0.0
    %497 = vmatpush1.msra.mxu0 0.0
    %498 = vmatprep.subr.mxu0 0.0
    %499 = vmatpush1.msra.mxu0 0.0
    %500 = vmatprep.subr.mxu0 0.0
    %501 = vmatpush1.msra.mxu0 0.0
    %502 = vmatprep.subr.mxu0 0.0
    %503 = vmatpush1.msra.mxu0 0.0
    %504 = vmatprep.subr.mxu0 0.0
    %505 = vmatpush1.msra.mxu0 0.0
    %506 = vmatprep.subr.mxu0 0.0
    %507 = vmatpush1.msra.mxu0 0.0
    %508 = vmatprep.subr.mxu0 0.0
    %509 = vmatpush1.msra.mxu0 0.0
    %510 = vmatprep.subr.mxu0 0.0
    %511 = vmatpush1.msra.mxu0 0.0
    %512 = vmatprep.subr.mxu0 0.0
    %513 = vmatpush1.msra.mxu0 0.0
    %514 = vmatprep.subr.mxu0 0.0
    %515 = vmatpush1.msra.mxu0 0.0
    %516 = vmatprep.subr.mxu0 0.0
    %517 = vmatpush1.msra.mxu0 0.0
    %518 = vmatprep.subr.mxu0 0.0
    %519 = vmatpush1.msra.mxu0 0.0
    %520 = vmatprep.subr.mxu0 0.0
    %521 = vmatpush1.msra.mxu0 0.0
    %522 = vmatprep.subr.mxu0 0.0
    %523 = vmatpush1.msra.mxu0 0.0
    %524 = vmatprep.subr.mxu0 0.0
    %525 = vmatpush1.msra.mxu0 0.0
    %526 = vmatprep.subr.mxu0 0.0
    %527 = vmatpush1.msra.mxu0 0.0
    %528 = vmatprep.subr.mxu0 0.0
    %529 = vmatpush1.msra.mxu0 0.0
    %530 = vmatprep.subr.mxu0 0.0
    %531 = vmatpush1.msra.mxu0 0.0
    %532 = vmatprep.subr.mxu0 0.0
    %533 = vmatpush1.msra.mxu0 0.0
    %534 = vmatprep.subr.mxu0 0.0
    %535 = vmatpush1.msra.mxu0 0.0
    %536 = vmatprep.subr.mxu0 0.0
    %537 = vmatpush1.msra.mxu0 0.0
    %538 = vmatprep.subr.mxu0 0.0
    %539 = vmatpush1.msra.mxu0 0.0
    %540 = vmatprep.subr.mxu0 0.0
    %541 = vmatpush1.msra.mxu0 0.0
    %542 = vmatprep.mubr.f32.mxu0 0.0
    %543 = vmatmul.mubr.f32.gmra.mrb[0].mxu0 %v452
    %v544 = vpop.f32.mrb[0].mxu0
    %v545 = vadd.f32 0.0, %v544
    %v546 = vpop.f32.mrb[0].mxu0
    %547 = vmatprep.mubr.f32.mxu0 0.0
    %548 = vmatmul.mubr.f32.gmra.mrb[0].mxu0 %v455
    %v549 = vpop.f32.mrb[0].mxu0
    %v550 = vadd.f32 0.0, %v549
    %v551 = vpop.f32.mrb[0].mxu0
    %552 = vmatprep.mubr.f32.mxu0 0.0
    %553 = vmatmul.mubr.f32.gmra.mrb[0].mxu0 %v458
    %v554 = vpop.f32.mrb[0].mxu0
    %v555 = vadd.f32 0.0, %v554
    %v556 = vpop.f32.mrb[0].mxu0
    %557 = vmatprep.mubr.f32.mxu0 0.0
    %558 = vmatmul.mubr.f32.gmra.mrb[0].mxu0 %v461
    %v559 = vpop.f32.mrb[0].mxu0
    %v560 = vadd.f32 0.0, %v559
    %v561 = vpop.f32.mrb[0].mxu0
    %562 = vmatprep.mubr.f32.mxu0 0.0
    %563 = vmatmul.mubr.f32.gmra.mrb[0].mxu0 %v464
    %v564 = vpop.f32.mrb[0].mxu0
    %v565 = vadd.f32 0.0, %v564
    %v566 = vpop.f32.mrb[0].mxu0
    %567 = vmatprep.mubr.f32.mxu0 0.0
    %568 = vmatmul.mubr.f32.gmra.mrb[0].mxu0 %v467
    %v569 = vpop.f32.mrb[0].mxu0
    %v570 = vadd.f32 0.0, %v569
    %v571 = vpop.f32.mrb[0].mxu0
    %572 = vmatprep.mubr.f32.mxu0 0.0
    %573 = vmatmul.mubr.f32.gmra.mrb[0].mxu0 %v470
    %v574 = vpop.f32.mrb[0].mxu0
    %v575 = vadd.f32 0.0, %v574
    %v576 = vpop.f32.mrb[0].mxu0
    %577 = vmatprep.mubr.f32.mxu0 0.0
    %578 = vmatmul.mubr.f32.gmra.mrb[0].mxu0 %v473
    %v579 = vpop.f32.mrb[0].mxu0
    %v580 = vadd.f32 0.0, %v579
    %v581 = vpop.f32.mrb[0].mxu0
    %582 = vmatprep.mubr.f32.mxu0 0.0
    %583 = vmatmul.mubr.f32.gmra.mrb[0].mxu0 %v476
    %v584 = vpop.f32.mrb[0].mxu0
    %v585 = vadd.f32 0.0, %v584
    %v586 = vpop.f32.mrb[0].mxu0
    %587 = vdwg.mxu0
    %v588 = vadd.f32 %v394, %v545
    %v589 = vadd.f32 %v399, %v550
    %v590 = vadd.f32 %v404, %v555
    %v591 = vadd.f32 %v409, %v560
    %v592 = vadd.f32 %v414, %v565
    %v593 = vadd.f32 %v419, %v570
    %v594 = vadd.f32 %v424, %v575
    %v595 = vadd.f32 %v429, %v580
    %v596 = vadd.f32 %v434, %v585
    %v597 = vlaneseq
    %v598 = vshrl.u32 %v597, 7
    %v599 = vsub.s32 0, %v598
    %v600 = vrot.slane %v99, %v599
    %v601 = vmul.f32 %v588, %v600
    %v602 = vmul.f32 %v589, %v600
    %v603 = vmul.f32 %v590, %v600
    %v604 = vmul.f32 %v591, %v600
    %v605 = vmul.f32 %v592, %v600
    %v606 = vmul.f32 %v593, %v600
    %v607 = vmul.f32 %v594, %v600
    %v608 = vmul.f32 %v595, %v600
    %v609 = vmul.f32 %v596, %v600
    %v610 = vlaneseq
    %v611 = vshrl.u32 %v610, 7
    %v612 = vsub.s32 0, %v611
    %v613 = vrot.slane %v100, %v612
    %v614 = vadd.f32 %v601, %v613
    %v615 = vadd.f32 %v602, %v613
    %v616 = vadd.f32 %v603, %v613
    %v617 = vadd.f32 %v604, %v613
    %v618 = vadd.f32 %v605, %v613
    %v619 = vadd.f32 %v606, %v613
    %v620 = vadd.f32 %v607, %v613
    %v621 = vadd.f32 %v608, %v613
    %v622 = vadd.f32 %v609, %v613
    %s623 = scalar_lea.vmem [#allocation10], 32
    %v624 = vld [vmem:[%s623] sm:$0xff]
    %v625 = vld [vmem:[%s623 + $0x8] sm:$0xff]
    %v626 = vld [vmem:[%s623 + $0x10] sm:$0xff]
    %v627 = vld [vmem:[%s623 + $0x18] sm:$0xff]
    %s628 = scalar_lea.vmem [#allocation10], 160
    %v629 = vld [vmem:[%s628] sm:$0xff]
    %v630 = vld [vmem:[%s628 + $0x8] sm:$0xff]
    %v631 = vld [vmem:[%s628 + $0x10] sm:$0xff]
    %v632 = vld [vmem:[%s628 + $0x18] sm:$0xff]
    %633 = vmatprep.subr.mxu0 0.0
    %634 = vmatpush1.msra.mxu0 %v629
    %635 = vmatprep.subr.mxu0 0.0
    %636 = vmatpush1.msra.mxu0 %v630
    %637 = vmatprep.subr.mxu0 0.0
    %638 = vmatpush1.msra.mxu0 %v631
    %639 = vmatprep.subr.mxu0 0.0
    %640 = vmatpush1.msra.mxu0 %v632
    %641 = vmatprep.subr.mxu0 0.0
    %642 = vmatpush1.msra.mxu0 0.0
    %643 = vmatprep.subr.mxu0 0.0
    %644 = vmatpush1.msra.mxu0 0.0
    %645 = vmatprep.subr.mxu0 0.0
    %646 = vmatpush1.msra.mxu0 0.0
    %647 = vmatprep.subr.mxu0 0.0
    %648 = vmatpush1.msra.mxu0 0.0
    %649 = vmatprep.subr.mxu0 0.0
    %650 = vmatpush1.msra.mxu0 0.0
    %651 = vmatprep.subr.mxu0 0.0
    %652 = vmatpush1.msra.mxu0 0.0
    %653 = vmatprep.subr.mxu0 0.0
    %654 = vmatpush1.msra.mxu0 0.0
    %655 = vmatprep.subr.mxu0 0.0
    %656 = vmatpush1.msra.mxu0 0.0
    %657 = vmatprep.subr.mxu0 0.0
    %658 = vmatpush1.msra.mxu0 0.0
    %659 = vmatprep.subr.mxu0 0.0
    %660 = vmatpush1.msra.mxu0 0.0
    %661 = vmatprep.subr.mxu0 0.0
    %662 = vmatpush1.msra.mxu0 0.0
    %663 = vmatprep.subr.mxu0 0.0
    %664 = vmatpush1.msra.mxu0 0.0
    %665 = vmatprep.subr.mxu0 0.0
    %666 = vmatpush1.msra.mxu0 0.0
    %667 = vmatprep.subr.mxu0 0.0
    %668 = vmatpush1.msra.mxu0 0.0
    %669 = vmatprep.subr.mxu0 0.0
    %670 = vmatpush1.msra.mxu0 0.0
    %671 = vmatprep.subr.mxu0 0.0
    %672 = vmatpush1.msra.mxu0 0.0
    %673 = vmatprep.subr.mxu0 0.0
    %674 = vmatpush1.msra.mxu0 0.0
    %675 = vmatprep.subr.mxu0 0.0
    %676 = vmatpush1.msra.mxu0 0.0
    %677 = vmatprep.subr.mxu0 0.0
    %678 = vmatpush1.msra.mxu0 0.0
    %679 = vmatprep.subr.mxu0 0.0
    %680 = vmatpush1.msra.mxu0 0.0
    %681 = vmatprep.subr.mxu0 0.0
    %682 = vmatpush1.msra.mxu0 0.0
    %683 = vmatprep.subr.mxu0 0.0
    %684 = vmatpush1.msra.mxu0 0.0
    %685 = vmatprep.subr.mxu0 0.0
    %686 = vmatpush1.msra.mxu0 0.0
    %687 = vmatprep.subr.mxu0 0.0
    %688 = vmatpush1.msra.mxu0 0.0
    %689 = vmatprep.subr.mxu0 0.0
    %690 = vmatpush1.msra.mxu0 0.0
    %691 = vmatprep.subr.mxu0 0.0
    %692 = vmatpush1.msra.mxu0 0.0
    %693 = vmatprep.subr.mxu0 0.0
    %694 = vmatpush1.msra.mxu0 0.0
    %695 = vmatprep.subr.mxu0 0.0
    %696 = vmatpush1.msra.mxu0 0.0
    %697 = vmatprep.mubr.f32.mxu0 0.0
    %698 = vmatmul.mubr.f32.gmra.mrb[0].mxu0 %v164
    %v699 = vpop.f32.mrb[0].mxu0
    %v700 = vadd.f32 0.0, %v699
    %v701 = vpop.f32.mrb[0].mxu0
    %702 = vmatprep.mubr.f32.mxu0 0.0
    %703 = vmatmul.mubr.f32.gmra.mrb[0].mxu0 %v167
    %v704 = vpop.f32.mrb[0].mxu0
    %v705 = vadd.f32 0.0, %v704
    %v706 = vpop.f32.mrb[0].mxu0
    %707 = vmatprep.mubr.f32.mxu0 0.0
    %708 = vmatmul.mubr.f32.gmra.mrb[0].mxu0 %v170
    %v709 = vpop.f32.mrb[0].mxu0
    %v710 = vadd.f32 0.0, %v709
    %v711 = vpop.f32.mrb[0].mxu0
    %712 = vmatprep.mubr.f32.mxu0 0.0
    %713 = vmatmul.mubr.f32.gmra.mrb[0].mxu0 %v173
    %v714 = vpop.f32.mrb[0].mxu0
    %v715 = vadd.f32 0.0, %v714
    %v716 = vpop.f32.mrb[0].mxu0
    %717 = vmatprep.mubr.f32.mxu0 0.0
    %718 = vmatmul.mubr.f32.gmra.mrb[0].mxu0 %v176
    %v719 = vpop.f32.mrb[0].mxu0
    %v720 = vadd.f32 0.0, %v719
    %v721 = vpop.f32.mrb[0].mxu0
    %722 = vmatprep.mubr.f32.mxu0 0.0
    %723 = vmatmul.mubr.f32.gmra.mrb[0].mxu0 %v179
    %v724 = vpop.f32.mrb[0].mxu0
    %v725 = vadd.f32 0.0, %v724
    %v726 = vpop.f32.mrb[0].mxu0
    %727 = vmatprep.mubr.f32.mxu0 0.0
    %728 = vmatmul.mubr.f32.gmra.mrb[0].mxu0 %v182
    %v729 = vpop.f32.mrb[0].mxu0
    %v730 = vadd.f32 0.0, %v729
    %v731 = vpop.f32.mrb[0].mxu0
    %732 = vmatprep.mubr.f32.mxu0 0.0
    %733 = vmatmul.mubr.f32.gmra.mrb[0].mxu0 %v185
    %v734 = vpop.f32.mrb[0].mxu0
    %v735 = vadd.f32 0.0, %v734
    %v736 = vpop.f32.mrb[0].mxu0
    %737 = vmatprep.mubr.f32.mxu0 0.0
    %738 = vmatmul.mubr.f32.gmra.mrb[0].mxu0 %v188
    %v739 = vpop.f32.mrb[0].mxu0
    %v740 = vadd.f32 0.0, %v739
    %v741 = vpop.f32.mrb[0].mxu0
    %742 = vdwg.mxu0
    %743 = vmatprep.subr.mxu0 0.0
    %744 = vmatpush1.msra.mxu0 %v624
    %745 = vmatprep.subr.mxu0 0.0
    %746 = vmatpush1.msra.mxu0 %v625
    %747 = vmatprep.subr.mxu0 0.0
    %748 = vmatpush1.msra.mxu0 %v626
    %749 = vmatprep.subr.mxu0 0.0
    %750 = vmatpush1.msra.mxu0 %v627
    %751 = vmatprep.subr.mxu0 0.0
    %752 = vmatpush1.msra.mxu0 0.0
    %753 = vmatprep.subr.mxu0 0.0
    %754 = vmatpush1.msra.mxu0 0.0
    %755 = vmatprep.subr.mxu0 0.0
    %756 = vmatpush1.msra.mxu0 0.0
    %757 = vmatprep.subr.mxu0 0.0
    %758 = vmatpush1.msra.mxu0 0.0
    %759 = vmatprep.subr.mxu0 0.0
    %760 = vmatpush1.msra.mxu0 0.0
    %761 = vmatprep.subr.mxu0 0.0
    %762 = vmatpush1.msra.mxu0 0.0
    %763 = vmatprep.subr.mxu0 0.0
    %764 = vmatpush1.msra.mxu0 0.0
    %765 = vmatprep.subr.mxu0 0.0
    %766 = vmatpush1.msra.mxu0 0.0
    %767 = vmatprep.subr.mxu0 0.0
    %768 = vmatpush1.msra.mxu0 0.0
    %769 = vmatprep.subr.mxu0 0.0
    %770 = vmatpush1.msra.mxu0 0.0
    %771 = vmatprep.subr.mxu0 0.0
    %772 = vmatpush1.msra.mxu0 0.0
    %773 = vmatprep.subr.mxu0 0.0
    %774 = vmatpush1.msra.mxu0 0.0
    %775 = vmatprep.subr.mxu0 0.0
    %776 = vmatpush1.msra.mxu0 0.0
    %777 = vmatprep.subr.mxu0 0.0
    %778 = vmatpush1.msra.mxu0 0.0
    %779 = vmatprep.subr.mxu0 0.0
    %780 = vmatpush1.msra.mxu0 0.0
    %781 = vmatprep.subr.mxu0 0.0
    %782 = vmatpush1.msra.mxu0 0.0
    %783 = vmatprep.subr.mxu0 0.0
    %784 = vmatpush1.msra.mxu0 0.0
    %785 = vmatprep.subr.mxu0 0.0
    %786 = vmatpush1.msra.mxu0 0.0
    %787 = vmatprep.subr.mxu0 0.0
    %788 = vmatpush1.msra.mxu0 0.0
    %789 = vmatprep.subr.mxu0 0.0
    %790 = vmatpush1.msra.mxu0 0.0
    %791 = vmatprep.subr.mxu0 0.0
    %792 = vmatpush1.msra.mxu0 0.0
    %793 = vmatprep.subr.mxu0 0.0
    %794 = vmatpush1.msra.mxu0 0.0
    %795 = vmatprep.subr.mxu0 0.0
    %796 = vmatpush1.msra.mxu0 0.0
    %797 = vmatprep.subr.mxu0 0.0
    %798 = vmatpush1.msra.mxu0 0.0
    %799 = vmatprep.subr.mxu0 0.0
    %800 = vmatpush1.msra.mxu0 0.0
    %801 = vmatprep.subr.mxu0 0.0
    %802 = vmatpush1.msra.mxu0 0.0
    %803 = vmatprep.subr.mxu0 0.0
    %804 = vmatpush1.msra.mxu0 0.0
    %805 = vmatprep.subr.mxu0 0.0
    %806 = vmatpush1.msra.mxu0 0.0
    %807 = vmatprep.mubr.f32.mxu0 0.0
    %808 = vmatmul.mubr.f32.gmra.mrb[0].mxu0 %v301
    %v809 = vpop.f32.mrb[0].mxu0
    %v810 = vadd.f32 %v700, %v809
    %v811 = vpop.f32.mrb[0].mxu0
    %812 = vmatprep.mubr.f32.mxu0 0.0
    %813 = vmatmul.mubr.f32.gmra.mrb[0].mxu0 %v304
    %v814 = vpop.f32.mrb[0].mxu0
    %v815 = vadd.f32 %v705, %v814
    %v816 = vpop.f32.mrb[0].mxu0
    %817 = vmatprep.mubr.f32.mxu0 0.0
    %818 = vmatmul.mubr.f32.gmra.mrb[0].mxu0 %v307
    %v819 = vpop.f32.mrb[0].mxu0
    %v820 = vadd.f32 %v710, %v819
    %v821 = vpop.f32.mrb[0].mxu0
    %822 = vmatprep.mubr.f32.mxu0 0.0
    %823 = vmatmul.mubr.f32.gmra.mrb[0].mxu0 %v310
    %v824 = vpop.f32.mrb[0].mxu0
    %v825 = vadd.f32 %v715, %v824
    %v826 = vpop.f32.mrb[0].mxu0
    %827 = vmatprep.mubr.f32.mxu0 0.0
    %828 = vmatmul.mubr.f32.gmra.mrb[0].mxu0 %v313
    %v829 = vpop.f32.mrb[0].mxu0
    %v830 = vadd.f32 %v720, %v829
    %v831 = vpop.f32.mrb[0].mxu0
    %832 = vmatprep.mubr.f32.mxu0 0.0
    %833 = vmatmul.mubr.f32.gmra.mrb[0].mxu0 %v316
    %v834 = vpop.f32.mrb[0].mxu0
    %v835 = vadd.f32 %v725, %v834
    %v836 = vpop.f32.mrb[0].mxu0
    %837 = vmatprep.mubr.f32.mxu0 0.0
    %838 = vmatmul.mubr.f32.gmra.mrb[0].mxu0 %v319
    %v839 = vpop.f32.mrb[0].mxu0
    %v840 = vadd.f32 %v730, %v839
    %v841 = vpop.f32.mrb[0].mxu0
    %842 = vmatprep.mubr.f32.mxu0 0.0
    %843 = vmatmul.mubr.f32.gmra.mrb[0].mxu0 %v322
    %v844 = vpop.f32.mrb[0].mxu0
    %v845 = vadd.f32 %v735, %v844
    %v846 = vpop.f32.mrb[0].mxu0
    %847 = vmatprep.mubr.f32.mxu0 0.0
    %848 = vmatmul.mubr.f32.gmra.mrb[0].mxu0 %v325
    %v849 = vpop.f32.mrb[0].mxu0
    %v850 = vadd.f32 %v740, %v849
    %v851 = vpop.f32.mrb[0].mxu0
    %852 = vdwg.mxu0
    %s853 = scalar_lea.vmem [#allocation10], 288
    %v854 = vld [vmem:[%s853] sm:$0xff]
    %v855 = vld [vmem:[%s853 + $0x8] sm:$0xff]
    %v856 = vld [vmem:[%s853 + $0x10] sm:$0xff]
    %v857 = vld [vmem:[%s853 + $0x18] sm:$0xff]
    %858 = vmatprep.subr.mxu0 0.0
    %859 = vmatpush1.msra.mxu0 %v854
    %860 = vmatprep.subr.mxu0 0.0
    %861 = vmatpush1.msra.mxu0 %v855
    %862 = vmatprep.subr.mxu0 0.0
    %863 = vmatpush1.msra.mxu0 %v856
    %864 = vmatprep.subr.mxu0 0.0
    %865 = vmatpush1.msra.mxu0 %v857
    %866 = vmatprep.subr.mxu0 0.0
    %867 = vmatpush1.msra.mxu0 0.0
    %868 = vmatprep.subr.mxu0 0.0
    %869 = vmatpush1.msra.mxu0 0.0
    %870 = vmatprep.subr.mxu0 0.0
    %871 = vmatpush1.msra.mxu0 0.0
    %872 = vmatprep.subr.mxu0 0.0
    %873 = vmatpush1.msra.mxu0 0.0
    %874 = vmatprep.subr.mxu0 0.0
    %875 = vmatpush1.msra.mxu0 0.0
    %876 = vmatprep.subr.mxu0 0.0
    %877 = vmatpush1.msra.mxu0 0.0
    %878 = vmatprep.subr.mxu0 0.0
    %879 = vmatpush1.msra.mxu0 0.0
    %880 = vmatprep.subr.mxu0 0.0
    %881 = vmatpush1.msra.mxu0 0.0
    %882 = vmatprep.subr.mxu0 0.0
    %883 = vmatpush1.msra.mxu0 0.0
    %884 = vmatprep.subr.mxu0 0.0
    %885 = vmatpush1.msra.mxu0 0.0
    %886 = vmatprep.subr.mxu0 0.0
    %887 = vmatpush1.msra.mxu0 0.0
    %888 = vmatprep.subr.mxu0 0.0
    %889 = vmatpush1.msra.mxu0 0.0
    %890 = vmatprep.subr.mxu0 0.0
    %891 = vmatpush1.msra.mxu0 0.0
    %892 = vmatprep.subr.mxu0 0.0
    %893 = vmatpush1.msra.mxu0 0.0
    %894 = vmatprep.subr.mxu0 0.0
    %895 = vmatpush1.msra.mxu0 0.0
    %896 = vmatprep.subr.mxu0 0.0
    %897 = vmatpush1.msra.mxu0 0.0
    %898 = vmatprep.subr.mxu0 0.0
    %899 = vmatpush1.msra.mxu0 0.0
    %900 = vmatprep.subr.mxu0 0.0
    %901 = vmatpush1.msra.mxu0 0.0
    %902 = vmatprep.subr.mxu0 0.0
    %903 = vmatpush1.msra.mxu0 0.0
    %904 = vmatprep.subr.mxu0 0.0
    %905 = vmatpush1.msra.mxu0 0.0
    %906 = vmatprep.subr.mxu0 0.0
    %907 = vmatpush1.msra.mxu0 0.0
    %908 = vmatprep.subr.mxu0 0.0
    %909 = vmatpush1.msra.mxu0 0.0
    %910 = vmatprep.subr.mxu0 0.0
    %911 = vmatpush1.msra.mxu0 0.0
    %912 = vmatprep.subr.mxu0 0.0
    %913 = vmatpush1.msra.mxu0 0.0
    %914 = vmatprep.subr.mxu0 0.0
    %915 = vmatpush1.msra.mxu0 0.0
    %916 = vmatprep.subr.mxu0 0.0
    %917 = vmatpush1.msra.mxu0 0.0
    %918 = vmatprep.subr.mxu0 0.0
    %919 = vmatpush1.msra.mxu0 0.0
    %920 = vmatprep.subr.mxu0 0.0
    %921 = vmatpush1.msra.mxu0 0.0
    %922 = vmatprep.mubr.f32.mxu0 0.0
    %923 = vmatmul.mubr.f32.gmra.mrb[0].mxu0 %v452
    %v924 = vpop.f32.mrb[0].mxu0
    %v925 = vadd.f32 0.0, %v924
    %v926 = vpop.f32.mrb[0].mxu0
    %927 = vmatprep.mubr.f32.mxu0 0.0
    %928 = vmatmul.mubr.f32.gmra.mrb[0].mxu0 %v455
    %v929 = vpop.f32.mrb[0].mxu0
    %v930 = vadd.f32 0.0, %v929
    %v931 = vpop.f32.mrb[0].mxu0
    %932 = vmatprep.mubr.f32.mxu0 0.0
    %933 = vmatmul.mubr.f32.gmra.mrb[0].mxu0 %v458
    %v934 = vpop.f32.mrb[0].mxu0
    %v935 = vadd.f32 0.0, %v934
    %v936 = vpop.f32.mrb[0].mxu0
    %937 = vmatprep.mubr.f32.mxu0 0.0
    %938 = vmatmul.mubr.f32.gmra.mrb[0].mxu0 %v461
    %v939 = vpop.f32.mrb[0].mxu0
    %v940 = vadd.f32 0.0, %v939
    %v941 = vpop.f32.mrb[0].mxu0
    %942 = vmatprep.mubr.f32.mxu0 0.0
    %943 = vmatmul.mubr.f32.gmra.mrb[0].mxu0 %v464
    %v944 = vpop.f32.mrb[0].mxu0
    %v945 = vadd.f32 0.0, %v944
    %v946 = vpop.f32.mrb[0].mxu0
    %947 = vmatprep.mubr.f32.mxu0 0.0
    %948 = vmatmul.mubr.f32.gmra.mrb[0].mxu0 %v467
    %v949 = vpop.f32.mrb[0].mxu0
    %v950 = vadd.f32 0.0, %v949
    %v951 = vpop.f32.mrb[0].mxu0
    %952 = vmatprep.mubr.f32.mxu0 0.0
    %953 = vmatmul.mubr.f32.gmra.mrb[0].mxu0 %v470
    %v954 = vpop.f32.mrb[0].mxu0
    %v955 = vadd.f32 0.0, %v954
    %v956 = vpop.f32.mrb[0].mxu0
    %957 = vmatprep.mubr.f32.mxu0 0.0
    %958 = vmatmul.mubr.f32.gmra.mrb[0].mxu0 %v473
    %v959 = vpop.f32.mrb[0].mxu0
    %v960 = vadd.f32 0.0, %v959
    %v961 = vpop.f32.mrb[0].mxu0
    %962 = vmatprep.mubr.f32.mxu0 0.0
    %963 = vmatmul.mubr.f32.gmra.mrb[0].mxu0 %v476
    %v964 = vpop.f32.mrb[0].mxu0
    %v965 = vadd.f32 0.0, %v964
    %v966 = vpop.f32.mrb[0].mxu0
    %967 = vdwg.mxu0
    %v968 = vadd.f32 %v810, %v925
    %v969 = vadd.f32 %v815, %v930
    %v970 = vadd.f32 %v820, %v935
    %v971 = vadd.f32 %v825, %v940
    %v972 = vadd.f32 %v830, %v945
    %v973 = vadd.f32 %v835, %v950
    %v974 = vadd.f32 %v840, %v955
    %v975 = vadd.f32 %v845, %v960
    %v976 = vadd.f32 %v850, %v965
    %v977 = vmul.f32 %v968, %v600
    %v978 = vmul.f32 %v969, %v600
    %v979 = vmul.f32 %v970, %v600
    %v980 = vmul.f32 %v971, %v600
    %v981 = vmul.f32 %v972, %v600
    %v982 = vmul.f32 %v973, %v600
    %v983 = vmul.f32 %v974, %v600
    %v984 = vmul.f32 %v975, %v600
    %v985 = vmul.f32 %v976, %v600
    %v986 = vadd.f32 %v977, %v613
    %v987 = vadd.f32 %v978, %v613
    %v988 = vadd.f32 %v979, %v613
    %v989 = vadd.f32 %v980, %v613
    %v990 = vadd.f32 %v981, %v613
    %v991 = vadd.f32 %v982, %v613
    %v992 = vadd.f32 %v983, %v613
    %v993 = vadd.f32 %v984, %v613
    %v994 = vadd.f32 %v985, %v613
    %v995 = vmax.f32 %v614, %v986
    %v996 = vmax.f32 %v615, %v987
    %v997 = vmax.f32 %v616, %v988
    %v998 = vmax.f32 %v617, %v989
    %v999 = vmax.f32 %v618, %v990
    %v1000 = vmax.f32 %v619, %v991
    %v1001 = vmax.f32 %v620, %v992
    %v1002 = vmax.f32 %v621, %v993
    %v1003 = vmax.f32 %v622, %v994
    %s1004 = scalar_lea.vmem [#allocation10], 64
    %v1005 = vld [vmem:[%s1004] sm:$0xff]
    %v1006 = vld [vmem:[%s1004 + $0x8] sm:$0xff]
    %v1007 = vld [vmem:[%s1004 + $0x10] sm:$0xff]
    %v1008 = vld [vmem:[%s1004 + $0x18] sm:$0xff]
    %s1009 = scalar_lea.vmem [#allocation10], 192
    %v1010 = vld [vmem:[%s1009] sm:$0xff]
    %v1011 = vld [vmem:[%s1009 + $0x8] sm:$0xff]
    %v1012 = vld [vmem:[%s1009 + $0x10] sm:$0xff]
    %v1013 = vld [vmem:[%s1009 + $0x18] sm:$0xff]
    %1014 = vmatprep.subr.mxu0 0.0
    %1015 = vmatpush1.msra.mxu0 %v1010
    %1016 = vmatprep.subr.mxu0 0.0
    %1017 = vmatpush1.msra.mxu0 %v1011
    %1018 = vmatprep.subr.mxu0 0.0
    %1019 = vmatpush1.msra.mxu0 %v1012
    %1020 = vmatprep.subr.mxu0 0.0
    %1021 = vmatpush1.msra.mxu0 %v1013
    %1022 = vmatprep.subr.mxu0 0.0
    %1023 = vmatpush1.msra.mxu0 0.0
    %1024 = vmatprep.subr.mxu0 0.0
    %1025 = vmatpush1.msra.mxu0 0.0
    %1026 = vmatprep.subr.mxu0 0.0
    %1027 = vmatpush1.msra.mxu0 0.0
    %1028 = vmatprep.subr.mxu0 0.0
    %1029 = vmatpush1.msra.mxu0 0.0
    %1030 = vmatprep.subr.mxu0 0.0
    %1031 = vmatpush1.msra.mxu0 0.0
    %1032 = vmatprep.subr.mxu0 0.0
    %1033 = vmatpush1.msra.mxu0 0.0
    %1034 = vmatprep.subr.mxu0 0.0
    %1035 = vmatpush1.msra.mxu0 0.0
    %1036 = vmatprep.subr.mxu0 0.0
    %1037 = vmatpush1.msra.mxu0 0.0
    %1038 = vmatprep.subr.mxu0 0.0
    %1039 = vmatpush1.msra.mxu0 0.0
    %1040 = vmatprep.subr.mxu0 0.0
    %1041 = vmatpush1.msra.mxu0 0.0
    %1042 = vmatprep.subr.mxu0 0.0
    %1043 = vmatpush1.msra.mxu0 0.0
    %1044 = vmatprep.subr.mxu0 0.0
    %1045 = vmatpush1.msra.mxu0 0.0
    %1046 = vmatprep.subr.mxu0 0.0
    %1047 = vmatpush1.msra.mxu0 0.0
    %1048 = vmatprep.subr.mxu0 0.0
    %1049 = vmatpush1.msra.mxu0 0.0
    %1050 = vmatprep.subr.mxu0 0.0
    %1051 = vmatpush1.msra.mxu0 0.0
    %1052 = vmatprep.subr.mxu0 0.0
    %1053 = vmatpush1.msra.mxu0 0.0
    %1054 = vmatprep.subr.mxu0 0.0
    %1055 = vmatpush1.msra.mxu0 0.0
    %1056 = vmatprep.subr.mxu0 0.0
    %1057 = vmatpush1.msra.mxu0 0.0
    %1058 = vmatprep.subr.mxu0 0.0
    %1059 = vmatpush1.msra.mxu0 0.0
    %1060 = vmatprep.subr.mxu0 0.0
    %1061 = vmatpush1.msra.mxu0 0.0
    %1062 = vmatprep.subr.mxu0 0.0
    %1063 = vmatpush1.msra.mxu0 0.0
    %1064 = vmatprep.subr.mxu0 0.0
    %1065 = vmatpush1.msra.mxu0 0.0
    %1066 = vmatprep.subr.mxu0 0.0
    %1067 = vmatpush1.msra.mxu0 0.0
    %1068 = vmatprep.subr.mxu0 0.0
    %1069 = vmatpush1.msra.mxu0 0.0
    %1070 = vmatprep.subr.mxu0 0.0
    %1071 = vmatpush1.msra.mxu0 0.0
    %1072 = vmatprep.subr.mxu0 0.0
    %1073 = vmatpush1.msra.mxu0 0.0
    %1074 = vmatprep.subr.mxu0 0.0
    %1075 = vmatpush1.msra.mxu0 0.0
    %1076 = vmatprep.subr.mxu0 0.0
    %1077 = vmatpush1.msra.mxu0 0.0
    %1078 = vmatprep.mubr.f32.mxu0 0.0
    %1079 = vmatmul.mubr.f32.gmra.mrb[0].mxu0 %v164
    %v1080 = vpop.f32.mrb[0].mxu0
    %v1081 = vadd.f32 0.0, %v1080
    %v1082 = vpop.f32.mrb[0].mxu0
    %1083 = vmatprep.mubr.f32.mxu0 0.0
    %1084 = vmatmul.mubr.f32.gmra.mrb[0].mxu0 %v167
    %v1085 = vpop.f32.mrb[0].mxu0
    %v1086 = vadd.f32 0.0, %v1085
    %v1087 = vpop.f32.mrb[0].mxu0
    %1088 = vmatprep.mubr.f32.mxu0 0.0
    %1089 = vmatmul.mubr.f32.gmra.mrb[0].mxu0 %v170
    %v1090 = vpop.f32.mrb[0].mxu0
    %v1091 = vadd.f32 0.0, %v1090
    %v1092 = vpop.f32.mrb[0].mxu0
    %1093 = vmatprep.mubr.f32.mxu0 0.0
    %1094 = vmatmul.mubr.f32.gmra.mrb[0].mxu0 %v173
    %v1095 = vpop.f32.mrb[0].mxu0
    %v1096 = vadd.f32 0.0, %v1095
    %v1097 = vpop.f32.mrb[0].mxu0
    %1098 = vmatprep.mubr.f32.mxu0 0.0
    %1099 = vmatmul.mubr.f32.gmra.mrb[0].mxu0 %v176
    %v1100 = vpop.f32.mrb[0].mxu0
    %v1101 = vadd.f32 0.0, %v1100
    %v1102 = vpop.f32.mrb[0].mxu0
    %1103 = vmatprep.mubr.f32.mxu0 0.0
    %1104 = vmatmul.mubr.f32.gmra.mrb[0].mxu0 %v179
    %v1105 = vpop.f32.mrb[0].mxu0
    %v1106 = vadd.f32 0.0, %v1105
    %v1107 = vpop.f32.mrb[0].mxu0
    %1108 = vmatprep.mubr.f32.mxu0 0.0
    %1109 = vmatmul.mubr.f32.gmra.mrb[0].mxu0 %v182
    %v1110 = vpop.f32.mrb[0].mxu0
    %v1111 = vadd.f32 0.0, %v1110
    %v1112 = vpop.f32.mrb[0].mxu0
    %1113 = vmatprep.mubr.f32.mxu0 0.0
    %1114 = vmatmul.mubr.f32.gmra.mrb[0].mxu0 %v185
    %v1115 = vpop.f32.mrb[0].mxu0
    %v1116 = vadd.f32 0.0, %v1115
    %v1117 = vpop.f32.mrb[0].mxu0
    %1118 = vmatprep.mubr.f32.mxu0 0.0
    %1119 = vmatmul.mubr.f32.gmra.mrb[0].mxu0 %v188
    %v1120 = vpop.f32.mrb[0].mxu0
    %v1121 = vadd.f32 0.0, %v1120
    %v1122 = vpop.f32.mrb[0].mxu0
    %1123 = vdwg.mxu0
    %1124 = vmatprep.subr.mxu0 0.0
    %1125 = vmatpush1.msra.mxu0 %v1005
    %1126 = vmatprep.subr.mxu0 0.0
    %1127 = vmatpush1.msra.mxu0 %v1006
    %1128 = vmatprep.subr.mxu0 0.0
    %1129 = vmatpush1.msra.mxu0 %v1007
    %1130 = vmatprep.subr.mxu0 0.0
    %1131 = vmatpush1.msra.mxu0 %v1008
    %1132 = vmatprep.subr.mxu0 0.0
    %1133 = vmatpush1.msra.mxu0 0.0
    %1134 = vmatprep.subr.mxu0 0.0
    %1135 = vmatpush1.msra.mxu0 0.0
    %1136 = vmatprep.subr.mxu0 0.0
    %1137 = vmatpush1.msra.mxu0 0.0
    %1138 = vmatprep.subr.mxu0 0.0
    %1139 = vmatpush1.msra.mxu0 0.0
    %1140 = vmatprep.subr.mxu0 0.0
    %1141 = vmatpush1.msra.mxu0 0.0
    %1142 = vmatprep.subr.mxu0 0.0
    %1143 = vmatpush1.msra.mxu0 0.0
    %1144 = vmatprep.subr.mxu0 0.0
    %1145 = vmatpush1.msra.mxu0 0.0
    %1146 = vmatprep.subr.mxu0 0.0
    %1147 = vmatpush1.msra.mxu0 0.0
    %1148 = vmatprep.subr.mxu0 0.0
    %1149 = vmatpush1.msra.mxu0 0.0
    %1150 = vmatprep.subr.mxu0 0.0
    %1151 = vmatpush1.msra.mxu0 0.0
    %1152 = vmatprep.subr.mxu0 0.0
    %1153 = vmatpush1.msra.mxu0 0.0
    %1154 = vmatprep.subr.mxu0 0.0
    %1155 = vmatpush1.msra.mxu0 0.0
    %1156 = vmatprep.subr.mxu0 0.0
    %1157 = vmatpush1.msra.mxu0 0.0
    %1158 = vmatprep.subr.mxu0 0.0
    %1159 = vmatpush1.msra.mxu0 0.0
    %1160 = vmatprep.subr.mxu0 0.0
    %1161 = vmatpush1.msra.mxu0 0.0
    %1162 = vmatprep.subr.mxu0 0.0
    %1163 = vmatpush1.msra.mxu0 0.0
    %1164 = vmatprep.subr.mxu0 0.0
    %1165 = vmatpush1.msra.mxu0 0.0
    %1166 = vmatprep.subr.mxu0 0.0
    %1167 = vmatpush1.msra.mxu0 0.0
    %1168 = vmatprep.subr.mxu0 0.0
    %1169 = vmatpush1.msra.mxu0 0.0
    %1170 = vmatprep.subr.mxu0 0.0
    %1171 = vmatpush1.msra.mxu0 0.0
    %1172 = vmatprep.subr.mxu0 0.0
    %1173 = vmatpush1.msra.mxu0 0.0
    %1174 = vmatprep.subr.mxu0 0.0
    %1175 = vmatpush1.msra.mxu0 0.0
    %1176 = vmatprep.subr.mxu0 0.0
    %1177 = vmatpush1.msra.mxu0 0.0
    %1178 = vmatprep.subr.mxu0 0.0
    %1179 = vmatpush1.msra.mxu0 0.0
    %1180 = vmatprep.subr.mxu0 0.0
    %1181 = vmatpush1.msra.mxu0 0.0
    %1182 = vmatprep.subr.mxu0 0.0
    %1183 = vmatpush1.msra.mxu0 0.0
    %1184 = vmatprep.subr.mxu0 0.0
    %1185 = vmatpush1.msra.mxu0 0.0
    %1186 = vmatprep.subr.mxu0 0.0
    %1187 = vmatpush1.msra.mxu0 0.0
    %1188 = vmatprep.mubr.f32.mxu0 0.0
    %1189 = vmatmul.mubr.f32.gmra.mrb[0].mxu0 %v301
    %v1190 = vpop.f32.mrb[0].mxu0
    %v1191 = vadd.f32 %v1081, %v1190
    %v1192 = vpop.f32.mrb[0].mxu0
    %1193 = vmatprep.mubr.f32.mxu0 0.0
    %1194 = vmatmul.mubr.f32.gmra.mrb[0].mxu0 %v304
    %v1195 = vpop.f32.mrb[0].mxu0
    %v1196 = vadd.f32 %v1086, %v1195
    %v1197 = vpop.f32.mrb[0].mxu0
    %1198 = vmatprep.mubr.f32.mxu0 0.0
    %1199 = vmatmul.mubr.f32.gmra.mrb[0].mxu0 %v307
    %v1200 = vpop.f32.mrb[0].mxu0
    %v1201 = vadd.f32 %v1091, %v1200
    %v1202 = vpop.f32.mrb[0].mxu0
    %1203 = vmatprep.mubr.f32.mxu0 0.0
    %1204 = vmatmul.mubr.f32.gmra.mrb[0].mxu0 %v310
    %v1205 = vpop.f32.mrb[0].mxu0
    %v1206 = vadd.f32 %v1096, %v1205
    %v1207 = vpop.f32.mrb[0].mxu0
    %1208 = vmatprep.mubr.f32.mxu0 0.0
    %1209 = vmatmul.mubr.f32.gmra.mrb[0].mxu0 %v313
    %v1210 = vpop.f32.mrb[0].mxu0
    %v1211 = vadd.f32 %v1101, %v1210
    %v1212 = vpop.f32.mrb[0].mxu0
    %1213 = vmatprep.mubr.f32.mxu0 0.0
    %1214 = vmatmul.mubr.f32.gmra.mrb[0].mxu0 %v316
    %v1215 = vpop.f32.mrb[0].mxu0
    %v1216 = vadd.f32 %v1106, %v1215
    %v1217 = vpop.f32.mrb[0].mxu0
    %1218 = vmatprep.mubr.f32.mxu0 0.0
    %1219 = vmatmul.mubr.f32.gmra.mrb[0].mxu0 %v319
    %v1220 = vpop.f32.mrb[0].mxu0
    %v1221 = vadd.f32 %v1111, %v1220
    %v1222 = vpop.f32.mrb[0].mxu0
    %1223 = vmatprep.mubr.f32.mxu0 0.0
    %1224 = vmatmul.mubr.f32.gmra.mrb[0].mxu0 %v322
    %v1225 = vpop.f32.mrb[0].mxu0
    %v1226 = vadd.f32 %v1116, %v1225
    %v1227 = vpop.f32.mrb[0].mxu0
    %1228 = vmatprep.mubr.f32.mxu0 0.0
    %1229 = vmatmul.mubr.f32.gmra.mrb[0].mxu0 %v325
    %v1230 = vpop.f32.mrb[0].mxu0
    %v1231 = vadd.f32 %v1121, %v1230
    %v1232 = vpop.f32.mrb[0].mxu0
    %1233 = vdwg.mxu0
    %s1234 = scalar_lea.vmem [#allocation10], 320
    %v1235 = vld [vmem:[%s1234] sm:$0xff]
    %v1236 = vld [vmem:[%s1234 + $0x8] sm:$0xff]
    %v1237 = vld [vmem:[%s1234 + $0x10] sm:$0xff]
    %v1238 = vld [vmem:[%s1234 + $0x18] sm:$0xff]
    %1239 = vmatprep.subr.mxu0 0.0
    %1240 = vmatpush1.msra.mxu0 %v1235
    %1241 = vmatprep.subr.mxu0 0.0
    %1242 = vmatpush1.msra.mxu0 %v1236
    %1243 = vmatprep.subr.mxu0 0.0
    %1244 = vmatpush1.msra.mxu0 %v1237
    %1245 = vmatprep.subr.mxu0 0.0
    %1246 = vmatpush1.msra.mxu0 %v1238
    %1247 = vmatprep.subr.mxu0 0.0
    %1248 = vmatpush1.msra.mxu0 0.0
    %1249 = vmatprep.subr.mxu0 0.0
    %1250 = vmatpush1.msra.mxu0 0.0
    %1251 = vmatprep.subr.mxu0 0.0
    %1252 = vmatpush1.msra.mxu0 0.0
    %1253 = vmatprep.subr.mxu0 0.0
    %1254 = vmatpush1.msra.mxu0 0.0
    %1255 = vmatprep.subr.mxu0 0.0
    %1256 = vmatpush1.msra.mxu0 0.0
    %1257 = vmatprep.subr.mxu0 0.0
    %1258 = vmatpush1.msra.mxu0 0.0
    %1259 = vmatprep.subr.mxu0 0.0
    %1260 = vmatpush1.msra.mxu0 0.0
    %1261 = vmatprep.subr.mxu0 0.0
    %1262 = vmatpush1.msra.mxu0 0.0
    %1263 = vmatprep.subr.mxu0 0.0
    %1264 = vmatpush1.msra.mxu0 0.0
    %1265 = vmatprep.subr.mxu0 0.0
    %1266 = vmatpush1.msra.mxu0 0.0
    %1267 = vmatprep.subr.mxu0 0.0
    %1268 = vmatpush1.msra.mxu0 0.0
    %1269 = vmatprep.subr.mxu0 0.0
    %1270 = vmatpush1.msra.mxu0 0.0
    %1271 = vmatprep.subr.mxu0 0.0
    %1272 = vmatpush1.msra.mxu0 0.0
    %1273 = vmatprep.subr.mxu0 0.0
    %1274 = vmatpush1.msra.mxu0 0.0
    %1275 = vmatprep.subr.mxu0 0.0
    %1276 = vmatpush1.msra.mxu0 0.0
    %1277 = vmatprep.subr.mxu0 0.0
    %1278 = vmatpush1.msra.mxu0 0.0
    %1279 = vmatprep.subr.mxu0 0.0
    %1280 = vmatpush1.msra.mxu0 0.0
    %1281 = vmatprep.subr.mxu0 0.0
    %1282 = vmatpush1.msra.mxu0 0.0
    %1283 = vmatprep.subr.mxu0 0.0
    %1284 = vmatpush1.msra.mxu0 0.0
    %1285 = vmatprep.subr.mxu0 0.0
    %1286 = vmatpush1.msra.mxu0 0.0
    %1287 = vmatprep.subr.mxu0 0.0
    %1288 = vmatpush1.msra.mxu0 0.0
    %1289 = vmatprep.subr.mxu0 0.0
    %1290 = vmatpush1.msra.mxu0 0.0
    %1291 = vmatprep.subr.mxu0 0.0
    %1292 = vmatpush1.msra.mxu0 0.0
    %1293 = vmatprep.subr.mxu0 0.0
    %1294 = vmatpush1.msra.mxu0 0.0
    %1295 = vmatprep.subr.mxu0 0.0
    %1296 = vmatpush1.msra.mxu0 0.0
    %1297 = vmatprep.subr.mxu0 0.0
    %1298 = vmatpush1.msra.mxu0 0.0
    %1299 = vmatprep.subr.mxu0 0.0
    %1300 = vmatpush1.msra.mxu0 0.0
    %1301 = vmatprep.subr.mxu0 0.0
    %1302 = vmatpush1.msra.mxu0 0.0
    %1303 = vmatprep.mubr.f32.mxu0 0.0
    %1304 = vmatmul.mubr.f32.gmra.mrb[0].mxu0 %v452
    %v1305 = vpop.f32.mrb[0].mxu0
    %v1306 = vadd.f32 0.0, %v1305
    %v1307 = vpop.f32.mrb[0].mxu0
    %1308 = vmatprep.mubr.f32.mxu0 0.0
    %1309 = vmatmul.mubr.f32.gmra.mrb[0].mxu0 %v455
    %v1310 = vpop.f32.mrb[0].mxu0
    %v1311 = vadd.f32 0.0, %v1310
    %v1312 = vpop.f32.mrb[0].mxu0
    %1313 = vmatprep.mubr.f32.mxu0 0.0
    %1314 = vmatmul.mubr.f32.gmra.mrb[0].mxu0 %v458
    %v1315 = vpop.f32.mrb[0].mxu0
    %v1316 = vadd.f32 0.0, %v1315
    %v1317 = vpop.f32.mrb[0].mxu0
    %1318 = vmatprep.mubr.f32.mxu0 0.0
    %1319 = vmatmul.mubr.f32.gmra.mrb[0].mxu0 %v461
    %v1320 = vpop.f32.mrb[0].mxu0
    %v1321 = vadd.f32 0.0, %v1320
    %v1322 = vpop.f32.mrb[0].mxu0
    %1323 = vmatprep.mubr.f32.mxu0 0.0
    %1324 = vmatmul.mubr.f32.gmra.mrb[0].mxu0 %v464
    %v1325 = vpop.f32.mrb[0].mxu0
    %v1326 = vadd.f32 0.0, %v1325
    %v1327 = vpop.f32.mrb[0].mxu0
    %1328 = vmatprep.mubr.f32.mxu0 0.0
    %1329 = vmatmul.mubr.f32.gmra.mrb[0].mxu0 %v467
    %v1330 = vpop.f32.mrb[0].mxu0
    %v1331 = vadd.f32 0.0, %v1330
    %v1332 = vpop.f32.mrb[0].mxu0
    %1333 = vmatprep.mubr.f32.mxu0 0.0
    %1334 = vmatmul.mubr.f32.gmra.mrb[0].mxu0 %v470
    %v1335 = vpop.f32.mrb[0].mxu0
    %v1336 = vadd.f32 0.0, %v1335
    %v1337 = vpop.f32.mrb[0].mxu0
    %1338 = vmatprep.mubr.f32.mxu0 0.0
    %1339 = vmatmul.mubr.f32.gmra.mrb[0].mxu0 %v473
    %v1340 = vpop.f32.mrb[0].mxu0
    %v1341 = vadd.f32 0.0, %v1340
    %v1342 = vpop.f32.mrb[0].mxu0
    %1343 = vmatprep.mubr.f32.mxu0 0.0
    %1344 = vmatmul.mubr.f32.gmra.mrb[0].mxu0 %v476
    %v1345 = vpop.f32.mrb[0].mxu0
    %v1346 = vadd.f32 0.0, %v1345
    %v1347 = vpop.f32.mrb[0].mxu0
    %1348 = vdwg.mxu0
    %v1349 = vadd.f32 %v1191, %v1306
    %v1350 = vadd.f32 %v1196, %v1311
    %v1351 = vadd.f32 %v1201, %v1316
    %v1352 = vadd.f32 %v1206, %v1321
    %v1353 = vadd.f32 %v1211, %v1326
    %v1354 = vadd.f32 %v1216, %v1331
    %v1355 = vadd.f32 %v1221, %v1336
    %v1356 = vadd.f32 %v1226, %v1341
    %v1357 = vadd.f32 %v1231, %v1346
    %v1358 = vmul.f32 %v1349, %v600
    %v1359 = vmul.f32 %v1350, %v600
    %v1360 = vmul.f32 %v1351, %v600
    %v1361 = vmul.f32 %v1352, %v600
    %v1362 = vmul.f32 %v1353, %v600
    %v1363 = vmul.f32 %v1354, %v600
    %v1364 = vmul.f32 %v1355, %v600
    %v1365 = vmul.f32 %v1356, %v600
    %v1366 = vmul.f32 %v1357, %v600
    %v1367 = vadd.f32 %v1358, %v613
    %v1368 = vadd.f32 %v1359, %v613
    %v1369 = vadd.f32 %v1360, %v613
    %v1370 = vadd.f32 %v1361, %v613
    %v1371 = vadd.f32 %v1362, %v613
    %v1372 = vadd.f32 %v1363, %v613
    %v1373 = vadd.f32 %v1364, %v613
    %v1374 = vadd.f32 %v1365, %v613
    %v1375 = vadd.f32 %v1366, %v613
    %v1376 = vmax.f32 %v995, %v1367
    %v1377 = vmax.f32 %v996, %v1368
    %v1378 = vmax.f32 %v997, %v1369
    %v1379 = vmax.f32 %v998, %v1370
    %v1380 = vmax.f32 %v999, %v1371
    %v1381 = vmax.f32 %v1000, %v1372
    %v1382 = vmax.f32 %v1001, %v1373
    %v1383 = vmax.f32 %v1002, %v1374
    %v1384 = vmax.f32 %v1003, %v1375
    %s1385 = scalar_lea.vmem [#allocation10], 96
    %v1386 = vld [vmem:[%s1385] sm:$0xff]
    %v1387 = vld [vmem:[%s1385 + $0x8] sm:$0xff]
    %v1388 = vld [vmem:[%s1385 + $0x10] sm:$0xff]
    %v1389 = vld [vmem:[%s1385 + $0x18] sm:$0xff]
    %s1390 = scalar_lea.vmem [#allocation10], 224
    %v1391 = vld [vmem:[%s1390] sm:$0xff]
    %v1392 = vld [vmem:[%s1390 + $0x8] sm:$0xff]
    %v1393 = vld [vmem:[%s1390 + $0x10] sm:$0xff]
    %v1394 = vld [vmem:[%s1390 + $0x18] sm:$0xff]
    %1395 = vmatprep.subr.mxu0 0.0
    %1396 = vmatpush1.msra.mxu0 %v1391
    %1397 = vmatprep.subr.mxu0 0.0
    %1398 = vmatpush1.msra.mxu0 %v1392
    %1399 = vmatprep.subr.mxu0 0.0
    %1400 = vmatpush1.msra.mxu0 %v1393
    %1401 = vmatprep.subr.mxu0 0.0
    %1402 = vmatpush1.msra.mxu0 %v1394
    %1403 = vmatprep.subr.mxu0 0.0
    %1404 = vmatpush1.msra.mxu0 0.0
    %1405 = vmatprep.subr.mxu0 0.0
    %1406 = vmatpush1.msra.mxu0 0.0
    %1407 = vmatprep.subr.mxu0 0.0
    %1408 = vmatpush1.msra.mxu0 0.0
    %1409 = vmatprep.subr.mxu0 0.0
    %1410 = vmatpush1.msra.mxu0 0.0
    %1411 = vmatprep.subr.mxu0 0.0
    %1412 = vmatpush1.msra.mxu0 0.0
    %1413 = vmatprep.subr.mxu0 0.0
    %1414 = vmatpush1.msra.mxu0 0.0
    %1415 = vmatprep.subr.mxu0 0.0
    %1416 = vmatpush1.msra.mxu0 0.0
    %1417 = vmatprep.subr.mxu0 0.0
    %1418 = vmatpush1.msra.mxu0 0.0
    %1419 = vmatprep.subr.mxu0 0.0
    %1420 = vmatpush1.msra.mxu0 0.0
    %1421 = vmatprep.subr.mxu0 0.0
    %1422 = vmatpush1.msra.mxu0 0.0
    %1423 = vmatprep.subr.mxu0 0.0
    %1424 = vmatpush1.msra.mxu0 0.0
    %1425 = vmatprep.subr.mxu0 0.0
    %1426 = vmatpush1.msra.mxu0 0.0
    %1427 = vmatprep.subr.mxu0 0.0
    %1428 = vmatpush1.msra.mxu0 0.0
    %1429 = vmatprep.subr.mxu0 0.0
    %1430 = vmatpush1.msra.mxu0 0.0
    %1431 = vmatprep.subr.mxu0 0.0
    %1432 = vmatpush1.msra.mxu0 0.0
    %1433 = vmatprep.subr.mxu0 0.0
    %1434 = vmatpush1.msra.mxu0 0.0
    %1435 = vmatprep.subr.mxu0 0.0
    %1436 = vmatpush1.msra.mxu0 0.0
    %1437 = vmatprep.subr.mxu0 0.0
    %1438 = vmatpush1.msra.mxu0 0.0
    %1439 = vmatprep.subr.mxu0 0.0
    %1440 = vmatpush1.msra.mxu0 0.0
    %1441 = vmatprep.subr.mxu0 0.0
    %1442 = vmatpush1.msra.mxu0 0.0
    %1443 = vmatprep.subr.mxu0 0.0
    %1444 = vmatpush1.msra.mxu0 0.0
    %1445 = vmatprep.subr.mxu0 0.0
    %1446 = vmatpush1.msra.mxu0 0.0
    %1447 = vmatprep.subr.mxu0 0.0
    %1448 = vmatpush1.msra.mxu0 0.0
    %1449 = vmatprep.subr.mxu0 0.0
    %1450 = vmatpush1.msra.mxu0 0.0
    %1451 = vmatprep.subr.mxu0 0.0
    %1452 = vmatpush1.msra.mxu0 0.0
    %1453 = vmatprep.subr.mxu0 0.0
    %1454 = vmatpush1.msra.mxu0 0.0
    %1455 = vmatprep.subr.mxu0 0.0
    %1456 = vmatpush1.msra.mxu0 0.0
    %1457 = vmatprep.subr.mxu0 0.0
    %1458 = vmatpush1.msra.mxu0 0.0
    %1459 = vmatprep.mubr.f32.mxu0 0.0
    %1460 = vmatmul.mubr.f32.gmra.mrb[0].mxu0 %v164
    %v1461 = vpop.f32.mrb[0].mxu0
    %v1462 = vadd.f32 0.0, %v1461
    %v1463 = vpop.f32.mrb[0].mxu0
    %1464 = vmatprep.mubr.f32.mxu0 0.0
    %1465 = vmatmul.mubr.f32.gmra.mrb[0].mxu0 %v167
    %v1466 = vpop.f32.mrb[0].mxu0
    %v1467 = vadd.f32 0.0, %v1466
    %v1468 = vpop.f32.mrb[0].mxu0
    %1469 = vmatprep.mubr.f32.mxu0 0.0
    %1470 = vmatmul.mubr.f32.gmra.mrb[0].mxu0 %v170
    %v1471 = vpop.f32.mrb[0].mxu0
    %v1472 = vadd.f32 0.0, %v1471
    %v1473 = vpop.f32.mrb[0].mxu0
    %1474 = vmatprep.mubr.f32.mxu0 0.0
    %1475 = vmatmul.mubr.f32.gmra.mrb[0].mxu0 %v173
    %v1476 = vpop.f32.mrb[0].mxu0
    %v1477 = vadd.f32 0.0, %v1476
    %v1478 = vpop.f32.mrb[0].mxu0
    %1479 = vmatprep.mubr.f32.mxu0 0.0
    %1480 = vmatmul.mubr.f32.gmra.mrb[0].mxu0 %v176
    %v1481 = vpop.f32.mrb[0].mxu0
    %v1482 = vadd.f32 0.0, %v1481
    %v1483 = vpop.f32.mrb[0].mxu0
    %1484 = vmatprep.mubr.f32.mxu0 0.0
    %1485 = vmatmul.mubr.f32.gmra.mrb[0].mxu0 %v179
    %v1486 = vpop.f32.mrb[0].mxu0
    %v1487 = vadd.f32 0.0, %v1486
    %v1488 = vpop.f32.mrb[0].mxu0
    %1489 = vmatprep.mubr.f32.mxu0 0.0
    %1490 = vmatmul.mubr.f32.gmra.mrb[0].mxu0 %v182
    %v1491 = vpop.f32.mrb[0].mxu0
    %v1492 = vadd.f32 0.0, %v1491
    %v1493 = vpop.f32.mrb[0].mxu0
    %1494 = vmatprep.mubr.f32.mxu0 0.0
    %1495 = vmatmul.mubr.f32.gmra.mrb[0].mxu0 %v185
    %v1496 = vpop.f32.mrb[0].mxu0
    %v1497 = vadd.f32 0.0, %v1496
    %v1498 = vpop.f32.mrb[0].mxu0
    %1499 = vmatprep.mubr.f32.mxu0 0.0
    %1500 = vmatmul.mubr.f32.gmra.mrb[0].mxu0 %v188
    %v1501 = vpop.f32.mrb[0].mxu0
    %v1502 = vadd.f32 0.0, %v1501
    %v1503 = vpop.f32.mrb[0].mxu0
    %1504 = vdwg.mxu0
    %1505 = vmatprep.subr.mxu0 0.0
    %1506 = vmatpush1.msra.mxu0 %v1386
    %1507 = vmatprep.subr.mxu0 0.0
    %1508 = vmatpush1.msra.mxu0 %v1387
    %1509 = vmatprep.subr.mxu0 0.0
    %1510 = vmatpush1.msra.mxu0 %v1388
    %1511 = vmatprep.subr.mxu0 0.0
    %1512 = vmatpush1.msra.mxu0 %v1389
    %1513 = vmatprep.subr.mxu0 0.0
    %1514 = vmatpush1.msra.mxu0 0.0
    %1515 = vmatprep.subr.mxu0 0.0
    %1516 = vmatpush1.msra.mxu0 0.0
    %1517 = vmatprep.subr.mxu0 0.0
    %1518 = vmatpush1.msra.mxu0 0.0
    %1519 = vmatprep.subr.mxu0 0.0
    %1520 = vmatpush1.msra.mxu0 0.0
    %1521 = vmatprep.subr.mxu0 0.0
    %1522 = vmatpush1.msra.mxu0 0.0
    %1523 = vmatprep.subr.mxu0 0.0
    %1524 = vmatpush1.msra.mxu0 0.0
    %1525 = vmatprep.subr.mxu0 0.0
    %1526 = vmatpush1.msra.mxu0 0.0
    %1527 = vmatprep.subr.mxu0 0.0
    %1528 = vmatpush1.msra.mxu0 0.0
    %1529 = vmatprep.subr.mxu0 0.0
    %1530 = vmatpush1.msra.mxu0 0.0
    %1531 = vmatprep.subr.mxu0 0.0
    %1532 = vmatpush1.msra.mxu0 0.0
    %1533 = vmatprep.subr.mxu0 0.0
    %1534 = vmatpush1.msra.mxu0 0.0
    %1535 = vmatprep.subr.mxu0 0.0
    %1536 = vmatpush1.msra.mxu0 0.0
    %1537 = vmatprep.subr.mxu0 0.0
    %1538 = vmatpush1.msra.mxu0 0.0
    %1539 = vmatprep.subr.mxu0 0.0
    %1540 = vmatpush1.msra.mxu0 0.0
    %1541 = vmatprep.subr.mxu0 0.0
    %1542 = vmatpush1.msra.mxu0 0.0
    %1543 = vmatprep.subr.mxu0 0.0
    %1544 = vmatpush1.msra.mxu0 0.0
    %1545 = vmatprep.subr.mxu0 0.0
    %1546 = vmatpush1.msra.mxu0 0.0
    %1547 = vmatprep.subr.mxu0 0.0
    %1548 = vmatpush1.msra.mxu0 0.0
    %1549 = vmatprep.subr.mxu0 0.0
    %1550 = vmatpush1.msra.mxu0 0.0
    %1551 = vmatprep.subr.mxu0 0.0
    %1552 = vmatpush1.msra.mxu0 0.0
    %1553 = vmatprep.subr.mxu0 0.0
    %1554 = vmatpush1.msra.mxu0 0.0
    %1555 = vmatprep.subr.mxu0 0.0
    %1556 = vmatpush1.msra.mxu0 0.0
    %1557 = vmatprep.subr.mxu0 0.0
    %1558 = vmatpush1.msra.mxu0 0.0
    %1559 = vmatprep.subr.mxu0 0.0
    %1560 = vmatpush1.msra.mxu0 0.0
    %1561 = vmatprep.subr.mxu0 0.0
    %1562 = vmatpush1.msra.mxu0 0.0
    %1563 = vmatprep.subr.mxu0 0.0
    %1564 = vmatpush1.msra.mxu0 0.0
    %1565 = vmatprep.subr.mxu0 0.0
    %1566 = vmatpush1.msra.mxu0 0.0
    %1567 = vmatprep.subr.mxu0 0.0
    %1568 = vmatpush1.msra.mxu0 0.0
    %1569 = vmatprep.mubr.f32.mxu0 0.0
    %1570 = vmatmul.mubr.f32.gmra.mrb[0].mxu0 %v301
    %v1571 = vpop.f32.mrb[0].mxu0
    %v1572 = vadd.f32 %v1462, %v1571
    %v1573 = vpop.f32.mrb[0].mxu0
    %1574 = vmatprep.mubr.f32.mxu0 0.0
    %1575 = vmatmul.mubr.f32.gmra.mrb[0].mxu0 %v304
    %v1576 = vpop.f32.mrb[0].mxu0
    %v1577 = vadd.f32 %v1467, %v1576
    %v1578 = vpop.f32.mrb[0].mxu0
    %1579 = vmatprep.mubr.f32.mxu0 0.0
    %1580 = vmatmul.mubr.f32.gmra.mrb[0].mxu0 %v307
    %v1581 = vpop.f32.mrb[0].mxu0
    %v1582 = vadd.f32 %v1472, %v1581
    %v1583 = vpop.f32.mrb[0].mxu0
    %1584 = vmatprep.mubr.f32.mxu0 0.0
    %1585 = vmatmul.mubr.f32.gmra.mrb[0].mxu0 %v310
    %v1586 = vpop.f32.mrb[0].mxu0
    %v1587 = vadd.f32 %v1477, %v1586
    %v1588 = vpop.f32.mrb[0].mxu0
    %1589 = vmatprep.mubr.f32.mxu0 0.0
    %1590 = vmatmul.mubr.f32.gmra.mrb[0].mxu0 %v313
    %v1591 = vpop.f32.mrb[0].mxu0
    %v1592 = vadd.f32 %v1482, %v1591
    %v1593 = vpop.f32.mrb[0].mxu0
    %1594 = vmatprep.mubr.f32.mxu0 0.0
    %1595 = vmatmul.mubr.f32.gmra.mrb[0].mxu0 %v316
    %v1596 = vpop.f32.mrb[0].mxu0
    %v1597 = vadd.f32 %v1487, %v1596
    %v1598 = vpop.f32.mrb[0].mxu0
    %1599 = vmatprep.mubr.f32.mxu0 0.0
    %1600 = vmatmul.mubr.f32.gmra.mrb[0].mxu0 %v319
    %v1601 = vpop.f32.mrb[0].mxu0
    %v1602 = vadd.f32 %v1492, %v1601
    %v1603 = vpop.f32.mrb[0].mxu0
    %1604 = vmatprep.mubr.f32.mxu0 0.0
    %1605 = vmatmul.mubr.f32.gmra.mrb[0].mxu0 %v322
    %v1606 = vpop.f32.mrb[0].mxu0
    %v1607 = vadd.f32 %v1497, %v1606
    %v1608 = vpop.f32.mrb[0].mxu0
    %1609 = vmatprep.mubr.f32.mxu0 0.0
    %1610 = vmatmul.mubr.f32.gmra.mrb[0].mxu0 %v325
    %v1611 = vpop.f32.mrb[0].mxu0
    %v1612 = vadd.f32 %v1502, %v1611
    %v1613 = vpop.f32.mrb[0].mxu0
    %1614 = vdwg.mxu0
    %s1615 = scalar_lea.vmem [#allocation10], 352
    %v1616 = vld [vmem:[%s1615] sm:$0xff]
    %v1617 = vld [vmem:[%s1615 + $0x8] sm:$0xff]
    %v1618 = vld [vmem:[%s1615 + $0x10] sm:$0xff]
    %v1619 = vld [vmem:[%s1615 + $0x18] sm:$0xff]
    %1620 = vmatprep.subr.mxu0 0.0
    %1621 = vmatpush1.msra.mxu0 %v1616
    %1622 = vmatprep.subr.mxu0 0.0
    %1623 = vmatpush1.msra.mxu0 %v1617
    %1624 = vmatprep.subr.mxu0 0.0
    %1625 = vmatpush1.msra.mxu0 %v1618
    %1626 = vmatprep.subr.mxu0 0.0
    %1627 = vmatpush1.msra.mxu0 %v1619
    %1628 = vmatprep.subr.mxu0 0.0
    %1629 = vmatpush1.msra.mxu0 0.0
    %1630 = vmatprep.subr.mxu0 0.0
    %1631 = vmatpush1.msra.mxu0 0.0
    %1632 = vmatprep.subr.mxu0 0.0
    %1633 = vmatpush1.msra.mxu0 0.0
    %1634 = vmatprep.subr.mxu0 0.0
    %1635 = vmatpush1.msra.mxu0 0.0
    %1636 = vmatprep.subr.mxu0 0.0
    %1637 = vmatpush1.msra.mxu0 0.0
    %1638 = vmatprep.subr.mxu0 0.0
    %1639 = vmatpush1.msra.mxu0 0.0
    %1640 = vmatprep.subr.mxu0 0.0
    %1641 = vmatpush1.msra.mxu0 0.0
    %1642 = vmatprep.subr.mxu0 0.0
    %1643 = vmatpush1.msra.mxu0 0.0
    %1644 = vmatprep.subr.mxu0 0.0
    %1645 = vmatpush1.msra.mxu0 0.0
    %1646 = vmatprep.subr.mxu0 0.0
    %1647 = vmatpush1.msra.mxu0 0.0
    %1648 = vmatprep.subr.mxu0 0.0
    %1649 = vmatpush1.msra.mxu0 0.0
    %1650 = vmatprep.subr.mxu0 0.0
    %1651 = vmatpush1.msra.mxu0 0.0
    %1652 = vmatprep.subr.mxu0 0.0
    %1653 = vmatpush1.msra.mxu0 0.0
    %1654 = vmatprep.subr.mxu0 0.0
    %1655 = vmatpush1.msra.mxu0 0.0
    %1656 = vmatprep.subr.mxu0 0.0
    %1657 = vmatpush1.msra.mxu0 0.0
    %1658 = vmatprep.subr.mxu0 0.0
    %1659 = vmatpush1.msra.mxu0 0.0
    %1660 = vmatprep.subr.mxu0 0.0
    %1661 = vmatpush1.msra.mxu0 0.0
    %1662 = vmatprep.subr.mxu0 0.0
    %1663 = vmatpush1.msra.mxu0 0.0
    %1664 = vmatprep.subr.mxu0 0.0
    %1665 = vmatpush1.msra.mxu0 0.0
    %1666 = vmatprep.subr.mxu0 0.0
    %1667 = vmatpush1.msra.mxu0 0.0
    %1668 = vmatprep.subr.mxu0 0.0
    %1669 = vmatpush1.msra.mxu0 0.0
    %1670 = vmatprep.subr.mxu0 0.0
    %1671 = vmatpush1.msra.mxu0 0.0
    %1672 = vmatprep.subr.mxu0 0.0
    %1673 = vmatpush1.msra.mxu0 0.0
    %1674 = vmatprep.subr.mxu0 0.0
    %1675 = vmatpush1.msra.mxu0 0.0
    %1676 = vmatprep.subr.mxu0 0.0
    %1677 = vmatpush1.msra.mxu0 0.0
    %1678 = vmatprep.subr.mxu0 0.0
    %1679 = vmatpush1.msra.mxu0 0.0
    %1680 = vmatprep.subr.mxu0 0.0
    %1681 = vmatpush1.msra.mxu0 0.0
    %1682 = vmatprep.subr.mxu0 0.0
    %1683 = vmatpush1.msra.mxu0 0.0
    %1684 = vmatprep.mubr.f32.mxu0 0.0
    %1685 = vmatmul.mubr.f32.gmra.mrb[0].mxu0 %v452
    %v1686 = vpop.f32.mrb[0].mxu0
    %v1687 = vadd.f32 0.0, %v1686
    %v1688 = vpop.f32.mrb[0].mxu0
    %1689 = vmatprep.mubr.f32.mxu0 0.0
    %1690 = vmatmul.mubr.f32.gmra.mrb[0].mxu0 %v455
    %v1691 = vpop.f32.mrb[0].mxu0
    %v1692 = vadd.f32 0.0, %v1691
    %v1693 = vpop.f32.mrb[0].mxu0
    %1694 = vmatprep.mubr.f32.mxu0 0.0
    %1695 = vmatmul.mubr.f32.gmra.mrb[0].mxu0 %v458
    %v1696 = vpop.f32.mrb[0].mxu0
    %v1697 = vadd.f32 0.0, %v1696
    %v1698 = vpop.f32.mrb[0].mxu0
    %1699 = vmatprep.mubr.f32.mxu0 0.0
    %1700 = vmatmul.mubr.f32.gmra.mrb[0].mxu0 %v461
    %v1701 = vpop.f32.mrb[0].mxu0
    %v1702 = vadd.f32 0.0, %v1701
    %v1703 = vpop.f32.mrb[0].mxu0
    %1704 = vmatprep.mubr.f32.mxu0 0.0
    %1705 = vmatmul.mubr.f32.gmra.mrb[0].mxu0 %v464
    %v1706 = vpop.f32.mrb[0].mxu0
    %v1707 = vadd.f32 0.0, %v1706
    %v1708 = vpop.f32.mrb[0].mxu0
    %1709 = vmatprep.mubr.f32.mxu0 0.0
    %1710 = vmatmul.mubr.f32.gmra.mrb[0].mxu0 %v467
    %v1711 = vpop.f32.mrb[0].mxu0
    %v1712 = vadd.f32 0.0, %v1711
    %v1713 = vpop.f32.mrb[0].mxu0
    %1714 = vmatprep.mubr.f32.mxu0 0.0
    %1715 = vmatmul.mubr.f32.gmra.mrb[0].mxu0 %v470
    %v1716 = vpop.f32.mrb[0].mxu0
    %v1717 = vadd.f32 0.0, %v1716
    %v1718 = vpop.f32.mrb[0].mxu0
    %1719 = vmatprep.mubr.f32.mxu0 0.0
    %1720 = vmatmul.mubr.f32.gmra.mrb[0].mxu0 %v473
    %v1721 = vpop.f32.mrb[0].mxu0
    %v1722 = vadd.f32 0.0, %v1721
    %v1723 = vpop.f32.mrb[0].mxu0
    %1724 = vmatprep.mubr.f32.mxu0 0.0
    %1725 = vmatmul.mubr.f32.gmra.mrb[0].mxu0 %v476
    %v1726 = vpop.f32.mrb[0].mxu0
    %v1727 = vadd.f32 0.0, %v1726
    %v1728 = vpop.f32.mrb[0].mxu0
    %1729 = vdwg.mxu0
    %v1730 = vadd.f32 %v1572, %v1687
    %v1731 = vadd.f32 %v1577, %v1692
    %v1732 = vadd.f32 %v1582, %v1697
    %v1733 = vadd.f32 %v1587, %v1702
    %v1734 = vadd.f32 %v1592, %v1707
    %v1735 = vadd.f32 %v1597, %v1712
    %v1736 = vadd.f32 %v1602, %v1717
    %v1737 = vadd.f32 %v1607, %v1722
    %v1738 = vadd.f32 %v1612, %v1727
    %v1739 = vmul.f32 %v1730, %v600
    %v1740 = vmul.f32 %v1731, %v600
    %v1741 = vmul.f32 %v1732, %v600
    %v1742 = vmul.f32 %v1733, %v600
    %v1743 = vmul.f32 %v1734, %v600
    %v1744 = vmul.f32 %v1735, %v600
    %v1745 = vmul.f32 %v1736, %v600
    %v1746 = vmul.f32 %v1737, %v600
    %v1747 = vmul.f32 %v1738, %v600
    %v1748 = vadd.f32 %v1739, %v613
    %v1749 = vadd.f32 %v1740, %v613
    %v1750 = vadd.f32 %v1741, %v613
    %v1751 = vadd.f32 %v1742, %v613
    %v1752 = vadd.f32 %v1743, %v613
    %v1753 = vadd.f32 %v1744, %v613
    %v1754 = vadd.f32 %v1745, %v613
    %v1755 = vadd.f32 %v1746, %v613
    %v1756 = vadd.f32 %v1747, %v613
    %v1757 = vmax.f32 %v1376, %v1748
    %v1758 = vmax.f32 %v1377, %v1749
    %v1759 = vmax.f32 %v1378, %v1750
    %v1760 = vmax.f32 %v1379, %v1751
    %v1761 = vmax.f32 %v1380, %v1752
    %v1762 = vmax.f32 %v1381, %v1753
    %v1763 = vmax.f32 %v1382, %v1754
    %v1764 = vmax.f32 %v1383, %v1755
    %v1765 = vmax.f32 %v1384, %v1756
    %1766 = vst.msk [vmem:[#allocation6] sm:$0xff] %vm112, %v1757
    %1767 = vst.msk [vmem:[#allocation6 + $0x8] sm:$0xff] %vm112, %v1758
    %1768 = vst.msk [vmem:[#allocation6 + $0x10] sm:$0xff] %vm112, %v1759
    %1769 = vst.msk [vmem:[#allocation6 + $0x18] sm:$0xff] %vm112, %v1760
    %1770 = vst.msk [vmem:[#allocation6 + $0x20] sm:$0xff] %vm112, %v1761
    %1771 = vst.msk [vmem:[#allocation6 + $0x28] sm:$0xff] %vm112, %v1762
    %1772 = vst.msk [vmem:[#allocation6 + $0x30] sm:$0xff] %vm112, %v1763
    %1773 = vst.msk [vmem:[#allocation6 + $0x38] sm:$0xff] %vm112, %v1764
    %vm1774 = vcmask 517120
    %1775 = vst.msk [vmem:[#allocation6 + $0x40] sm:$0x3] %vm1774, %v1765
    %v1776 = vld [vmem:[#allocation6] ss:$4 sm:$0xff]
    %s1777 = scalar_lea.vmem [#allocation6], 1
    %v1778 = vld [vmem:[%s1777] ss:$4 sm:$0xff]
    %v1779 = vmax.f32 %v1776, %v1778
    %s1780 = scalar_lea.vmem [#allocation6], 2
    %v1781 = vld [vmem:[%s1780] ss:$4 sm:$0xff]
    %v1782 = vmax.f32 %v1779, %v1781
    %s1783 = scalar_lea.vmem [#allocation6], 3
    %v1784 = vld [vmem:[%s1783] ss:$4 sm:$0xff]
    %v1785 = vmax.f32 %v1782, %v1784
    %v1786 = vmax.f32 %v1785, 0.0
    %1787 = vst.msk [vmem:[%s7] sm:$0xff] %vm112, %v1786
    %1788 = vst.msk [vmem:[#allocation3 + $0x1] sm:$0xff] %vm112, %v1786
    %s1789 = scalar_lea.vmem [#allocation6], 34
    %v1790 = vld [vmem:[%s1789] ss:$4 sm:$0xff]
    %s1791 = scalar_lea.vmem [#allocation6], 35
    %v1792 = vld [vmem:[%s1791] ss:$4 sm:$0xff]
    %v1793 = vmax.f32 %v1790, %v1792
    %s1794 = scalar_lea.vmem [#allocation6], 36
    %v1795 = vld [vmem:[%s1794] ss:$4 sm:$0xff]
    %v1796 = vmax.f32 %v1793, %v1795
    %s1797 = scalar_lea.vmem [#allocation6], 37
    %v1798 = vld [vmem:[%s1797] ss:$4 sm:$0xff]
    %v1799 = vmax.f32 %v1796, %v1798
    %v1800 = vmax.f32 %v1799, 0.0
    %1801 = vst.msk [vmem:[%s7 + $0x8] sm:$0xff] %vm112, %v1800
    %1802 = vst.msk [vmem:[#allocation3 + $0xb] sm:$0xff] %vm112, %v1800
    %v1803 = vld [vmem:[#allocation3] sm:$0xff]
    %v1804 = vld [vmem:[#allocation3 + $0x8] sm:$0xff]
    %v1805 = vld [vmem:[#allocation3 + $0x10] sm:$0x3]
    %v1806 = vld [vmem:[#allocation12] sm:$0xff]
    %v1807 = vld [vmem:[#allocation12 + $0x8] sm:$0xff]
    %v1808 = vld [vmem:[#allocation12 + $0x10] sm:$0xff]
    %v1809 = vld [vmem:[#allocation12 + $0x18] sm:$0xff]
    %v1810 = vld [vmem:[#allocation12 + $0x20] sm:$0xff]
    %v1811 = vld [vmem:[#allocation12 + $0x28] sm:$0xff]
    %v1812 = vld [vmem:[#allocation12 + $0x30] sm:$0xff]
    %v1813 = vld [vmem:[#allocation12 + $0x38] sm:$0xff]
    %v1814 = vld [vmem:[#allocation3 + $0x1] sm:$0xff]
    %v1815 = vld [vmem:[#allocation3 + $0x9] sm:$0xff]
    %v1816 = vld [vmem:[#allocation3 + $0x11] sm:$0x3]
    %s1817 = scalar_lea.vmem [#allocation12], 128
    %v1818 = vld [vmem:[%s1817] sm:$0xff]
    %v1819 = vld [vmem:[%s1817 + $0x8] sm:$0xff]
    %v1820 = vld [vmem:[%s1817 + $0x10] sm:$0xff]
    %v1821 = vld [vmem:[%s1817 + $0x18] sm:$0xff]
    %v1822 = vld [vmem:[%s1817 + $0x20] sm:$0xff]
    %v1823 = vld [vmem:[%s1817 + $0x28] sm:$0xff]
    %v1824 = vld [vmem:[%s1817 + $0x30] sm:$0xff]
    %v1825 = vld [vmem:[%s1817 + $0x38] sm:$0xff]
    %v1827 = vsel %vm112, %v1814, 0
    %v1830 = vsel %vm112, %v1815, 0
    %v1833 = vsel %vm112, %v1816, 0
    %1835 = vmatprep.subr.mxu0 0.0
    %1836 = vmatpush1.msra.mxu0 %v1818
    %1837 = vmatprep.subr.mxu0 0.0
    %1838 = vmatpush1.msra.mxu0 %v1819
    %1839 = vmatprep.subr.mxu0 0.0
    %1840 = vmatpush1.msra.mxu0 %v1820
    %1841 = vmatprep.subr.mxu0 0.0
    %1842 = vmatpush1.msra.mxu0 %v1821
    %1843 = vmatprep.subr.mxu0 0.0
    %1844 = vmatpush1.msra.mxu0 %v1822
    %1845 = vmatprep.subr.mxu0 0.0
    %1846 = vmatpush1.msra.mxu0 %v1823
    %1847 = vmatprep.subr.mxu0 0.0
    %1848 = vmatpush1.msra.mxu0 %v1824
    %1849 = vmatprep.subr.mxu0 0.0
    %1850 = vmatpush1.msra.mxu0 %v1825
    %1851 = vmatprep.subr.mxu0 0.0
    %1852 = vmatpush1.msra.mxu0 0.0
    %1853 = vmatprep.subr.mxu0 0.0
    %1854 = vmatpush1.msra.mxu0 0.0
    %1855 = vmatprep.subr.mxu0 0.0
    %1856 = vmatpush1.msra.mxu0 0.0
    %1857 = vmatprep.subr.mxu0 0.0
    %1858 = vmatpush1.msra.mxu0 0.0
    %1859 = vmatprep.subr.mxu0 0.0
    %1860 = vmatpush1.msra.mxu0 0.0
    %1861 = vmatprep.subr.mxu0 0.0
    %1862 = vmatpush1.msra.mxu0 0.0
    %1863 = vmatprep.subr.mxu0 0.0
    %1864 = vmatpush1.msra.mxu0 0.0
    %1865 = vmatprep.subr.mxu0 0.0
    %1866 = vmatpush1.msra.mxu0 0.0
    %1867 = vmatprep.subr.mxu0 0.0
    %1868 = vmatpush1.msra.mxu0 0.0
    %1869 = vmatprep.subr.mxu0 0.0
    %1870 = vmatpush1.msra.mxu0 0.0
    %1871 = vmatprep.subr.mxu0 0.0
    %1872 = vmatpush1.msra.mxu0 0.0
    %1873 = vmatprep.subr.mxu0 0.0
    %1874 = vmatpush1.msra.mxu0 0.0
    %1875 = vmatprep.subr.mxu0 0.0
    %1876 = vmatpush1.msra.mxu0 0.0
    %1877 = vmatprep.subr.mxu0 0.0
    %1878 = vmatpush1.msra.mxu0 0.0
    %1879 = vmatprep.subr.mxu0 0.0
    %1880 = vmatpush1.msra.mxu0 0.0
    %1881 = vmatprep.subr.mxu0 0.0
    %1882 = vmatpush1.msra.mxu0 0.0
    %1883 = vmatprep.subr.mxu0 0.0
    %1884 = vmatpush1.msra.mxu0 0.0
    %1885 = vmatprep.subr.mxu0 0.0
    %1886 = vmatpush1.msra.mxu0 0.0
    %1887 = vmatprep.subr.mxu0 0.0
    %1888 = vmatpush1.msra.mxu0 0.0
    %1889 = vmatprep.subr.mxu0 0.0
    %1890 = vmatpush1.msra.mxu0 0.0
    %1891 = vmatprep.subr.mxu0 0.0
    %1892 = vmatpush1.msra.mxu0 0.0
    %1893 = vmatprep.subr.mxu0 0.0
    %1894 = vmatpush1.msra.mxu0 0.0
    %1895 = vmatprep.subr.mxu0 0.0
    %1896 = vmatpush1.msra.mxu0 0.0
    %1897 = vmatprep.subr.mxu0 0.0
    %1898 = vmatpush1.msra.mxu0 0.0
    %1899 = vmatprep.mubr.f32.mxu0 0.0
    %1900 = vmatmul.mubr.f32.gmra.mrb[0].mxu0 %v1827
    %v1901 = vpop.f32.mrb[0].mxu0
    %v1902 = vadd.f32 0.0, %v1901
    %v1903 = vpop.f32.mrb[0].mxu0
    %1904 = vmatprep.mubr.f32.mxu0 0.0
    %1905 = vmatmul.mubr.f32.gmra.mrb[0].mxu0 %v1830
    %v1906 = vpop.f32.mrb[0].mxu0
    %v1907 = vadd.f32 0.0, %v1906
    %v1908 = vpop.f32.mrb[0].mxu0
    %1909 = vmatprep.mubr.f32.mxu0 0.0
    %1910 = vmatmul.mubr.f32.gmra.mrb[0].mxu0 %v1833
    %v1911 = vpop.f32.mrb[0].mxu0
    %v1912 = vadd.f32 0.0, %v1911
    %v1913 = vpop.f32.mrb[0].mxu0
    %1914 = vdwg.mxu0
    %v1916 = vsel %vm112, %v1803, 0
    %v1919 = vsel %vm112, %v1804, 0
    %v1922 = vsel %vm112, %v1805, 0
    %1924 = vmatprep.subr.mxu0 0.0
    %1925 = vmatpush1.msra.mxu0 %v1806
    %1926 = vmatprep.subr.mxu0 0.0
    %1927 = vmatpush1.msra.mxu0 %v1807
    %1928 = vmatprep.subr.mxu0 0.0
    %1929 = vmatpush1.msra.mxu0 %v1808
    %1930 = vmatprep.subr.mxu0 0.0
    %1931 = vmatpush1.msra.mxu0 %v1809
    %1932 = vmatprep.subr.mxu0 0.0
    %1933 = vmatpush1.msra.mxu0 %v1810
    %1934 = vmatprep.subr.mxu0 0.0
    %1935 = vmatpush1.msra.mxu0 %v1811
    %1936 = vmatprep.subr.mxu0 0.0
    %1937 = vmatpush1.msra.mxu0 %v1812
    %1938 = vmatprep.subr.mxu0 0.0
    %1939 = vmatpush1.msra.mxu0 %v1813
    %1940 = vmatprep.subr.mxu0 0.0
    %1941 = vmatpush1.msra.mxu0 0.0
    %1942 = vmatprep.subr.mxu0 0.0
    %1943 = vmatpush1.msra.mxu0 0.0
    %1944 = vmatprep.subr.mxu0 0.0
    %1945 = vmatpush1.msra.mxu0 0.0
    %1946 = vmatprep.subr.mxu0 0.0
    %1947 = vmatpush1.msra.mxu0 0.0
    %1948 = vmatprep.subr.mxu0 0.0
    %1949 = vmatpush1.msra.mxu0 0.0
    %1950 = vmatprep.subr.mxu0 0.0
    %1951 = vmatpush1.msra.mxu0 0.0
    %1952 = vmatprep.subr.mxu0 0.0
    %1953 = vmatpush1.msra.mxu0 0.0
    %1954 = vmatprep.subr.mxu0 0.0
    %1955 = vmatpush1.msra.mxu0 0.0
    %1956 = vmatprep.subr.mxu0 0.0
    %1957 = vmatpush1.msra.mxu0 0.0
    %1958 = vmatprep.subr.mxu0 0.0
    %1959 = vmatpush1.msra.mxu0 0.0
    %1960 = vmatprep.subr.mxu0 0.0
    %1961 = vmatpush1.msra.mxu0 0.0
    %1962 = vmatprep.subr.mxu0 0.0
    %1963 = vmatpush1.msra.mxu0 0.0
    %1964 = vmatprep.subr.mxu0 0.0
    %1965 = vmatpush1.msra.mxu0 0.0
    %1966 = vmatprep.subr.mxu0 0.0
    %1967 = vmatpush1.msra.mxu0 0.0
    %1968 = vmatprep.subr.mxu0 0.0
    %1969 = vmatpush1.msra.mxu0 0.0
    %1970 = vmatprep.subr.mxu0 0.0
    %1971 = vmatpush1.msra.mxu0 0.0
    %1972 = vmatprep.subr.mxu0 0.0
    %1973 = vmatpush1.msra.mxu0 0.0
    %1974 = vmatprep.subr.mxu0 0.0
    %1975 = vmatpush1.msra.mxu0 0.0
    %1976 = vmatprep.subr.mxu0 0.0
    %1977 = vmatpush1.msra.mxu0 0.0
    %1978 = vmatprep.subr.mxu0 0.0
    %1979 = vmatpush1.msra.mxu0 0.0
    %1980 = vmatprep.subr.mxu0 0.0
    %1981 = vmatpush1.msra.mxu0 0.0
    %1982 = vmatprep.subr.mxu0 0.0
    %1983 = vmatpush1.msra.mxu0 0.0
    %1984 = vmatprep.subr.mxu0 0.0
    %1985 = vmatpush1.msra.mxu0 0.0
    %1986 = vmatprep.subr.mxu0 0.0
    %1987 = vmatpush1.msra.mxu0 0.0
    %1988 = vmatprep.mubr.f32.mxu0 0.0
    %1989 = vmatmul.mubr.f32.gmra.mrb[0].mxu0 %v1916
    %v1990 = vpop.f32.mrb[0].mxu0
    %v1991 = vadd.f32 %v1902, %v1990
    %v1992 = vpop.f32.mrb[0].mxu0
    %1993 = vmatprep.mubr.f32.mxu0 0.0
    %1994 = vmatmul.mubr.f32.gmra.mrb[0].mxu0 %v1919
    %v1995 = vpop.f32.mrb[0].mxu0
    %v1996 = vadd.f32 %v1907, %v1995
    %v1997 = vpop.f32.mrb[0].mxu0
    %1998 = vmatprep.mubr.f32.mxu0 0.0
    %1999 = vmatmul.mubr.f32.gmra.mrb[0].mxu0 %v1922
    %v2000 = vpop.f32.mrb[0].mxu0
    %v2001 = vadd.f32 %v1912, %v2000
    %v2002 = vpop.f32.mrb[0].mxu0
    %2003 = vdwg.mxu0
    %v2004 = vld [vmem:[#allocation3 + $0x2] sm:$0xff]
    %v2005 = vld [vmem:[#allocation3 + $0xa] sm:$0xff]
    %v2006 = vld [vmem:[#allocation3 + $0x12] sm:$0x3]
    %s2007 = scalar_lea.vmem [#allocation12], 256
    %v2008 = vld [vmem:[%s2007] sm:$0xff]
    %v2009 = vld [vmem:[%s2007 + $0x8] sm:$0xff]
    %v2010 = vld [vmem:[%s2007 + $0x10] sm:$0xff]
    %v2011 = vld [vmem:[%s2007 + $0x18] sm:$0xff]
    %v2012 = vld [vmem:[%s2007 + $0x20] sm:$0xff]
    %v2013 = vld [vmem:[%s2007 + $0x28] sm:$0xff]
    %v2014 = vld [vmem:[%s2007 + $0x30] sm:$0xff]
    %v2015 = vld [vmem:[%s2007 + $0x38] sm:$0xff]
    %v2017 = vsel %vm112, %v2004, 0
    %v2020 = vsel %vm112, %v2005, 0
    %v2023 = vsel %vm112, %v2006, 0
    %2025 = vmatprep.subr.mxu0 0.0
    %2026 = vmatpush1.msra.mxu0 %v2008
    %2027 = vmatprep.subr.mxu0 0.0
    %2028 = vmatpush1.msra.mxu0 %v2009
    %2029 = vmatprep.subr.mxu0 0.0
    %2030 = vmatpush1.msra.mxu0 %v2010
    %2031 = vmatprep.subr.mxu0 0.0
    %2032 = vmatpush1.msra.mxu0 %v2011
    %2033 = vmatprep.subr.mxu0 0.0
    %2034 = vmatpush1.msra.mxu0 %v2012
    %2035 = vmatprep.subr.mxu0 0.0
    %2036 = vmatpush1.msra.mxu0 %v2013
    %2037 = vmatprep.subr.mxu0 0.0
    %2038 = vmatpush1.msra.mxu0 %v2014
    %2039 = vmatprep.subr.mxu0 0.0
    %2040 = vmatpush1.msra.mxu0 %v2015
    %2041 = vmatprep.subr.mxu0 0.0
    %2042 = vmatpush1.msra.mxu0 0.0
    %2043 = vmatprep.subr.mxu0 0.0
    %2044 = vmatpush1.msra.mxu0 0.0
    %2045 = vmatprep.subr.mxu0 0.0
    %2046 = vmatpush1.msra.mxu0 0.0
    %2047 = vmatprep.subr.mxu0 0.0
    %2048 = vmatpush1.msra.mxu0 0.0
    %2049 = vmatprep.subr.mxu0 0.0
    %2050 = vmatpush1.msra.mxu0 0.0
    %2051 = vmatprep.subr.mxu0 0.0
    %2052 = vmatpush1.msra.mxu0 0.0
    %2053 = vmatprep.subr.mxu0 0.0
    %2054 = vmatpush1.msra.mxu0 0.0
    %2055 = vmatprep.subr.mxu0 0.0
    %2056 = vmatpush1.msra.mxu0 0.0
    %2057 = vmatprep.subr.mxu0 0.0
    %2058 = vmatpush1.msra.mxu0 0.0
    %2059 = vmatprep.subr.mxu0 0.0
    %2060 = vmatpush1.msra.mxu0 0.0
    %2061 = vmatprep.subr.mxu0 0.0
    %2062 = vmatpush1.msra.mxu0 0.0
    %2063 = vmatprep.subr.mxu0 0.0
    %2064 = vmatpush1.msra.mxu0 0.0
    %2065 = vmatprep.subr.mxu0 0.0
    %2066 = vmatpush1.msra.mxu0 0.0
    %2067 = vmatprep.subr.mxu0 0.0
    %2068 = vmatpush1.msra.mxu0 0.0
    %2069 = vmatprep.subr.mxu0 0.0
    %2070 = vmatpush1.msra.mxu0 0.0
    %2071 = vmatprep.subr.mxu0 0.0
    %2072 = vmatpush1.msra.mxu0 0.0
    %2073 = vmatprep.subr.mxu0 0.0
    %2074 = vmatpush1.msra.mxu0 0.0
    %2075 = vmatprep.subr.mxu0 0.0
    %2076 = vmatpush1.msra.mxu0 0.0
    %2077 = vmatprep.subr.mxu0 0.0
    %2078 = vmatpush1.msra.mxu0 0.0
    %2079 = vmatprep.subr.mxu0 0.0
    %2080 = vmatpush1.msra.mxu0 0.0
    %2081 = vmatprep.subr.mxu0 0.0
    %2082 = vmatpush1.msra.mxu0 0.0
    %2083 = vmatprep.subr.mxu0 0.0
    %2084 = vmatpush1.msra.mxu0 0.0
    %2085 = vmatprep.subr.mxu0 0.0
    %2086 = vmatpush1.msra.mxu0 0.0
    %2087 = vmatprep.subr.mxu0 0.0
    %2088 = vmatpush1.msra.mxu0 0.0
    %2089 = vmatprep.mubr.f32.mxu0 0.0
    %2090 = vmatmul.mubr.f32.gmra.mrb[0].mxu0 %v2017
    %v2091 = vpop.f32.mrb[0].mxu0
    %v2092 = vadd.f32 0.0, %v2091
    %v2093 = vpop.f32.mrb[0].mxu0
    %2094 = vmatprep.mubr.f32.mxu0 0.0
    %2095 = vmatmul.mubr.f32.gmra.mrb[0].mxu0 %v2020
    %v2096 = vpop.f32.mrb[0].mxu0
    %v2097 = vadd.f32 0.0, %v2096
    %v2098 = vpop.f32.mrb[0].mxu0
    %2099 = vmatprep.mubr.f32.mxu0 0.0
    %2100 = vmatmul.mubr.f32.gmra.mrb[0].mxu0 %v2023
    %v2101 = vpop.f32.mrb[0].mxu0
    %v2102 = vadd.f32 0.0, %v2101
    %v2103 = vpop.f32.mrb[0].mxu0
    %2104 = vdwg.mxu0
    %v2105 = vadd.f32 %v1991, %v2092
    %v2106 = vadd.f32 %v1996, %v2097
    %v2107 = vadd.f32 %v2001, %v2102
    %v2108 = vlaneseq
    %v2109 = vshrl.u32 %v2108, 7
    %v2110 = vsub.s32 1, %v2109
    %v2111 = vrot.slane %v99, %v2110
    %v2112 = vmul.f32 %v2105, %v2111
    %v2113 = vmul.f32 %v2106, %v2111
    %v2114 = vmul.f32 %v2107, %v2111
    %v2115 = vlaneseq
    %v2116 = vshrl.u32 %v2115, 7
    %v2117 = vsub.s32 1, %v2116
    %v2118 = vrot.slane %v100, %v2117
    %v2119 = vadd.f32 %v2112, %v2118
    %v2120 = vadd.f32 %v2113, %v2118
    %v2121 = vadd.f32 %v2114, %v2118
    %s2122 = scalar_lea.vmem [#allocation12], 64
    %v2123 = vld [vmem:[%s2122] sm:$0xff]
    %v2124 = vld [vmem:[%s2122 + $0x8] sm:$0xff]
    %v2125 = vld [vmem:[%s2122 + $0x10] sm:$0xff]
    %v2126 = vld [vmem:[%s2122 + $0x18] sm:$0xff]
    %v2127 = vld [vmem:[%s2122 + $0x20] sm:$0xff]
    %v2128 = vld [vmem:[%s2122 + $0x28] sm:$0xff]
    %v2129 = vld [vmem:[%s2122 + $0x30] sm:$0xff]
    %v2130 = vld [vmem:[%s2122 + $0x38] sm:$0xff]
    %s2131 = scalar_lea.vmem [#allocation12], 192
    %v2132 = vld [vmem:[%s2131] sm:$0xff]
    %v2133 = vld [vmem:[%s2131 + $0x8] sm:$0xff]
    %v2134 = vld [vmem:[%s2131 + $0x10] sm:$0xff]
    %v2135 = vld [vmem:[%s2131 + $0x18] sm:$0xff]
    %v2136 = vld [vmem:[%s2131 + $0x20] sm:$0xff]
    %v2137 = vld [vmem:[%s2131 + $0x28] sm:$0xff]
    %v2138 = vld [vmem:[%s2131 + $0x30] sm:$0xff]
    %v2139 = vld [vmem:[%s2131 + $0x38] sm:$0xff]
    %2140 = vmatprep.subr.mxu0 0.0
    %2141 = vmatpush1.msra.mxu0 %v2132
    %2142 = vmatprep.subr.mxu0 0.0
    %2143 = vmatpush1.msra.mxu0 %v2133
    %2144 = vmatprep.subr.mxu0 0.0
    %2145 = vmatpush1.msra.mxu0 %v2134
    %2146 = vmatprep.subr.mxu0 0.0
    %2147 = vmatpush1.msra.mxu0 %v2135
    %2148 = vmatprep.subr.mxu0 0.0
    %2149 = vmatpush1.msra.mxu0 %v2136
    %2150 = vmatprep.subr.mxu0 0.0
    %2151 = vmatpush1.msra.mxu0 %v2137
    %2152 = vmatprep.subr.mxu0 0.0
    %2153 = vmatpush1.msra.mxu0 %v2138
    %2154 = vmatprep.subr.mxu0 0.0
    %2155 = vmatpush1.msra.mxu0 %v2139
    %2156 = vmatprep.subr.mxu0 0.0
    %2157 = vmatpush1.msra.mxu0 0.0
    %2158 = vmatprep.subr.mxu0 0.0
    %2159 = vmatpush1.msra.mxu0 0.0
    %2160 = vmatprep.subr.mxu0 0.0
    %2161 = vmatpush1.msra.mxu0 0.0
    %2162 = vmatprep.subr.mxu0 0.0
    %2163 = vmatpush1.msra.mxu0 0.0
    %2164 = vmatprep.subr.mxu0 0.0
    %2165 = vmatpush1.msra.mxu0 0.0
    %2166 = vmatprep.subr.mxu0 0.0
    %2167 = vmatpush1.msra.mxu0 0.0
    %2168 = vmatprep.subr.mxu0 0.0
    %2169 = vmatpush1.msra.mxu0 0.0
    %2170 = vmatprep.subr.mxu0 0.0
    %2171 = vmatpush1.msra.mxu0 0.0
    %2172 = vmatprep.subr.mxu0 0.0
    %2173 = vmatpush1.msra.mxu0 0.0
    %2174 = vmatprep.subr.mxu0 0.0
    %2175 = vmatpush1.msra.mxu0 0.0
    %2176 = vmatprep.subr.mxu0 0.0
    %2177 = vmatpush1.msra.mxu0 0.0
    %2178 = vmatprep.subr.mxu0 0.0
    %2179 = vmatpush1.msra.mxu0 0.0
    %2180 = vmatprep.subr.mxu0 0.0
    %2181 = vmatpush1.msra.mxu0 0.0
    %2182 = vmatprep.subr.mxu0 0.0
    %2183 = vmatpush1.msra.mxu0 0.0
    %2184 = vmatprep.subr.mxu0 0.0
    %2185 = vmatpush1.msra.mxu0 0.0
    %2186 = vmatprep.subr.mxu0 0.0
    %2187 = vmatpush1.msra.mxu0 0.0
    %2188 = vmatprep.subr.mxu0 0.0
    %2189 = vmatpush1.msra.mxu0 0.0
    %2190 = vmatprep.subr.mxu0 0.0
    %2191 = vmatpush1.msra.mxu0 0.0
    %2192 = vmatprep.subr.mxu0 0.0
    %2193 = vmatpush1.msra.mxu0 0.0
    %2194 = vmatprep.subr.mxu0 0.0
    %2195 = vmatpush1.msra.mxu0 0.0
    %2196 = vmatprep.subr.mxu0 0.0
    %2197 = vmatpush1.msra.mxu0 0.0
    %2198 = vmatprep.subr.mxu0 0.0
    %2199 = vmatpush1.msra.mxu0 0.0
    %2200 = vmatprep.subr.mxu0 0.0
    %2201 = vmatpush1.msra.mxu0 0.0
    %2202 = vmatprep.subr.mxu0 0.0
    %2203 = vmatpush1.msra.mxu0 0.0
    %2204 = vmatprep.mubr.f32.mxu0 0.0
    %2205 = vmatmul.mubr.f32.gmra.mrb[0].mxu0 %v1827
    %v2206 = vpop.f32.mrb[0].mxu0
    %v2207 = vadd.f32 0.0, %v2206
    %v2208 = vpop.f32.mrb[0].mxu0
    %2209 = vmatprep.mubr.f32.mxu0 0.0
    %2210 = vmatmul.mubr.f32.gmra.mrb[0].mxu0 %v1830
    %v2211 = vpop.f32.mrb[0].mxu0
    %v2212 = vadd.f32 0.0, %v2211
    %v2213 = vpop.f32.mrb[0].mxu0
    %2214 = vmatprep.mubr.f32.mxu0 0.0
    %2215 = vmatmul.mubr.f32.gmra.mrb[0].mxu0 %v1833
    %v2216 = vpop.f32.mrb[0].mxu0
    %v2217 = vadd.f32 0.0, %v2216
    %v2218 = vpop.f32.mrb[0].mxu0
    %2219 = vdwg.mxu0
    %2220 = vmatprep.subr.mxu0 0.0
    %2221 = vmatpush1.msra.mxu0 %v2123
    %2222 = vmatprep.subr.mxu0 0.0
    %2223 = vmatpush1.msra.mxu0 %v2124
    %2224 = vmatprep.subr.mxu0 0.0
    %2225 = vmatpush1.msra.mxu0 %v2125
    %2226 = vmatprep.subr.mxu0 0.0
    %2227 = vmatpush1.msra.mxu0 %v2126
    %2228 = vmatprep.subr.mxu0 0.0
    %2229 = vmatpush1.msra.mxu0 %v2127
    %2230 = vmatprep.subr.mxu0 0.0
    %2231 = vmatpush1.msra.mxu0 %v2128
    %2232 = vmatprep.subr.mxu0 0.0
    %2233 = vmatpush1.msra.mxu0 %v2129
    %2234 = vmatprep.subr.mxu0 0.0
    %2235 = vmatpush1.msra.mxu0 %v2130
    %2236 = vmatprep.subr.mxu0 0.0
    %2237 = vmatpush1.msra.mxu0 0.0
    %2238 = vmatprep.subr.mxu0 0.0
    %2239 = vmatpush1.msra.mxu0 0.0
    %2240 = vmatprep.subr.mxu0 0.0
    %2241 = vmatpush1.msra.mxu0 0.0
    %2242 = vmatprep.subr.mxu0 0.0
    %2243 = vmatpush1.msra.mxu0 0.0
    %2244 = vmatprep.subr.mxu0 0.0
    %2245 = vmatpush1.msra.mxu0 0.0
    %2246 = vmatprep.subr.mxu0 0.0
    %2247 = vmatpush1.msra.mxu0 0.0
    %2248 = vmatprep.subr.mxu0 0.0
    %2249 = vmatpush1.msra.mxu0 0.0
    %2250 = vmatprep.subr.mxu0 0.0
    %2251 = vmatpush1.msra.mxu0 0.0
    %2252 = vmatprep.subr.mxu0 0.0
    %2253 = vmatpush1.msra.mxu0 0.0
    %2254 = vmatprep.subr.mxu0 0.0
    %2255 = vmatpush1.msra.mxu0 0.0
    %2256 = vmatprep.subr.mxu0 0.0
    %2257 = vmatpush1.msra.mxu0 0.0
    %2258 = vmatprep.subr.mxu0 0.0
    %2259 = vmatpush1.msra.mxu0 0.0
    %2260 = vmatprep.subr.mxu0 0.0
    %2261 = vmatpush1.msra.mxu0 0.0
    %2262 = vmatprep.subr.mxu0 0.0
    %2263 = vmatpush1.msra.mxu0 0.0
    %2264 = vmatprep.subr.mxu0 0.0
    %2265 = vmatpush1.msra.mxu0 0.0
    %2266 = vmatprep.subr.mxu0 0.0
    %2267 = vmatpush1.msra.mxu0 0.0
    %2268 = vmatprep.subr.mxu0 0.0
    %2269 = vmatpush1.msra.mxu0 0.0
    %2270 = vmatprep.subr.mxu0 0.0
    %2271 = vmatpush1.msra.mxu0 0.0
    %2272 = vmatprep.subr.mxu0 0.0
    %2273 = vmatpush1.msra.mxu0 0.0
    %2274 = vmatprep.subr.mxu0 0.0
    %2275 = vmatpush1.msra.mxu0 0.0
    %2276 = vmatprep.subr.mxu0 0.0
    %2277 = vmatpush1.msra.mxu0 0.0
    %2278 = vmatprep.subr.mxu0 0.0
    %2279 = vmatpush1.msra.mxu0 0.0
    %2280 = vmatprep.subr.mxu0 0.0
    %2281 = vmatpush1.msra.mxu0 0.0
    %2282 = vmatprep.subr.mxu0 0.0
    %2283 = vmatpush1.msra.mxu0 0.0
    %2284 = vmatprep.mubr.f32.mxu0 0.0
    %2285 = vmatmul.mubr.f32.gmra.mrb[0].mxu0 %v1916
    %v2286 = vpop.f32.mrb[0].mxu0
    %v2287 = vadd.f32 %v2207, %v2286
    %v2288 = vpop.f32.mrb[0].mxu0
    %2289 = vmatprep.mubr.f32.mxu0 0.0
    %2290 = vmatmul.mubr.f32.gmra.mrb[0].mxu0 %v1919
    %v2291 = vpop.f32.mrb[0].mxu0
    %v2292 = vadd.f32 %v2212, %v2291
    %v2293 = vpop.f32.mrb[0].mxu0
    %2294 = vmatprep.mubr.f32.mxu0 0.0
    %2295 = vmatmul.mubr.f32.gmra.mrb[0].mxu0 %v1922
    %v2296 = vpop.f32.mrb[0].mxu0
    %v2297 = vadd.f32 %v2217, %v2296
    %v2298 = vpop.f32.mrb[0].mxu0
    %2299 = vdwg.mxu0
    %s2300 = scalar_lea.vmem [#allocation12], 320
    %v2301 = vld [vmem:[%s2300] sm:$0xff]
    %v2302 = vld [vmem:[%s2300 + $0x8] sm:$0xff]
    %v2303 = vld [vmem:[%s2300 + $0x10] sm:$0xff]
    %v2304 = vld [vmem:[%s2300 + $0x18] sm:$0xff]
    %v2305 = vld [vmem:[%s2300 + $0x20] sm:$0xff]
    %v2306 = vld [vmem:[%s2300 + $0x28] sm:$0xff]
    %v2307 = vld [vmem:[%s2300 + $0x30] sm:$0xff]
    %v2308 = vld [vmem:[%s2300 + $0x38] sm:$0xff]
    %2309 = vmatprep.subr.mxu0 0.0
    %2310 = vmatpush1.msra.mxu0 %v2301
    %2311 = vmatprep.subr.mxu0 0.0
    %2312 = vmatpush1.msra.mxu0 %v2302
    %2313 = vmatprep.subr.mxu0 0.0
    %2314 = vmatpush1.msra.mxu0 %v2303
    %2315 = vmatprep.subr.mxu0 0.0
    %2316 = vmatpush1.msra.mxu0 %v2304
    %2317 = vmatprep.subr.mxu0 0.0
    %2318 = vmatpush1.msra.mxu0 %v2305
    %2319 = vmatprep.subr.mxu0 0.0
    %2320 = vmatpush1.msra.mxu0 %v2306
    %2321 = vmatprep.subr.mxu0 0.0
    %2322 = vmatpush1.msra.mxu0 %v2307
    %2323 = vmatprep.subr.mxu0 0.0
    %2324 = vmatpush1.msra.mxu0 %v2308
    %2325 = vmatprep.subr.mxu0 0.0
    %2326 = vmatpush1.msra.mxu0 0.0
    %2327 = vmatprep.subr.mxu0 0.0
    %2328 = vmatpush1.msra.mxu0 0.0
    %2329 = vmatprep.subr.mxu0 0.0
    %2330 = vmatpush1.msra.mxu0 0.0
    %2331 = vmatprep.subr.mxu0 0.0
    %2332 = vmatpush1.msra.mxu0 0.0
    %2333 = vmatprep.subr.mxu0 0.0
    %2334 = vmatpush1.msra.mxu0 0.0
    %2335 = vmatprep.subr.mxu0 0.0
    %2336 = vmatpush1.msra.mxu0 0.0
    %2337 = vmatprep.subr.mxu0 0.0
    %2338 = vmatpush1.msra.mxu0 0.0
    %2339 = vmatprep.subr.mxu0 0.0
    %2340 = vmatpush1.msra.mxu0 0.0
    %2341 = vmatprep.subr.mxu0 0.0
    %2342 = vmatpush1.msra.mxu0 0.0
    %2343 = vmatprep.subr.mxu0 0.0
    %2344 = vmatpush1.msra.mxu0 0.0
    %2345 = vmatprep.subr.mxu0 0.0
    %2346 = vmatpush1.msra.mxu0 0.0
    %2347 = vmatprep.subr.mxu0 0.0
    %2348 = vmatpush1.msra.mxu0 0.0
    %2349 = vmatprep.subr.mxu0 0.0
    %2350 = vmatpush1.msra.mxu0 0.0
    %2351 = vmatprep.subr.mxu0 0.0
    %2352 = vmatpush1.msra.mxu0 0.0
    %2353 = vmatprep.subr.mxu0 0.0
    %2354 = vmatpush1.msra.mxu0 0.0
    %2355 = vmatprep.subr.mxu0 0.0
    %2356 = vmatpush1.msra.mxu0 0.0
    %2357 = vmatprep.subr.mxu0 0.0
    %2358 = vmatpush1.msra.mxu0 0.0
    %2359 = vmatprep.subr.mxu0 0.0
    %2360 = vmatpush1.msra.mxu0 0.0
    %2361 = vmatprep.subr.mxu0 0.0
    %2362 = vmatpush1.msra.mxu0 0.0
    %2363 = vmatprep.subr.mxu0 0.0
    %2364 = vmatpush1.msra.mxu0 0.0
    %2365 = vmatprep.subr.mxu0 0.0
    %2366 = vmatpush1.msra.mxu0 0.0
    %2367 = vmatprep.subr.mxu0 0.0
    %2368 = vmatpush1.msra.mxu0 0.0
    %2369 = vmatprep.subr.mxu0 0.0
    %2370 = vmatpush1.msra.mxu0 0.0
    %2371 = vmatprep.subr.mxu0 0.0
    %2372 = vmatpush1.msra.mxu0 0.0
    %2373 = vmatprep.mubr.f32.mxu0 0.0
    %2374 = vmatmul.mubr.f32.gmra.mrb[0].mxu0 %v2017
    %v2375 = vpop.f32.mrb[0].mxu0
    %v2376 = vadd.f32 0.0, %v2375
    %v2377 = vpop.f32.mrb[0].mxu0
    %2378 = vmatprep.mubr.f32.mxu0 0.0
    %2379 = vmatmul.mubr.f32.gmra.mrb[0].mxu0 %v2020
    %v2380 = vpop.f32.mrb[0].mxu0
    %v2381 = vadd.f32 0.0, %v2380
    %v2382 = vpop.f32.mrb[0].mxu0
    %2383 = vmatprep.mubr.f32.mxu0 0.0
    %2384 = vmatmul.mubr.f32.gmra.mrb[0].mxu0 %v2023
    %v2385 = vpop.f32.mrb[0].mxu0
    %v2386 = vadd.f32 0.0, %v2385
    %v2387 = vpop.f32.mrb[0].mxu0
    %2388 = vdwg.mxu0
    %v2389 = vadd.f32 %v2287, %v2376
    %v2390 = vadd.f32 %v2292, %v2381
    %v2391 = vadd.f32 %v2297, %v2386
    %v2392 = vmul.f32 %v2389, %v2111
    %v2393 = vmul.f32 %v2390, %v2111
    %v2394 = vmul.f32 %v2391, %v2111
    %v2395 = vadd.f32 %v2392, %v2118
    %v2396 = vadd.f32 %v2393, %v2118
    %v2397 = vadd.f32 %v2394, %v2118
    %v2398 = vmax.f32 %v2119, %v2395
    %v2399 = vmax.f32 %v2120, %v2396
    %v2400 = vmax.f32 %v2121, %v2397
    %2401 = vst.msk [vmem:[#allocation6] sm:$0xff] %vm112, %v2398
    %2402 = vst.msk [vmem:[#allocation6 + $0x8] sm:$0xff] %vm112, %v2399
    %2403 = vst.msk [vmem:[#allocation6 + $0x10] sm:$0x3] %vm1774, %v2400
    %v2404 = vld [vmem:[#allocation6] ss:$2 sm:$0xf]
    %v2405 = vld [vmem:[%s1777] ss:$2 sm:$0xf]
    %v2406 = vmax.f32 %v2404, %v2405
    %v2407 = vmax.f32 %v2406, 0.0
    %2408 = vst.msk [vmem:[%s8] sm:$0xf] %vm115, %v2407
    %2409 = vst.msk [vmem:[#allocation4 + $0x1] sm:$0xf] %vm115, %v2407
    %s2410 = scalar_lea.vmem [#allocation6], 10
    %v2411 = vld [vmem:[%s2410] ss:$2 sm:$0xf]
    %s2412 = scalar_lea.vmem [#allocation6], 11
    %v2413 = vld [vmem:[%s2412] ss:$2 sm:$0xf]
    %v2414 = vmax.f32 %v2411, %v2413
    %v2415 = vmax.f32 %v2414, 0.0
    %2416 = vst.msk [vmem:[%s8 + $0x4] sm:$0xf] %vm115, %v2415
    %2417 = vst.msk [vmem:[#allocation4 + $0x7] sm:$0xf] %vm115, %v2415
    %v2418 = vld [vmem:[#allocation4] sm:$0xff]
    %v2419 = vld [vmem:[#allocation4 + $0x8] sm:$0x3]
    %v2420 = vld [vmem:[#allocation13] sm:$0xff]
    %v2421 = vld [vmem:[#allocation13 + $0x8] sm:$0xff]
    %v2422 = vld [vmem:[#allocation13 + $0x10] sm:$0xff]
    %v2423 = vld [vmem:[#allocation13 + $0x18] sm:$0xff]
    %v2424 = vld [vmem:[#allocation13 + $0x20] sm:$0xff]
    %v2425 = vld [vmem:[#allocation13 + $0x28] sm:$0xff]
    %v2426 = vld [vmem:[#allocation13 + $0x30] sm:$0xff]
    %v2427 = vld [vmem:[#allocation13 + $0x38] sm:$0xff]
    %v2428 = vld [vmem:[#allocation4 + $0x1] sm:$0xff]
    %v2429 = vld [vmem:[#allocation4 + $0x9] sm:$0x3]
    %s2430 = scalar_lea.vmem [#allocation13], 128
    %v2431 = vld [vmem:[%s2430] sm:$0xff]
    %v2432 = vld [vmem:[%s2430 + $0x8] sm:$0xff]
    %v2433 = vld [vmem:[%s2430 + $0x10] sm:$0xff]
    %v2434 = vld [vmem:[%s2430 + $0x18] sm:$0xff]
    %v2435 = vld [vmem:[%s2430 + $0x20] sm:$0xff]
    %v2436 = vld [vmem:[%s2430 + $0x28] sm:$0xff]
    %v2437 = vld [vmem:[%s2430 + $0x30] sm:$0xff]
    %v2438 = vld [vmem:[%s2430 + $0x38] sm:$0xff]
    %v2440 = vsel %vm112, %v2428, 0
    %v2443 = vsel %vm112, %v2429, 0
    %2445 = vmatprep.subr.mxu0 0.0
    %2446 = vmatpush1.msra.mxu0 %v2431
    %2447 = vmatprep.subr.mxu0 0.0
    %2448 = vmatpush1.msra.mxu0 %v2432
    %2449 = vmatprep.subr.mxu0 0.0
    %2450 = vmatpush1.msra.mxu0 %v2433
    %2451 = vmatprep.subr.mxu0 0.0
    %2452 = vmatpush1.msra.mxu0 %v2434
    %2453 = vmatprep.subr.mxu0 0.0
    %2454 = vmatpush1.msra.mxu0 %v2435
    %2455 = vmatprep.subr.mxu0 0.0
    %2456 = vmatpush1.msra.mxu0 %v2436
    %2457 = vmatprep.subr.mxu0 0.0
    %2458 = vmatpush1.msra.mxu0 %v2437
    %2459 = vmatprep.subr.mxu0 0.0
    %2460 = vmatpush1.msra.mxu0 %v2438
    %2461 = vmatprep.subr.mxu0 0.0
    %2462 = vmatpush1.msra.mxu0 0.0
    %2463 = vmatprep.subr.mxu0 0.0
    %2464 = vmatpush1.msra.mxu0 0.0
    %2465 = vmatprep.subr.mxu0 0.0
    %2466 = vmatpush1.msra.mxu0 0.0
    %2467 = vmatprep.subr.mxu0 0.0
    %2468 = vmatpush1.msra.mxu0 0.0
    %2469 = vmatprep.subr.mxu0 0.0
    %2470 = vmatpush1.msra.mxu0 0.0
    %2471 = vmatprep.subr.mxu0 0.0
    %2472 = vmatpush1.msra.mxu0 0.0
    %2473 = vmatprep.subr.mxu0 0.0
    %2474 = vmatpush1.msra.mxu0 0.0
    %2475 = vmatprep.subr.mxu0 0.0
    %2476 = vmatpush1.msra.mxu0 0.0
    %2477 = vmatprep.subr.mxu0 0.0
    %2478 = vmatpush1.msra.mxu0 0.0
    %2479 = vmatprep.subr.mxu0 0.0
    %2480 = vmatpush1.msra.mxu0 0.0
    %2481 = vmatprep.subr.mxu0 0.0
    %2482 = vmatpush1.msra.mxu0 0.0
    %2483 = vmatprep.subr.mxu0 0.0
    %2484 = vmatpush1.msra.mxu0 0.0
    %2485 = vmatprep.subr.mxu0 0.0
    %2486 = vmatpush1.msra.mxu0 0.0
    %2487 = vmatprep.subr.mxu0 0.0
    %2488 = vmatpush1.msra.mxu0 0.0
    %2489 = vmatprep.subr.mxu0 0.0
    %2490 = vmatpush1.msra.mxu0 0.0
    %2491 = vmatprep.subr.mxu0 0.0
    %2492 = vmatpush1.msra.mxu0 0.0
    %2493 = vmatprep.subr.mxu0 0.0
    %2494 = vmatpush1.msra.mxu0 0.0
    %2495 = vmatprep.subr.mxu0 0.0
    %2496 = vmatpush1.msra.mxu0 0.0
    %2497 = vmatprep.subr.mxu0 0.0
    %2498 = vmatpush1.msra.mxu0 0.0
    %2499 = vmatprep.subr.mxu0 0.0
    %2500 = vmatpush1.msra.mxu0 0.0
    %2501 = vmatprep.subr.mxu0 0.0
    %2502 = vmatpush1.msra.mxu0 0.0
    %2503 = vmatprep.subr.mxu0 0.0
    %2504 = vmatpush1.msra.mxu0 0.0
    %2505 = vmatprep.subr.mxu0 0.0
    %2506 = vmatpush1.msra.mxu0 0.0
    %2507 = vmatprep.subr.mxu0 0.0
    %2508 = vmatpush1.msra.mxu0 0.0
    %2509 = vmatprep.mubr.f32.mxu0 0.0
    %2510 = vmatmul.mubr.f32.gmra.mrb[0].mxu0 %v2440
    %v2511 = vpop.f32.mrb[0].mxu0
    %v2512 = vadd.f32 0.0, %v2511
    %v2513 = vpop.f32.mrb[0].mxu0
    %2514 = vmatprep.mubr.f32.mxu0 0.0
    %2515 = vmatmul.mubr.f32.gmra.mrb[0].mxu0 %v2443
    %v2516 = vpop.f32.mrb[0].mxu0
    %v2517 = vadd.f32 0.0, %v2516
    %v2518 = vpop.f32.mrb[0].mxu0
    %2519 = vdwg.mxu0
    %v2521 = vsel %vm112, %v2418, 0
    %v2524 = vsel %vm112, %v2419, 0
    %2526 = vmatprep.subr.mxu0 0.0
    %2527 = vmatpush1.msra.mxu0 %v2420
    %2528 = vmatprep.subr.mxu0 0.0
    %2529 = vmatpush1.msra.mxu0 %v2421
    %2530 = vmatprep.subr.mxu0 0.0
    %2531 = vmatpush1.msra.mxu0 %v2422
    %2532 = vmatprep.subr.mxu0 0.0
    %2533 = vmatpush1.msra.mxu0 %v2423
    %2534 = vmatprep.subr.mxu0 0.0
    %2535 = vmatpush1.msra.mxu0 %v2424
    %2536 = vmatprep.subr.mxu0 0.0
    %2537 = vmatpush1.msra.mxu0 %v2425
    %2538 = vmatprep.subr.mxu0 0.0
    %2539 = vmatpush1.msra.mxu0 %v2426
    %2540 = vmatprep.subr.mxu0 0.0
    %2541 = vmatpush1.msra.mxu0 %v2427
    %2542 = vmatprep.subr.mxu0 0.0
    %2543 = vmatpush1.msra.mxu0 0.0
    %2544 = vmatprep.subr.mxu0 0.0
    %2545 = vmatpush1.msra.mxu0 0.0
    %2546 = vmatprep.subr.mxu0 0.0
    %2547 = vmatpush1.msra.mxu0 0.0
    %2548 = vmatprep.subr.mxu0 0.0
    %2549 = vmatpush1.msra.mxu0 0.0
    %2550 = vmatprep.subr.mxu0 0.0
    %2551 = vmatpush1.msra.mxu0 0.0
    %2552 = vmatprep.subr.mxu0 0.0
    %2553 = vmatpush1.msra.mxu0 0.0
    %2554 = vmatprep.subr.mxu0 0.0
    %2555 = vmatpush1.msra.mxu0 0.0
    %2556 = vmatprep.subr.mxu0 0.0
    %2557 = vmatpush1.msra.mxu0 0.0
    %2558 = vmatprep.subr.mxu0 0.0
    %2559 = vmatpush1.msra.mxu0 0.0
    %2560 = vmatprep.subr.mxu0 0.0
    %2561 = vmatpush1.msra.mxu0 0.0
    %2562 = vmatprep.subr.mxu0 0.0
    %2563 = vmatpush1.msra.mxu0 0.0
    %2564 = vmatprep.subr.mxu0 0.0
    %2565 = vmatpush1.msra.mxu0 0.0
    %2566 = vmatprep.subr.mxu0 0.0
    %2567 = vmatpush1.msra.mxu0 0.0
    %2568 = vmatprep.subr.mxu0 0.0
    %2569 = vmatpush1.msra.mxu0 0.0
    %2570 = vmatprep.subr.mxu0 0.0
    %2571 = vmatpush1.msra.mxu0 0.0
    %2572 = vmatprep.subr.mxu0 0.0
    %2573 = vmatpush1.msra.mxu0 0.0
    %2574 = vmatprep.subr.mxu0 0.0
    %2575 = vmatpush1.msra.mxu0 0.0
    %2576 = vmatprep.subr.mxu0 0.0
    %2577 = vmatpush1.msra.mxu0 0.0
    %2578 = vmatprep.subr.mxu0 0.0
    %2579 = vmatpush1.msra.mxu0 0.0
    %2580 = vmatprep.subr.mxu0 0.0
    %2581 = vmatpush1.msra.mxu0 0.0
    %2582 = vmatprep.subr.mxu0 0.0
    %2583 = vmatpush1.msra.mxu0 0.0
    %2584 = vmatprep.subr.mxu0 0.0
    %2585 = vmatpush1.msra.mxu0 0.0
    %2586 = vmatprep.subr.mxu0 0.0
    %2587 = vmatpush1.msra.mxu0 0.0
    %2588 = vmatprep.subr.mxu0 0.0
    %2589 = vmatpush1.msra.mxu0 0.0
    %2590 = vmatprep.mubr.f32.mxu0 0.0
    %2591 = vmatmul.mubr.f32.gmra.mrb[0].mxu0 %v2521
    %v2592 = vpop.f32.mrb[0].mxu0
    %v2593 = vadd.f32 %v2512, %v2592
    %v2594 = vpop.f32.mrb[0].mxu0
    %2595 = vmatprep.mubr.f32.mxu0 0.0
    %2596 = vmatmul.mubr.f32.gmra.mrb[0].mxu0 %v2524
    %v2597 = vpop.f32.mrb[0].mxu0
    %v2598 = vadd.f32 %v2517, %v2597
    %v2599 = vpop.f32.mrb[0].mxu0
    %2600 = vdwg.mxu0
    %v2601 = vld [vmem:[#allocation4 + $0x2] sm:$0xff]
    %v2602 = vld [vmem:[#allocation4 + $0xa] sm:$0x3]
    %s2603 = scalar_lea.vmem [#allocation13], 256
    %v2604 = vld [vmem:[%s2603] sm:$0xff]
    %v2605 = vld [vmem:[%s2603 + $0x8] sm:$0xff]
    %v2606 = vld [vmem:[%s2603 + $0x10] sm:$0xff]
    %v2607 = vld [vmem:[%s2603 + $0x18] sm:$0xff]
    %v2608 = vld [vmem:[%s2603 + $0x20] sm:$0xff]
    %v2609 = vld [vmem:[%s2603 + $0x28] sm:$0xff]
    %v2610 = vld [vmem:[%s2603 + $0x30] sm:$0xff]
    %v2611 = vld [vmem:[%s2603 + $0x38] sm:$0xff]
    %v2613 = vsel %vm112, %v2601, 0
    %v2616 = vsel %vm112, %v2602, 0
    %2618 = vmatprep.subr.mxu0 0.0
    %2619 = vmatpush1.msra.mxu0 %v2604
    %2620 = vmatprep.subr.mxu0 0.0
    %2621 = vmatpush1.msra.mxu0 %v2605
    %2622 = vmatprep.subr.mxu0 0.0
    %2623 = vmatpush1.msra.mxu0 %v2606
    %2624 = vmatprep.subr.mxu0 0.0
    %2625 = vmatpush1.msra.mxu0 %v2607
    %2626 = vmatprep.subr.mxu0 0.0
    %2627 = vmatpush1.msra.mxu0 %v2608
    %2628 = vmatprep.subr.mxu0 0.0
    %2629 = vmatpush1.msra.mxu0 %v2609
    %2630 = vmatprep.subr.mxu0 0.0
    %2631 = vmatpush1.msra.mxu0 %v2610
    %2632 = vmatprep.subr.mxu0 0.0
    %2633 = vmatpush1.msra.mxu0 %v2611
    %2634 = vmatprep.subr.mxu0 0.0
    %2635 = vmatpush1.msra.mxu0 0.0
    %2636 = vmatprep.subr.mxu0 0.0
    %2637 = vmatpush1.msra.mxu0 0.0
    %2638 = vmatprep.subr.mxu0 0.0
    %2639 = vmatpush1.msra.mxu0 0.0
    %2640 = vmatprep.subr.mxu0 0.0
    %2641 = vmatpush1.msra.mxu0 0.0
    %2642 = vmatprep.subr.mxu0 0.0
    %2643 = vmatpush1.msra.mxu0 0.0
    %2644 = vmatprep.subr.mxu0 0.0
    %2645 = vmatpush1.msra.mxu0 0.0
    %2646 = vmatprep.subr.mxu0 0.0
    %2647 = vmatpush1.msra.mxu0 0.0
    %2648 = vmatprep.subr.mxu0 0.0
    %2649 = vmatpush1.msra.mxu0 0.0
    %2650 = vmatprep.subr.mxu0 0.0
    %2651 = vmatpush1.msra.mxu0 0.0
    %2652 = vmatprep.subr.mxu0 0.0
    %2653 = vmatpush1.msra.mxu0 0.0
    %2654 = vmatprep.subr.mxu0 0.0
    %2655 = vmatpush1.msra.mxu0 0.0
    %2656 = vmatprep.subr.mxu0 0.0
    %2657 = vmatpush1.msra.mxu0 0.0
    %2658 = vmatprep.subr.mxu0 0.0
    %2659 = vmatpush1.msra.mxu0 0.0
    %2660 = vmatprep.subr.mxu0 0.0
    %2661 = vmatpush1.msra.mxu0 0.0
    %2662 = vmatprep.subr.mxu0 0.0
    %2663 = vmatpush1.msra.mxu0 0.0
    %2664 = vmatprep.subr.mxu0 0.0
    %2665 = vmatpush1.msra.mxu0 0.0
    %2666 = vmatprep.subr.mxu0 0.0
    %2667 = vmatpush1.msra.mxu0 0.0
    %2668 = vmatprep.subr.mxu0 0.0
    %2669 = vmatpush1.msra.mxu0 0.0
    %2670 = vmatprep.subr.mxu0 0.0
    %2671 = vmatpush1.msra.mxu0 0.0
    %2672 = vmatprep.subr.mxu0 0.0
    %2673 = vmatpush1.msra.mxu0 0.0
    %2674 = vmatprep.subr.mxu0 0.0
    %2675 = vmatpush1.msra.mxu0 0.0
    %2676 = vmatprep.subr.mxu0 0.0
    %2677 = vmatpush1.msra.mxu0 0.0
    %2678 = vmatprep.subr.mxu0 0.0
    %2679 = vmatpush1.msra.mxu0 0.0
    %2680 = vmatprep.subr.mxu0 0.0
    %2681 = vmatpush1.msra.mxu0 0.0
    %2682 = vmatprep.mubr.f32.mxu0 0.0
    %2683 = vmatmul.mubr.f32.gmra.mrb[0].mxu0 %v2613
    %v2684 = vpop.f32.mrb[0].mxu0
    %v2685 = vadd.f32 0.0, %v2684
    %v2686 = vpop.f32.mrb[0].mxu0
    %2687 = vmatprep.mubr.f32.mxu0 0.0
    %2688 = vmatmul.mubr.f32.gmra.mrb[0].mxu0 %v2616
    %v2689 = vpop.f32.mrb[0].mxu0
    %v2690 = vadd.f32 0.0, %v2689
    %v2691 = vpop.f32.mrb[0].mxu0
    %2692 = vdwg.mxu0
    %v2693 = vadd.f32 %v2593, %v2685
    %v2694 = vadd.f32 %v2598, %v2690
    %v2695 = vlaneseq
    %v2696 = vshrl.u32 %v2695, 7
    %v2697 = vsub.s32 2, %v2696
    %v2698 = vrot.slane %v99, %v2697
    %v2699 = vmul.f32 %v2693, %v2698
    %v2700 = vmul.f32 %v2694, %v2698
    %v2701 = vlaneseq
    %v2702 = vshrl.u32 %v2701, 7
    %v2703 = vsub.s32 2, %v2702
    %v2704 = vrot.slane %v100, %v2703
    %v2705 = vadd.f32 %v2699, %v2704
    %v2706 = vadd.f32 %v2700, %v2704
    %s2707 = scalar_lea.vmem [#allocation13], 64
    %v2708 = vld [vmem:[%s2707] sm:$0xff]
    %v2709 = vld [vmem:[%s2707 + $0x8] sm:$0xff]
    %v2710 = vld [vmem:[%s2707 + $0x10] sm:$0xff]
    %v2711 = vld [vmem:[%s2707 + $0x18] sm:$0xff]
    %v2712 = vld [vmem:[%s2707 + $0x20] sm:$0xff]
    %v2713 = vld [vmem:[%s2707 + $0x28] sm:$0xff]
    %v2714 = vld [vmem:[%s2707 + $0x30] sm:$0xff]
    %v2715 = vld [vmem:[%s2707 + $0x38] sm:$0xff]
    %s2716 = scalar_lea.vmem [#allocation13], 192
    %v2717 = vld [vmem:[%s2716] sm:$0xff]
    %v2718 = vld [vmem:[%s2716 + $0x8] sm:$0xff]
    %v2719 = vld [vmem:[%s2716 + $0x10] sm:$0xff]
    %v2720 = vld [vmem:[%s2716 + $0x18] sm:$0xff]
    %v2721 = vld [vmem:[%s2716 + $0x20] sm:$0xff]
    %v2722 = vld [vmem:[%s2716 + $0x28] sm:$0xff]
    %v2723 = vld [vmem:[%s2716 + $0x30] sm:$0xff]
    %v2724 = vld [vmem:[%s2716 + $0x38] sm:$0xff]
    %2725 = vmatprep.subr.mxu0 0.0
    %2726 = vmatpush1.msra.mxu0 %v2717
    %2727 = vmatprep.subr.mxu0 0.0
    %2728 = vmatpush1.msra.mxu0 %v2718
    %2729 = vmatprep.subr.mxu0 0.0
    %2730 = vmatpush1.msra.mxu0 %v2719
    %2731 = vmatprep.subr.mxu0 0.0
    %2732 = vmatpush1.msra.mxu0 %v2720
    %2733 = vmatprep.subr.mxu0 0.0
    %2734 = vmatpush1.msra.mxu0 %v2721
    %2735 = vmatprep.subr.mxu0 0.0
    %2736 = vmatpush1.msra.mxu0 %v2722
    %2737 = vmatprep.subr.mxu0 0.0
    %2738 = vmatpush1.msra.mxu0 %v2723
    %2739 = vmatprep.subr.mxu0 0.0
    %2740 = vmatpush1.msra.mxu0 %v2724
    %2741 = vmatprep.subr.mxu0 0.0
    %2742 = vmatpush1.msra.mxu0 0.0
    %2743 = vmatprep.subr.mxu0 0.0
    %2744 = vmatpush1.msra.mxu0 0.0
    %2745 = vmatprep.subr.mxu0 0.0
    %2746 = vmatpush1.msra.mxu0 0.0
    %2747 = vmatprep.subr.mxu0 0.0
    %2748 = vmatpush1.msra.mxu0 0.0
    %2749 = vmatprep.subr.mxu0 0.0
    %2750 = vmatpush1.msra.mxu0 0.0
    %2751 = vmatprep.subr.mxu0 0.0
    %2752 = vmatpush1.msra.mxu0 0.0
    %2753 = vmatprep.subr.mxu0 0.0
    %2754 = vmatpush1.msra.mxu0 0.0
    %2755 = vmatprep.subr.mxu0 0.0
    %2756 = vmatpush1.msra.mxu0 0.0
    %2757 = vmatprep.subr.mxu0 0.0
    %2758 = vmatpush1.msra.mxu0 0.0
    %2759 = vmatprep.subr.mxu0 0.0
    %2760 = vmatpush1.msra.mxu0 0.0
    %2761 = vmatprep.subr.mxu0 0.0
    %2762 = vmatpush1.msra.mxu0 0.0
    %2763 = vmatprep.subr.mxu0 0.0
    %2764 = vmatpush1.msra.mxu0 0.0
    %2765 = vmatprep.subr.mxu0 0.0
    %2766 = vmatpush1.msra.mxu0 0.0
    %2767 = vmatprep.subr.mxu0 0.0
    %2768 = vmatpush1.msra.mxu0 0.0
    %2769 = vmatprep.subr.mxu0 0.0
    %2770 = vmatpush1.msra.mxu0 0.0
    %2771 = vmatprep.subr.mxu0 0.0
    %2772 = vmatpush1.msra.mxu0 0.0
    %2773 = vmatprep.subr.mxu0 0.0
    %2774 = vmatpush1.msra.mxu0 0.0
    %2775 = vmatprep.subr.mxu0 0.0
    %2776 = vmatpush1.msra.mxu0 0.0
    %2777 = vmatprep.subr.mxu0 0.0
    %2778 = vmatpush1.msra.mxu0 0.0
    %2779 = vmatprep.subr.mxu0 0.0
    %2780 = vmatpush1.msra.mxu0 0.0
    %2781 = vmatprep.subr.mxu0 0.0
    %2782 = vmatpush1.msra.mxu0 0.0
    %2783 = vmatprep.subr.mxu0 0.0
    %2784 = vmatpush1.msra.mxu0 0.0
    %2785 = vmatprep.subr.mxu0 0.0
    %2786 = vmatpush1.msra.mxu0 0.0
    %2787 = vmatprep.subr.mxu0 0.0
    %2788 = vmatpush1.msra.mxu0 0.0
    %2789 = vmatprep.mubr.f32.mxu0 0.0
    %2790 = vmatmul.mubr.f32.gmra.mrb[0].mxu0 %v2440
    %v2791 = vpop.f32.mrb[0].mxu0
    %v2792 = vadd.f32 0.0, %v2791
    %v2793 = vpop.f32.mrb[0].mxu0
    %2794 = vmatprep.mubr.f32.mxu0 0.0
    %2795 = vmatmul.mubr.f32.gmra.mrb[0].mxu0 %v2443
    %v2796 = vpop.f32.mrb[0].mxu0
    %v2797 = vadd.f32 0.0, %v2796
    %v2798 = vpop.f32.mrb[0].mxu0
    %2799 = vdwg.mxu0
    %2800 = vmatprep.subr.mxu0 0.0
    %2801 = vmatpush1.msra.mxu0 %v2708
    %2802 = vmatprep.subr.mxu0 0.0
    %2803 = vmatpush1.msra.mxu0 %v2709
    %2804 = vmatprep.subr.mxu0 0.0
    %2805 = vmatpush1.msra.mxu0 %v2710
    %2806 = vmatprep.subr.mxu0 0.0
    %2807 = vmatpush1.msra.mxu0 %v2711
    %2808 = vmatprep.subr.mxu0 0.0
    %2809 = vmatpush1.msra.mxu0 %v2712
    %2810 = vmatprep.subr.mxu0 0.0
    %2811 = vmatpush1.msra.mxu0 %v2713
    %2812 = vmatprep.subr.mxu0 0.0
    %2813 = vmatpush1.msra.mxu0 %v2714
    %2814 = vmatprep.subr.mxu0 0.0
    %2815 = vmatpush1.msra.mxu0 %v2715
    %2816 = vmatprep.subr.mxu0 0.0
    %2817 = vmatpush1.msra.mxu0 0.0
    %2818 = vmatprep.subr.mxu0 0.0
    %2819 = vmatpush1.msra.mxu0 0.0
    %2820 = vmatprep.subr.mxu0 0.0
    %2821 = vmatpush1.msra.mxu0 0.0
    %2822 = vmatprep.subr.mxu0 0.0
    %2823 = vmatpush1.msra.mxu0 0.0
    %2824 = vmatprep.subr.mxu0 0.0
    %2825 = vmatpush1.msra.mxu0 0.0
    %2826 = vmatprep.subr.mxu0 0.0
    %2827 = vmatpush1.msra.mxu0 0.0
    %2828 = vmatprep.subr.mxu0 0.0
    %2829 = vmatpush1.msra.mxu0 0.0
    %2830 = vmatprep.subr.mxu0 0.0
    %2831 = vmatpush1.msra.mxu0 0.0
    %2832 = vmatprep.subr.mxu0 0.0
    %2833 = vmatpush1.msra.mxu0 0.0
    %2834 = vmatprep.subr.mxu0 0.0
    %2835 = vmatpush1.msra.mxu0 0.0
    %2836 = vmatprep.subr.mxu0 0.0
    %2837 = vmatpush1.msra.mxu0 0.0
    %2838 = vmatprep.subr.mxu0 0.0
    %2839 = vmatpush1.msra.mxu0 0.0
    %2840 = vmatprep.subr.mxu0 0.0
    %2841 = vmatpush1.msra.mxu0 0.0
    %2842 = vmatprep.subr.mxu0 0.0
    %2843 = vmatpush1.msra.mxu0 0.0
    %2844 = vmatprep.subr.mxu0 0.0
    %2845 = vmatpush1.msra.mxu0 0.0
    %2846 = vmatprep.subr.mxu0 0.0
    %2847 = vmatpush1.msra.mxu0 0.0
    %2848 = vmatprep.subr.mxu0 0.0
    %2849 = vmatpush1.msra.mxu0 0.0
    %2850 = vmatprep.subr.mxu0 0.0
    %2851 = vmatpush1.msra.mxu0 0.0
    %2852 = vmatprep.subr.mxu0 0.0
    %2853 = vmatpush1.msra.mxu0 0.0
    %2854 = vmatprep.subr.mxu0 0.0
    %2855 = vmatpush1.msra.mxu0 0.0
    %2856 = vmatprep.subr.mxu0 0.0
    %2857 = vmatpush1.msra.mxu0 0.0
    %2858 = vmatprep.subr.mxu0 0.0
    %2859 = vmatpush1.msra.mxu0 0.0
    %2860 = vmatprep.subr.mxu0 0.0
    %2861 = vmatpush1.msra.mxu0 0.0
    %2862 = vmatprep.subr.mxu0 0.0
    %2863 = vmatpush1.msra.mxu0 0.0
    %2864 = vmatprep.mubr.f32.mxu0 0.0
    %2865 = vmatmul.mubr.f32.gmra.mrb[0].mxu0 %v2521
    %v2866 = vpop.f32.mrb[0].mxu0
    %v2867 = vadd.f32 %v2792, %v2866
    %v2868 = vpop.f32.mrb[0].mxu0
    %2869 = vmatprep.mubr.f32.mxu0 0.0
    %2870 = vmatmul.mubr.f32.gmra.mrb[0].mxu0 %v2524
    %v2871 = vpop.f32.mrb[0].mxu0
    %v2872 = vadd.f32 %v2797, %v2871
    %v2873 = vpop.f32.mrb[0].mxu0
    %2874 = vdwg.mxu0
    %s2875 = scalar_lea.vmem [#allocation13], 320
    %v2876 = vld [vmem:[%s2875] sm:$0xff]
    %v2877 = vld [vmem:[%s2875 + $0x8] sm:$0xff]
    %v2878 = vld [vmem:[%s2875 + $0x10] sm:$0xff]
    %v2879 = vld [vmem:[%s2875 + $0x18] sm:$0xff]
    %v2880 = vld [vmem:[%s2875 + $0x20] sm:$0xff]
    %v2881 = vld [vmem:[%s2875 + $0x28] sm:$0xff]
    %v2882 = vld [vmem:[%s2875 + $0x30] sm:$0xff]
    %v2883 = vld [vmem:[%s2875 + $0x38] sm:$0xff]
    %2884 = vmatprep.subr.mxu0 0.0
    %2885 = vmatpush1.msra.mxu0 %v2876
    %2886 = vmatprep.subr.mxu0 0.0
    %2887 = vmatpush1.msra.mxu0 %v2877
    %2888 = vmatprep.subr.mxu0 0.0
    %2889 = vmatpush1.msra.mxu0 %v2878
    %2890 = vmatprep.subr.mxu0 0.0
    %2891 = vmatpush1.msra.mxu0 %v2879
    %2892 = vmatprep.subr.mxu0 0.0
    %2893 = vmatpush1.msra.mxu0 %v2880
    %2894 = vmatprep.subr.mxu0 0.0
    %2895 = vmatpush1.msra.mxu0 %v2881
    %2896 = vmatprep.subr.mxu0 0.0
    %2897 = vmatpush1.msra.mxu0 %v2882
    %2898 = vmatprep.subr.mxu0 0.0
    %2899 = vmatpush1.msra.mxu0 %v2883
    %2900 = vmatprep.subr.mxu0 0.0
    %2901 = vmatpush1.msra.mxu0 0.0
    %2902 = vmatprep.subr.mxu0 0.0
    %2903 = vmatpush1.msra.mxu0 0.0
    %2904 = vmatprep.subr.mxu0 0.0
    %2905 = vmatpush1.msra.mxu0 0.0
    %2906 = vmatprep.subr.mxu0 0.0
    %2907 = vmatpush1.msra.mxu0 0.0
    %2908 = vmatprep.subr.mxu0 0.0
    %2909 = vmatpush1.msra.mxu0 0.0
    %2910 = vmatprep.subr.mxu0 0.0
    %2911 = vmatpush1.msra.mxu0 0.0
    %2912 = vmatprep.subr.mxu0 0.0
    %2913 = vmatpush1.msra.mxu0 0.0
    %2914 = vmatprep.subr.mxu0 0.0
    %2915 = vmatpush1.msra.mxu0 0.0
    %2916 = vmatprep.subr.mxu0 0.0
    %2917 = vmatpush1.msra.mxu0 0.0
    %2918 = vmatprep.subr.mxu0 0.0
    %2919 = vmatpush1.msra.mxu0 0.0
    %2920 = vmatprep.subr.mxu0 0.0
    %2921 = vmatpush1.msra.mxu0 0.0
    %2922 = vmatprep.subr.mxu0 0.0
    %2923 = vmatpush1.msra.mxu0 0.0
    %2924 = vmatprep.subr.mxu0 0.0
    %2925 = vmatpush1.msra.mxu0 0.0
    %2926 = vmatprep.subr.mxu0 0.0
    %2927 = vmatpush1.msra.mxu0 0.0
    %2928 = vmatprep.subr.mxu0 0.0
    %2929 = vmatpush1.msra.mxu0 0.0
    %2930 = vmatprep.subr.mxu0 0.0
    %2931 = vmatpush1.msra.mxu0 0.0
    %2932 = vmatprep.subr.mxu0 0.0
    %2933 = vmatpush1.msra.mxu0 0.0
    %2934 = vmatprep.subr.mxu0 0.0
    %2935 = vmatpush1.msra.mxu0 0.0
    %2936 = vmatprep.subr.mxu0 0.0
    %2937 = vmatpush1.msra.mxu0 0.0
    %2938 = vmatprep.subr.mxu0 0.0
    %2939 = vmatpush1.msra.mxu0 0.0
    %2940 = vmatprep.subr.mxu0 0.0
    %2941 = vmatpush1.msra.mxu0 0.0
    %2942 = vmatprep.subr.mxu0 0.0
    %2943 = vmatpush1.msra.mxu0 0.0
    %2944 = vmatprep.subr.mxu0 0.0
    %2945 = vmatpush1.msra.mxu0 0.0
    %2946 = vmatprep.subr.mxu0 0.0
    %2947 = vmatpush1.msra.mxu0 0.0
    %2948 = vmatprep.mubr.f32.mxu0 0.0
    %2949 = vmatmul.mubr.f32.gmra.mrb[0].mxu0 %v2613
    %v2950 = vpop.f32.mrb[0].mxu0
    %v2951 = vadd.f32 0.0, %v2950
    %v2952 = vpop.f32.mrb[0].mxu0
    %2953 = vmatprep.mubr.f32.mxu0 0.0
    %2954 = vmatmul.mubr.f32.gmra.mrb[0].mxu0 %v2616
    %v2955 = vpop.f32.mrb[0].mxu0
    %v2956 = vadd.f32 0.0, %v2955
    %v2957 = vpop.f32.mrb[0].mxu0
    %2958 = vdwg.mxu0
    %v2959 = vadd.f32 %v2867, %v2951
    %v2960 = vadd.f32 %v2872, %v2956
    %v2961 = vmul.f32 %v2959, %v2698
    %v2962 = vmul.f32 %v2960, %v2698
    %v2963 = vadd.f32 %v2961, %v2704
    %v2964 = vadd.f32 %v2962, %v2704
    %v2965 = vmax.f32 %v2705, %v2963
    %v2966 = vmax.f32 %v2706, %v2964
    %2967 = vst.msk [vmem:[#allocation6] sm:$0xff] %vm112, %v2965
    %2968 = vst.msk [vmem:[#allocation6 + $0x8] sm:$0x3] %vm1774, %v2966
    %v2969 = vld [vmem:[#allocation6] ss:$2 sm:$0x3]
    %v2970 = vld [vmem:[%s1777] ss:$2 sm:$0x3]
    %v2971 = vmax.f32 %v2969, %v2970
    %v2972 = vmax.f32 %v2971, 0.0
    %2973 = vst.msk [vmem:[%s9] sm:$0x3] %vm1774, %v2972
    %2974 = vst.msk [vmem:[#allocation5 + $0x1] sm:$0x3] %vm1774, %v2972
    %s2975 = scalar_lea.vmem [#allocation6], 6
    %v2976 = vld [vmem:[%s2975] ss:$2 sm:$0x3]
    %s2977 = scalar_lea.vmem [#allocation6], 7
    %v2978 = vld [vmem:[%s2977] ss:$2 sm:$0x3]
    %v2979 = vmax.f32 %v2976, %v2978
    %v2980 = vmax.f32 %v2979, 0.0
    %2981 = vst.msk [vmem:[%s9 + $0x2] sm:$0x3] %vm1774, %v2980
    %2982 = vst.msk [vmem:[#allocation5 + $0x5] sm:$0x3] %vm1774, %v2980
    %v2983 = vld [vmem:[#allocation5] sm:$0x3f]
    %v2984 = vld [vmem:[#allocation15] sm:$0xff]
    %v2985 = vld [vmem:[#allocation15 + $0x8] sm:$0xff]
    %v2986 = vld [vmem:[#allocation15 + $0x10] sm:$0xff]
    %v2987 = vld [vmem:[#allocation15 + $0x18] sm:$0xff]
    %v2988 = vld [vmem:[#allocation15 + $0x20] sm:$0xff]
    %v2989 = vld [vmem:[#allocation15 + $0x28] sm:$0xff]
    %v2990 = vld [vmem:[#allocation15 + $0x30] sm:$0xff]
    %v2991 = vld [vmem:[#allocation15 + $0x38] sm:$0xff]
    %v2992 = vld [vmem:[#allocation5 + $0x1] sm:$0x3f]
    %s2993 = scalar_lea.vmem [#allocation15], 128
    %v2994 = vld [vmem:[%s2993] sm:$0xff]
    %v2995 = vld [vmem:[%s2993 + $0x8] sm:$0xff]
    %v2996 = vld [vmem:[%s2993 + $0x10] sm:$0xff]
    %v2997 = vld [vmem:[%s2993 + $0x18] sm:$0xff]
    %v2998 = vld [vmem:[%s2993 + $0x20] sm:$0xff]
    %v2999 = vld [vmem:[%s2993 + $0x28] sm:$0xff]
    %v3000 = vld [vmem:[%s2993 + $0x30] sm:$0xff]
    %v3001 = vld [vmem:[%s2993 + $0x38] sm:$0xff]
    %v3003 = vsel %vm112, %v2992, 0
    %3005 = vmatprep.subr.mxu0 0.0
    %3006 = vmatpush1.msra.mxu0 %v2994
    %3007 = vmatprep.subr.mxu0 0.0
    %3008 = vmatpush1.msra.mxu0 %v2995
    %3009 = vmatprep.subr.mxu0 0.0
    %3010 = vmatpush1.msra.mxu0 %v2996
    %3011 = vmatprep.subr.mxu0 0.0
    %3012 = vmatpush1.msra.mxu0 %v2997
    %3013 = vmatprep.subr.mxu0 0.0
    %3014 = vmatpush1.msra.mxu0 %v2998
    %3015 = vmatprep.subr.mxu0 0.0
    %3016 = vmatpush1.msra.mxu0 %v2999
    %3017 = vmatprep.subr.mxu0 0.0
    %3018 = vmatpush1.msra.mxu0 %v3000
    %3019 = vmatprep.subr.mxu0 0.0
    %3020 = vmatpush1.msra.mxu0 %v3001
    %3021 = vmatprep.subr.mxu0 0.0
    %3022 = vmatpush1.msra.mxu0 0.0
    %3023 = vmatprep.subr.mxu0 0.0
    %3024 = vmatpush1.msra.mxu0 0.0
    %3025 = vmatprep.subr.mxu0 0.0
    %3026 = vmatpush1.msra.mxu0 0.0
    %3027 = vmatprep.subr.mxu0 0.0
    %3028 = vmatpush1.msra.mxu0 0.0
    %3029 = vmatprep.subr.mxu0 0.0
    %3030 = vmatpush1.msra.mxu0 0.0
    %3031 = vmatprep.subr.mxu0 0.0
    %3032 = vmatpush1.msra.mxu0 0.0
    %3033 = vmatprep.subr.mxu0 0.0
    %3034 = vmatpush1.msra.mxu0 0.0
    %3035 = vmatprep.subr.mxu0 0.0
    %3036 = vmatpush1.msra.mxu0 0.0
    %3037 = vmatprep.subr.mxu0 0.0
    %3038 = vmatpush1.msra.mxu0 0.0
    %3039 = vmatprep.subr.mxu0 0.0
    %3040 = vmatpush1.msra.mxu0 0.0
    %3041 = vmatprep.subr.mxu0 0.0
    %3042 = vmatpush1.msra.mxu0 0.0
    %3043 = vmatprep.subr.mxu0 0.0
    %3044 = vmatpush1.msra.mxu0 0.0
    %3045 = vmatprep.subr.mxu0 0.0
    %3046 = vmatpush1.msra.mxu0 0.0
    %3047 = vmatprep.subr.mxu0 0.0
    %3048 = vmatpush1.msra.mxu0 0.0
    %3049 = vmatprep.subr.mxu0 0.0
    %3050 = vmatpush1.msra.mxu0 0.0
    %3051 = vmatprep.subr.mxu0 0.0
    %3052 = vmatpush1.msra.mxu0 0.0
    %3053 = vmatprep.subr.mxu0 0.0
    %3054 = vmatpush1.msra.mxu0 0.0
    %3055 = vmatprep.subr.mxu0 0.0
    %3056 = vmatpush1.msra.mxu0 0.0
    %3057 = vmatprep.subr.mxu0 0.0
    %3058 = vmatpush1.msra.mxu0 0.0
    %3059 = vmatprep.subr.mxu0 0.0
    %3060 = vmatpush1.msra.mxu0 0.0
    %3061 = vmatprep.subr.mxu0 0.0
    %3062 = vmatpush1.msra.mxu0 0.0
    %3063 = vmatprep.subr.mxu0 0.0
    %3064 = vmatpush1.msra.mxu0 0.0
    %3065 = vmatprep.subr.mxu0 0.0
    %3066 = vmatpush1.msra.mxu0 0.0
    %3067 = vmatprep.subr.mxu0 0.0
    %3068 = vmatpush1.msra.mxu0 0.0
    %3069 = vmatprep.mubr.f32.mxu0 0.0
    %3070 = vmatmul.mubr.f32.gmra.mrb[0].mxu0 %v3003
    %v3071 = vpop.f32.mrb[0].mxu0
    %v3072 = vadd.f32 0.0, %v3071
    %v3073 = vpop.f32.mrb[0].mxu0
    %3074 = vdwg.mxu0
    %v3076 = vsel %vm112, %v2983, 0
    %3078 = vmatprep.subr.mxu0 0.0
    %3079 = vmatpush1.msra.mxu0 %v2984
    %3080 = vmatprep.subr.mxu0 0.0
    %3081 = vmatpush1.msra.mxu0 %v2985
    %3082 = vmatprep.subr.mxu0 0.0
    %3083 = vmatpush1.msra.mxu0 %v2986
    %3084 = vmatprep.subr.mxu0 0.0
    %3085 = vmatpush1.msra.mxu0 %v2987
    %3086 = vmatprep.subr.mxu0 0.0
    %3087 = vmatpush1.msra.mxu0 %v2988
    %3088 = vmatprep.subr.mxu0 0.0
    %3089 = vmatpush1.msra.mxu0 %v2989
    %3090 = vmatprep.subr.mxu0 0.0
    %3091 = vmatpush1.msra.mxu0 %v2990
    %3092 = vmatprep.subr.mxu0 0.0
    %3093 = vmatpush1.msra.mxu0 %v2991
    %3094 = vmatprep.subr.mxu0 0.0
    %3095 = vmatpush1.msra.mxu0 0.0
    %3096 = vmatprep.subr.mxu0 0.0
    %3097 = vmatpush1.msra.mxu0 0.0
    %3098 = vmatprep.subr.mxu0 0.0
    %3099 = vmatpush1.msra.mxu0 0.0
    %3100 = vmatprep.subr.mxu0 0.0
    %3101 = vmatpush1.msra.mxu0 0.0
    %3102 = vmatprep.subr.mxu0 0.0
    %3103 = vmatpush1.msra.mxu0 0.0
    %3104 = vmatprep.subr.mxu0 0.0
    %3105 = vmatpush1.msra.mxu0 0.0
    %3106 = vmatprep.subr.mxu0 0.0
    %3107 = vmatpush1.msra.mxu0 0.0
    %3108 = vmatprep.subr.mxu0 0.0
    %3109 = vmatpush1.msra.mxu0 0.0
    %3110 = vmatprep.subr.mxu0 0.0
    %3111 = vmatpush1.msra.mxu0 0.0
    %3112 = vmatprep.subr.mxu0 0.0
    %3113 = vmatpush1.msra.mxu0 0.0
    %3114 = vmatprep.subr.mxu0 0.0
    %3115 = vmatpush1.msra.mxu0 0.0
    %3116 = vmatprep.subr.mxu0 0.0
    %3117 = vmatpush1.msra.mxu0 0.0
    %3118 = vmatprep.subr.mxu0 0.0
    %3119 = vmatpush1.msra.mxu0 0.0
    %3120 = vmatprep.subr.mxu0 0.0
    %3121 = vmatpush1.msra.mxu0 0.0
    %3122 = vmatprep.subr.mxu0 0.0
    %3123 = vmatpush1.msra.mxu0 0.0
    %3124 = vmatprep.subr.mxu0 0.0
    %3125 = vmatpush1.msra.mxu0 0.0
    %3126 = vmatprep.subr.mxu0 0.0
    %3127 = vmatpush1.msra.mxu0 0.0
    %3128 = vmatprep.subr.mxu0 0.0
    %3129 = vmatpush1.msra.mxu0 0.0
    %3130 = vmatprep.subr.mxu0 0.0
    %3131 = vmatpush1.msra.mxu0 0.0
    %3132 = vmatprep.subr.mxu0 0.0
    %3133 = vmatpush1.msra.mxu0 0.0
    %3134 = vmatprep.subr.mxu0 0.0
    %3135 = vmatpush1.msra.mxu0 0.0
    %3136 = vmatprep.subr.mxu0 0.0
    %3137 = vmatpush1.msra.mxu0 0.0
    %3138 = vmatprep.subr.mxu0 0.0
    %3139 = vmatpush1.msra.mxu0 0.0
    %3140 = vmatprep.subr.mxu0 0.0
    %3141 = vmatpush1.msra.mxu0 0.0
    %3142 = vmatprep.mubr.f32.mxu0 0.0
    %3143 = vmatmul.mubr.f32.gmra.mrb[0].mxu0 %v3076
    %v3144 = vpop.f32.mrb[0].mxu0
    %v3145 = vadd.f32 %v3072, %v3144
    %v3146 = vpop.f32.mrb[0].mxu0
    %3147 = vdwg.mxu0
    %v3148 = vld [vmem:[#allocation5 + $0x2] sm:$0x3f]
    %s3149 = scalar_lea.vmem [#allocation15], 256
    %v3150 = vld [vmem:[%s3149] sm:$0xff]
    %v3151 = vld [vmem:[%s3149 + $0x8] sm:$0xff]
    %v3152 = vld [vmem:[%s3149 + $0x10] sm:$0xff]
    %v3153 = vld [vmem:[%s3149 + $0x18] sm:$0xff]
    %v3154 = vld [vmem:[%s3149 + $0x20] sm:$0xff]
    %v3155 = vld [vmem:[%s3149 + $0x28] sm:$0xff]
    %v3156 = vld [vmem:[%s3149 + $0x30] sm:$0xff]
    %v3157 = vld [vmem:[%s3149 + $0x38] sm:$0xff]
    %v3159 = vsel %vm112, %v3148, 0
    %3161 = vmatprep.subr.mxu0 0.0
    %3162 = vmatpush1.msra.mxu0 %v3150
    %3163 = vmatprep.subr.mxu0 0.0
    %3164 = vmatpush1.msra.mxu0 %v3151
    %3165 = vmatprep.subr.mxu0 0.0
    %3166 = vmatpush1.msra.mxu0 %v3152
    %3167 = vmatprep.subr.mxu0 0.0
    %3168 = vmatpush1.msra.mxu0 %v3153
    %3169 = vmatprep.subr.mxu0 0.0
    %3170 = vmatpush1.msra.mxu0 %v3154
    %3171 = vmatprep.subr.mxu0 0.0
    %3172 = vmatpush1.msra.mxu0 %v3155
    %3173 = vmatprep.subr.mxu0 0.0
    %3174 = vmatpush1.msra.mxu0 %v3156
    %3175 = vmatprep.subr.mxu0 0.0
    %3176 = vmatpush1.msra.mxu0 %v3157
    %3177 = vmatprep.subr.mxu0 0.0
    %3178 = vmatpush1.msra.mxu0 0.0
    %3179 = vmatprep.subr.mxu0 0.0
    %3180 = vmatpush1.msra.mxu0 0.0
    %3181 = vmatprep.subr.mxu0 0.0
    %3182 = vmatpush1.msra.mxu0 0.0
    %3183 = vmatprep.subr.mxu0 0.0
    %3184 = vmatpush1.msra.mxu0 0.0
    %3185 = vmatprep.subr.mxu0 0.0
    %3186 = vmatpush1.msra.mxu0 0.0
    %3187 = vmatprep.subr.mxu0 0.0
    %3188 = vmatpush1.msra.mxu0 0.0
    %3189 = vmatprep.subr.mxu0 0.0
    %3190 = vmatpush1.msra.mxu0 0.0
    %3191 = vmatprep.subr.mxu0 0.0
    %3192 = vmatpush1.msra.mxu0 0.0
    %3193 = vmatprep.subr.mxu0 0.0
    %3194 = vmatpush1.msra.mxu0 0.0
    %3195 = vmatprep.subr.mxu0 0.0
    %3196 = vmatpush1.msra.mxu0 0.0
    %3197 = vmatprep.subr.mxu0 0.0
    %3198 = vmatpush1.msra.mxu0 0.0
    %3199 = vmatprep.subr.mxu0 0.0
    %3200 = vmatpush1.msra.mxu0 0.0
    %3201 = vmatprep.subr.mxu0 0.0
    %3202 = vmatpush1.msra.mxu0 0.0
    %3203 = vmatprep.subr.mxu0 0.0
    %3204 = vmatpush1.msra.mxu0 0.0
    %3205 = vmatprep.subr.mxu0 0.0
    %3206 = vmatpush1.msra.mxu0 0.0
    %3207 = vmatprep.subr.mxu0 0.0
    %3208 = vmatpush1.msra.mxu0 0.0
    %3209 = vmatprep.subr.mxu0 0.0
    %3210 = vmatpush1.msra.mxu0 0.0
    %3211 = vmatprep.subr.mxu0 0.0
    %3212 = vmatpush1.msra.mxu0 0.0
    %3213 = vmatprep.subr.mxu0 0.0
    %3214 = vmatpush1.msra.mxu0 0.0
    %3215 = vmatprep.subr.mxu0 0.0
    %3216 = vmatpush1.msra.mxu0 0.0
    %3217 = vmatprep.subr.mxu0 0.0
    %3218 = vmatpush1.msra.mxu0 0.0
    %3219 = vmatprep.subr.mxu0 0.0
    %3220 = vmatpush1.msra.mxu0 0.0
    %3221 = vmatprep.subr.mxu0 0.0
    %3222 = vmatpush1.msra.mxu0 0.0
    %3223 = vmatprep.subr.mxu0 0.0
    %3224 = vmatpush1.msra.mxu0 0.0
    %3225 = vmatprep.mubr.f32.mxu0 0.0
    %3226 = vmatmul.mubr.f32.gmra.mrb[0].mxu0 %v3159
    %v3227 = vpop.f32.mrb[0].mxu0
    %v3228 = vadd.f32 0.0, %v3227
    %v3229 = vpop.f32.mrb[0].mxu0
    %3230 = vdwg.mxu0
    %v3231 = vadd.f32 %v3145, %v3228
    %v3232 = vlaneseq
    %v3233 = vshrl.u32 %v3232, 7
    %v3234 = vsub.s32 3, %v3233
    %v3235 = vrot.slane %v99, %v3234
    %v3236 = vmul.f32 %v3231, %v3235
    %v3237 = vlaneseq
    %v3238 = vshrl.u32 %v3237, 7
    %v3239 = vsub.s32 3, %v3238
    %v3240 = vrot.slane %v100, %v3239
    %v3241 = vadd.f32 %v3236, %v3240
    %s3242 = scalar_lea.vmem [#allocation15], 64
    %v3243 = vld [vmem:[%s3242] sm:$0xff]
    %v3244 = vld [vmem:[%s3242 + $0x8] sm:$0xff]
    %v3245 = vld [vmem:[%s3242 + $0x10] sm:$0xff]
    %v3246 = vld [vmem:[%s3242 + $0x18] sm:$0xff]
    %v3247 = vld [vmem:[%s3242 + $0x20] sm:$0xff]
    %v3248 = vld [vmem:[%s3242 + $0x28] sm:$0xff]
    %v3249 = vld [vmem:[%s3242 + $0x30] sm:$0xff]
    %v3250 = vld [vmem:[%s3242 + $0x38] sm:$0xff]
    %s3251 = scalar_lea.vmem [#allocation15], 192
    %v3252 = vld [vmem:[%s3251] sm:$0xff]
    %v3253 = vld [vmem:[%s3251 + $0x8] sm:$0xff]
    %v3254 = vld [vmem:[%s3251 + $0x10] sm:$0xff]
    %v3255 = vld [vmem:[%s3251 + $0x18] sm:$0xff]
    %v3256 = vld [vmem:[%s3251 + $0x20] sm:$0xff]
    %v3257 = vld [vmem:[%s3251 + $0x28] sm:$0xff]
    %v3258 = vld [vmem:[%s3251 + $0x30] sm:$0xff]
    %v3259 = vld [vmem:[%s3251 + $0x38] sm:$0xff]
    %3260 = vmatprep.subr.mxu0 0.0
    %3261 = vmatpush1.msra.mxu0 %v3252
    %3262 = vmatprep.subr.mxu0 0.0
    %3263 = vmatpush1.msra.mxu0 %v3253
    %3264 = vmatprep.subr.mxu0 0.0
    %3265 = vmatpush1.msra.mxu0 %v3254
    %3266 = vmatprep.subr.mxu0 0.0
    %3267 = vmatpush1.msra.mxu0 %v3255
    %3268 = vmatprep.subr.mxu0 0.0
    %3269 = vmatpush1.msra.mxu0 %v3256
    %3270 = vmatprep.subr.mxu0 0.0
    %3271 = vmatpush1.msra.mxu0 %v3257
    %3272 = vmatprep.subr.mxu0 0.0
    %3273 = vmatpush1.msra.mxu0 %v3258
    %3274 = vmatprep.subr.mxu0 0.0
    %3275 = vmatpush1.msra.mxu0 %v3259
    %3276 = vmatprep.subr.mxu0 0.0
    %3277 = vmatpush1.msra.mxu0 0.0
    %3278 = vmatprep.subr.mxu0 0.0
    %3279 = vmatpush1.msra.mxu0 0.0
    %3280 = vmatprep.subr.mxu0 0.0
    %3281 = vmatpush1.msra.mxu0 0.0
    %3282 = vmatprep.subr.mxu0 0.0
    %3283 = vmatpush1.msra.mxu0 0.0
    %3284 = vmatprep.subr.mxu0 0.0
    %3285 = vmatpush1.msra.mxu0 0.0
    %3286 = vmatprep.subr.mxu0 0.0
    %3287 = vmatpush1.msra.mxu0 0.0
    %3288 = vmatprep.subr.mxu0 0.0
    %3289 = vmatpush1.msra.mxu0 0.0
    %3290 = vmatprep.subr.mxu0 0.0
    %3291 = vmatpush1.msra.mxu0 0.0
    %3292 = vmatprep.subr.mxu0 0.0
    %3293 = vmatpush1.msra.mxu0 0.0
    %3294 = vmatprep.subr.mxu0 0.0
    %3295 = vmatpush1.msra.mxu0 0.0
    %3296 = vmatprep.subr.mxu0 0.0
    %3297 = vmatpush1.msra.mxu0 0.0
    %3298 = vmatprep.subr.mxu0 0.0
    %3299 = vmatpush1.msra.mxu0 0.0
    %3300 = vmatprep.subr.mxu0 0.0
    %3301 = vmatpush1.msra.mxu0 0.0
    %3302 = vmatprep.subr.mxu0 0.0
    %3303 = vmatpush1.msra.mxu0 0.0
    %3304 = vmatprep.subr.mxu0 0.0
    %3305 = vmatpush1.msra.mxu0 0.0
    %3306 = vmatprep.subr.mxu0 0.0
    %3307 = vmatpush1.msra.mxu0 0.0
    %3308 = vmatprep.subr.mxu0 0.0
    %3309 = vmatpush1.msra.mxu0 0.0
    %3310 = vmatprep.subr.mxu0 0.0
    %3311 = vmatpush1.msra.mxu0 0.0
    %3312 = vmatprep.subr.mxu0 0.0
    %3313 = vmatpush1.msra.mxu0 0.0
    %3314 = vmatprep.subr.mxu0 0.0
    %3315 = vmatpush1.msra.mxu0 0.0
    %3316 = vmatprep.subr.mxu0 0.0
    %3317 = vmatpush1.msra.mxu0 0.0
    %3318 = vmatprep.subr.mxu0 0.0
    %3319 = vmatpush1.msra.mxu0 0.0
    %3320 = vmatprep.subr.mxu0 0.0
    %3321 = vmatpush1.msra.mxu0 0.0
    %3322 = vmatprep.subr.mxu0 0.0
    %3323 = vmatpush1.msra.mxu0 0.0
    %3324 = vmatprep.mubr.f32.mxu0 0.0
    %3325 = vmatmul.mubr.f32.gmra.mrb[0].mxu0 %v3003
    %v3326 = vpop.f32.mrb[0].mxu0
    %v3327 = vadd.f32 0.0, %v3326
    %v3328 = vpop.f32.mrb[0].mxu0
    %3329 = vdwg.mxu0
    %3330 = vmatprep.subr.mxu0 0.0
    %3331 = vmatpush1.msra.mxu0 %v3243
    %3332 = vmatprep.subr.mxu0 0.0
    %3333 = vmatpush1.msra.mxu0 %v3244
    %3334 = vmatprep.subr.mxu0 0.0
    %3335 = vmatpush1.msra.mxu0 %v3245
    %3336 = vmatprep.subr.mxu0 0.0
    %3337 = vmatpush1.msra.mxu0 %v3246
    %3338 = vmatprep.subr.mxu0 0.0
    %3339 = vmatpush1.msra.mxu0 %v3247
    %3340 = vmatprep.subr.mxu0 0.0
    %3341 = vmatpush1.msra.mxu0 %v3248
    %3342 = vmatprep.subr.mxu0 0.0
    %3343 = vmatpush1.msra.mxu0 %v3249
    %3344 = vmatprep.subr.mxu0 0.0
    %3345 = vmatpush1.msra.mxu0 %v3250
    %3346 = vmatprep.subr.mxu0 0.0
    %3347 = vmatpush1.msra.mxu0 0.0
    %3348 = vmatprep.subr.mxu0 0.0
    %3349 = vmatpush1.msra.mxu0 0.0
    %3350 = vmatprep.subr.mxu0 0.0
    %3351 = vmatpush1.msra.mxu0 0.0
    %3352 = vmatprep.subr.mxu0 0.0
    %3353 = vmatpush1.msra.mxu0 0.0
    %3354 = vmatprep.subr.mxu0 0.0
    %3355 = vmatpush1.msra.mxu0 0.0
    %3356 = vmatprep.subr.mxu0 0.0
    %3357 = vmatpush1.msra.mxu0 0.0
    %3358 = vmatprep.subr.mxu0 0.0
    %3359 = vmatpush1.msra.mxu0 0.0
    %3360 = vmatprep.subr.mxu0 0.0
    %3361 = vmatpush1.msra.mxu0 0.0
    %3362 = vmatprep.subr.mxu0 0.0
    %3363 = vmatpush1.msra.mxu0 0.0
    %3364 = vmatprep.subr.mxu0 0.0
    %3365 = vmatpush1.msra.mxu0 0.0
    %3366 = vmatprep.subr.mxu0 0.0
    %3367 = vmatpush1.msra.mxu0 0.0
    %3368 = vmatprep.subr.mxu0 0.0
    %3369 = vmatpush1.msra.mxu0 0.0
    %3370 = vmatprep.subr.mxu0 0.0
    %3371 = vmatpush1.msra.mxu0 0.0
    %3372 = vmatprep.subr.mxu0 0.0
    %3373 = vmatpush1.msra.mxu0 0.0
    %3374 = vmatprep.subr.mxu0 0.0
    %3375 = vmatpush1.msra.mxu0 0.0
    %3376 = vmatprep.subr.mxu0 0.0
    %3377 = vmatpush1.msra.mxu0 0.0
    %3378 = vmatprep.subr.mxu0 0.0
    %3379 = vmatpush1.msra.mxu0 0.0
    %3380 = vmatprep.subr.mxu0 0.0
    %3381 = vmatpush1.msra.mxu0 0.0
    %3382 = vmatprep.subr.mxu0 0.0
    %3383 = vmatpush1.msra.mxu0 0.0
    %3384 = vmatprep.subr.mxu0 0.0
    %3385 = vmatpush1.msra.mxu0 0.0
    %3386 = vmatprep.subr.mxu0 0.0
    %3387 = vmatpush1.msra.mxu0 0.0
    %3388 = vmatprep.subr.mxu0 0.0
    %3389 = vmatpush1.msra.mxu0 0.0
    %3390 = vmatprep.subr.mxu0 0.0
    %3391 = vmatpush1.msra.mxu0 0.0
    %3392 = vmatprep.subr.mxu0 0.0
    %3393 = vmatpush1.msra.mxu0 0.0
    %3394 = vmatprep.mubr.f32.mxu0 0.0
    %3395 = vmatmul.mubr.f32.gmra.mrb[0].mxu0 %v3076
    %v3396 = vpop.f32.mrb[0].mxu0
    %v3397 = vadd.f32 %v3327, %v3396
    %v3398 = vpop.f32.mrb[0].mxu0
    %3399 = vdwg.mxu0
    %s3400 = scalar_lea.vmem [#allocation15], 320
    %v3401 = vld [vmem:[%s3400] sm:$0xff]
    %v3402 = vld [vmem:[%s3400 + $0x8] sm:$0xff]
    %v3403 = vld [vmem:[%s3400 + $0x10] sm:$0xff]
    %v3404 = vld [vmem:[%s3400 + $0x18] sm:$0xff]
    %v3405 = vld [vmem:[%s3400 + $0x20] sm:$0xff]
    %v3406 = vld [vmem:[%s3400 + $0x28] sm:$0xff]
    %v3407 = vld [vmem:[%s3400 + $0x30] sm:$0xff]
    %v3408 = vld [vmem:[%s3400 + $0x38] sm:$0xff]
    %3409 = vmatprep.subr.mxu0 0.0
    %3410 = vmatpush1.msra.mxu0 %v3401
    %3411 = vmatprep.subr.mxu0 0.0
    %3412 = vmatpush1.msra.mxu0 %v3402
    %3413 = vmatprep.subr.mxu0 0.0
    %3414 = vmatpush1.msra.mxu0 %v3403
    %3415 = vmatprep.subr.mxu0 0.0
    %3416 = vmatpush1.msra.mxu0 %v3404
    %3417 = vmatprep.subr.mxu0 0.0
    %3418 = vmatpush1.msra.mxu0 %v3405
    %3419 = vmatprep.subr.mxu0 0.0
    %3420 = vmatpush1.msra.mxu0 %v3406
    %3421 = vmatprep.subr.mxu0 0.0
    %3422 = vmatpush1.msra.mxu0 %v3407
    %3423 = vmatprep.subr.mxu0 0.0
    %3424 = vmatpush1.msra.mxu0 %v3408
    %3425 = vmatprep.subr.mxu0 0.0
    %3426 = vmatpush1.msra.mxu0 0.0
    %3427 = vmatprep.subr.mxu0 0.0
    %3428 = vmatpush1.msra.mxu0 0.0
    %3429 = vmatprep.subr.mxu0 0.0
    %3430 = vmatpush1.msra.mxu0 0.0
    %3431 = vmatprep.subr.mxu0 0.0
    %3432 = vmatpush1.msra.mxu0 0.0
    %3433 = vmatprep.subr.mxu0 0.0
    %3434 = vmatpush1.msra.mxu0 0.0
    %3435 = vmatprep.subr.mxu0 0.0
    %3436 = vmatpush1.msra.mxu0 0.0
    %3437 = vmatprep.subr.mxu0 0.0
    %3438 = vmatpush1.msra.mxu0 0.0
    %3439 = vmatprep.subr.mxu0 0.0
    %3440 = vmatpush1.msra.mxu0 0.0
    %3441 = vmatprep.subr.mxu0 0.0
    %3442 = vmatpush1.msra.mxu0 0.0
    %3443 = vmatprep.subr.mxu0 0.0
    %3444 = vmatpush1.msra.mxu0 0.0
    %3445 = vmatprep.subr.mxu0 0.0
    %3446 = vmatpush1.msra.mxu0 0.0
    %3447 = vmatprep.subr.mxu0 0.0
    %3448 = vmatpush1.msra.mxu0 0.0
    %3449 = vmatprep.subr.mxu0 0.0
    %3450 = vmatpush1.msra.mxu0 0.0
    %3451 = vmatprep.subr.mxu0 0.0
    %3452 = vmatpush1.msra.mxu0 0.0
    %3453 = vmatprep.subr.mxu0 0.0
    %3454 = vmatpush1.msra.mxu0 0.0
    %3455 = vmatprep.subr.mxu0 0.0
    %3456 = vmatpush1.msra.mxu0 0.0
    %3457 = vmatprep.subr.mxu0 0.0
    %3458 = vmatpush1.msra.mxu0 0.0
    %3459 = vmatprep.subr.mxu0 0.0
    %3460 = vmatpush1.msra.mxu0 0.0
    %3461 = vmatprep.subr.mxu0 0.0
    %3462 = vmatpush1.msra.mxu0 0.0
    %3463 = vmatprep.subr.mxu0 0.0
    %3464 = vmatpush1.msra.mxu0 0.0
    %3465 = vmatprep.subr.mxu0 0.0
    %3466 = vmatpush1.msra.mxu0 0.0
    %3467 = vmatprep.subr.mxu0 0.0
    %3468 = vmatpush1.msra.mxu0 0.0
    %3469 = vmatprep.subr.mxu0 0.0
    %3470 = vmatpush1.msra.mxu0 0.0
    %3471 = vmatprep.subr.mxu0 0.0
    %3472 = vmatpush1.msra.mxu0 0.0
    %3473 = vmatprep.mubr.f32.mxu0 0.0
    %3474 = vmatmul.mubr.f32.gmra.mrb[0].mxu0 %v3159
    %v3475 = vpop.f32.mrb[0].mxu0
    %v3476 = vadd.f32 0.0, %v3475
    %v3477 = vpop.f32.mrb[0].mxu0
    %3478 = vdwg.mxu0
    %v3479 = vadd.f32 %v3397, %v3476
    %v3480 = vmul.f32 %v3479, %v3235
    %v3481 = vadd.f32 %v3480, %v3240
    %v3482 = vmax.f32 %v3241, %v3481
    %vm3483 = vcmask 521216
    %3484 = vst.msk [vmem:[#allocation6] sm:$0x3f] %vm3483, %v3482
    %v3485 = vld [vmem:[#allocation6] ss:$2 sm:$0x1]
    %v3486 = vld [vmem:[%s1777] ss:$2 sm:$0x1]
    %v3487 = vmax.f32 %v3485, %v3486
    %v3488 = vmax.f32 %v3487, 0.0
    %vm3489 = vcmask 516096
    %3490 = vst.msk [vmem:[#allocation16] sm:$0x1] %vm3489, %v3488
    %s3491 = scalar_lea.vmem [#allocation6], 4
    %v3492 = vld [vmem:[%s3491] ss:$2 sm:$0x1]
    %s3493 = scalar_lea.vmem [#allocation6], 5
    %v3494 = vld [vmem:[%s3493] ss:$2 sm:$0x1]
    %v3495 = vmax.f32 %v3492, %v3494
    %v3496 = vmax.f32 %v3495, 0.0
    %3497 = vst.msk [vmem:[#allocation16 + $0x1] sm:$0x1] %vm3489, %v3496
    // Predicated region
    $region50: #{_hier_impl.1} parent=1 // pred_check
      _
    $region51: #{_hier_impl.1} parent=1 // pred_check_branch
      %3499 = sbr.rel (0) target = $region53
    $region52: #{_hier_impl.1} parent=1 // pred_region
      _
    $region53: #{_hier_impl.1} parent=1 // pred_fallthru
      _
    // Predicated region
    $region54: #{_hier_impl.1} parent=1 // pred_check
      _
    $region55: #{_hier_impl.1} parent=1 // pred_check_branch
      %3501 = sbr.rel (0) target = $region57
    $region56: #{_hier_impl.1} parent=1 // pred_region
      _
    $region57: #{_hier_impl.1} parent=1 // pred_fallthru
      _
    // Predicated region
    $region58: #{_hier_impl.1} parent=1 // pred_check
      _
    $region59: #{_hier_impl.1} parent=1 // pred_check_branch
      %3503 = sbr.rel (0) target = $region61
    $region60: #{_hier_impl.1} parent=1 // pred_region
      _
    $region61: #{_hier_impl.1} parent=1 // pred_fallthru
      _
    // Predicated region
    $region62: #{_hier_impl.1} parent=1 // pred_check
      _
    $region63: #{_hier_impl.1} parent=1 // pred_check_branch
      %3505 = sbr.rel (0) target = $region65
    $region64: #{_hier_impl.1} parent=1 // pred_region
      %s3507 = ssub.s32 32, 32
      %3508 = vsyncadd [#allocation9], %s3507
      %s3510 = sshll.u32 [#allocation16], 4
      %s3511 = int_to_ptr.vmem [resolvable:$true] %s3510
      %3513 = dma.vmem_to_hbm [thread:$0]  %s3511, 32, %s10, [#allocation9]
    $region65: #{_hier_impl.1} parent=1 // pred_fallthru
      _
    // Predicated region
    $region66: #{_hier_impl.1} parent=1 // pred_check
      _
    $region67: #{_hier_impl.1} parent=1 // pred_check_branch
      %3515 = sbr.rel (0) target = $region69
    $region68: #{_hier_impl.1} parent=1 // pred_region
      _
    $region69: #{_hier_impl.1} parent=1 // pred_fallthru
      _
    // Predicated region
    $region70: #{_hier_impl.1} parent=1 // pred_check
      _
    $region71: #{_hier_impl.1} parent=1 // pred_check_branch
      %3517 = sbr.rel (0) target = $region73
    $region72: #{_hier_impl.1} parent=1 // pred_region
      _
    $region73: #{_hier_impl.1} parent=1 // pred_fallthru
      _
    // Predicated region
    $region74: #{_hier_impl.1} parent=1 // pred_check
      _
    $region75: #{_hier_impl.1} parent=1 // pred_check_branch
      %3519 = sbr.rel (0) target = $region77
    $region76: #{_hier_impl.1} parent=1 // pred_region
      _
    $region77: #{_hier_impl.1} parent=1 // pred_fallthru
      _
    // Predicated region
    $region78: #{_hier_impl.1} parent=1 // pred_check
      _
    $region79: #{_hier_impl.1} parent=1 // pred_check_branch
      %3521 = sbr.rel (0) target = $region81
    $region80: #{_hier_impl.1} parent=1 // pred_region
      %3522 = dma.done [#allocation9], 32
    $region81: #{_hier_impl.1} parent=1 // pred_fallthru
      _
    %3523 = vsyncpa [#allocation8], 1
    %3524 = vsyncpa [#allocation11], 1
    %3525 = vsyncpa [#allocation14], 1
    %3526 = vsyncpa [#allocation9], 1

</llo_original>
